<compile_context>
chip_gen: v7x
topology: tpu7x:2x2x1
jax: 0.10.0
libtpu: 0.0.40
codegen_flags: <defaults>
</compile_context>

<pallas_src>
import functools

import jax
import jax.numpy as jnp
from jax.experimental import pallas as pl
from jax.experimental.pallas import tpu as pltpu


def _spatial_attention_kernel(x_ref, w_ref, o_ref, sum_ref, max_ref,
                              *, C, H, W, K, P):
    # x_ref  : (1, TC, H*W)  VMEM input block (one batch element, TC channels)
    # w_ref  : (2*K*K,)      SMEM conv weights, flattened (in, ky, kx)
    # o_ref  : (1, 1, H*W)   VMEM output block (same block for every C step)
    # sum_ref: (8, H*W)      VMEM f32 running channel sum (8-sublane lanes)
    # max_ref: (8, H*W)      VMEM f32 running channel max (8-sublane lanes)
    HW = H * W
    TC = x_ref.shape[1]
    c_step = pl.program_id(1)

    @pl.when(c_step == 0)
    def _init():
        sum_ref[...] = jnp.zeros_like(sum_ref)
        max_ref[...] = jnp.full_like(max_ref, -jnp.inf)

    # ---- hot loop: fused single pass over this channel block ----
    x = x_ref[0].astype(jnp.float32)                         # (TC, HW)

    if C % TC != 0:
        # Last channel block extends past C; mask the padded (garbage) rows.
        row = jax.lax.broadcasted_iota(jnp.int32, (TC, 1), 0)
        valid = (c_step * TC + row) < C
        x_sum = jnp.where(valid, x, 0.0)
        x_max = jnp.where(valid, x, -jnp.inf)
    else:
        x_sum = x
        x_max = x

    G, R = divmod(TC, 8)
    part_sum = None
    part_max = None
    if G > 0:
        xs = x_sum[: 8 * G].reshape(G, 8, HW)
        xm = x_max[: 8 * G].reshape(G, 8, HW)
        part_sum = jnp.sum(xs, axis=0)                        # (8, HW) VPU adds
        part_max = jnp.max(xm, axis=0)                        # (8, HW) VPU maxes
    if R > 0:
        tail_s = jnp.concatenate(
            [x_sum[8 * G:], jnp.zeros((8 - R, HW), jnp.float32)], axis=0)
        tail_m = jnp.concatenate(
            [x_max[8 * G:], jnp.full((8 - R, HW), -jnp.inf, jnp.float32)],
            axis=0)
        part_sum = tail_s if part_sum is None else part_sum + tail_s
        part_max = tail_m if part_max is None else jnp.maximum(part_max, tail_m)

    sum_ref[...] += part_sum
    max_ref[...] = jnp.maximum(max_ref[...], part_max)

    # ---- finalize: 2->1 KxK "same" zero-padded conv + sigmoid ----
    @pl.when(c_step == pl.num_programs(1) - 1)
    def _finalize():
        # One 8-sublane cross reduce each, done once per batch element.
        avg = jnp.sum(sum_ref[...], axis=0, keepdims=True) * jnp.float32(1.0 / C)
        mx = jnp.max(max_ref[...], axis=0, keepdims=True)
        feats = jnp.concatenate([avg, mx], axis=0)            # (2, HW)

        # Hoisted, loop-invariant scalar weight reads from SMEM.
        wv = [w_ref[i] for i in range(2 * K * K)]
        # Row selector for the per-tap (2,1) weight (row0 = avg, row1 = max).
        rsel = jax.lax.broadcasted_iota(jnp.int32, (2, 1), 0)

        # Flat spatial position p = i*W + j (per-tap masks are derived from
        # these two small arrays; no mask is held across the tap loop).
        idx = jax.lax.broadcasted_iota(jnp.int32, (2, HW), 1)
        col = idx % W

        acc = jnp.zeros((2, HW), jnp.float32)
        for ky in range(K):
            dy = ky - P
            if dy == 0:
                row_ok = None
            else:
                sh = idx + dy * W
                row_ok = jnp.logical_and(sh >= 0, sh < HW)
            for kx in range(K):
                dx = kx - P
                s = dy * W + dx
                # tap[p] = feats[(p + s) mod HW]; wrap-around killed by mask.
                tap = feats if s == 0 else pltpu.roll(
                    feats, shift=(-s) % HW, axis=1)
                if dx == 0:
                    ok = row_ok
                else:
                    col_ok = jnp.logical_and(col + dx >= 0, col + dx < W)
                    ok = col_ok if row_ok is None else jnp.logical_and(row_ok,
                                                                       col_ok)
                if ok is not None:
                    tap = jnp.where(ok, tap, 0.0)
                t = ky * K + kx
                w2 = jnp.where(rsel == 0, wv[t], wv[K * K + t])   # (2, 1)
                acc = acc + tap * w2

        conv = jnp.sum(acc, axis=0, keepdims=True)            # (1, HW)
        o_ref[0] = jax.nn.sigmoid(conv).astype(o_ref.dtype)


def _pick_channel_tile(C, HW, itemsize, budget_bytes=8 * 1024 * 1024):
    """Channel tile: the largest that (a) fits the per-buffer VMEM budget
    (the pipeline double-buffers each input block), (b) is a multiple of the
    dtype's sublane packing (8 for f32, 16 for bf16, 32 for int8/fp8), and
    (c) preferably divides C exactly.  If no exact divisor fits, a non-divisor
    tile is returned and the kernel masks the padded tail block."""
    step = max(8, 32 // itemsize)
    if C * HW * itemsize <= budget_bytes:
        return C
    if C < step:
        return C
    per_channel = HW * itemsize
    max_tc = max(step, (budget_bytes // per_channel) // step * step)
    max_tc = min(max_tc, (C // step) * step)
    tc = max_tc
    while tc >= step:
        if C % tc == 0:
            return tc
        tc -= step
    return max_tc   # no exact divisor: padded tail handled in-kernel


def spatial_attention(x, weight, kernel_size=7):
    """CBAM SpatialAttention forward.  x: (N, C, H, W); weight: (1, 2, K, K)."""
    assert kernel_size in (3, 7), "kernel size must be 3 or 7"
    N, C, H, W = x.shape
    K = kernel_size
    P = K // 2
    HW = H * W

    # Lane-dense layout; input dtype is kept as-is (bf16 inputs stay bf16 on
    # the dominant HBM read; accumulation is f32 in VMEM scratch).
    x_flat = x.reshape(N, C, HW)
    w_flat = weight.reshape(-1).astype(jnp.float32)   # (2*K*K,) in (in,ky,kx)

    TC = _pick_channel_tile(C, HW, x.dtype.itemsize)
    grid = (N, pl.cdiv(C, TC))

    kernel = functools.partial(
        _spatial_attention_kernel, C=C, H=H, W=W, K=K, P=P)

    out_flat = pl.pallas_call(
        kernel,
        out_shape=jax.ShapeDtypeStruct((N, 1, HW), x.dtype),
        grid_spec=pltpu.PrefetchScalarGridSpec(
            num_scalar_prefetch=0,
            grid=grid,
            in_specs=[
                pl.BlockSpec((1, TC, HW), lambda n, c: (n, c, 0)),
                pl.BlockSpec(memory_space=pltpu.MemorySpace.SMEM),
            ],
            out_specs=pl.BlockSpec((1, 1, HW), lambda n, c: (n, 0, 0)),
            scratch_shapes=[
                pltpu.VMEM((8, HW), jnp.float32),   # running channel sum
                pltpu.VMEM((8, HW), jnp.float32),   # running channel max
            ],
        ),
        compiler_params=pltpu.CompilerParams(
            dimension_semantics=("parallel", "arbitrary"),
            # 48 MiB scoped VMEM: holds 2 x ~8 MiB double-buffered input blocks
            # plus scratch/output on v5e/v6e (128 MiB physical) and stays under
            # v7x's 64 MiB-per-TC physical VMEM.
            vmem_limit_bytes=48 * 1024 * 1024,
        ),
    )(x_flat, w_flat)

    return out_flat.reshape(N, 1, H, W)


if __name__ == "__main__":
    key = jax.random.PRNGKey(0)
    kx_, kw_ = jax.random.split(key)

    N, C, H, W = 2, 4, 16, 16
    K = 7
    x = jax.random.normal(kx_, (N, C, H, W), jnp.float32)

    # Deterministic conv weight init (PyTorch-like kaiming-uniform bound),
    # shape (out=1, in=2, K, K), no bias.
    fan_in = 2 * K * K
    bound = (1.0 / fan_in) ** 0.5
    weight = jax.random.uniform(kw_, (1, 2, K, K), jnp.float32, -bound, bound)

    out = jax.block_until_ready(spatial_attention(x, weight, kernel_size=K))

    # Pure-JAX reference for correctness check.
    avg = jnp.mean(x, axis=1, keepdims=True)
    mx = jnp.max(x, axis=1, keepdims=True)
    cat = jnp.concatenate([avg, mx], axis=1)
    ref = jax.lax.conv_general_dilated(
        cat, weight, window_strides=(1, 1),
        padding=((K // 2, K // 2), (K // 2, K // 2)),
        dimension_numbers=("NCHW", "OIHW", "NCHW"))
    ref = jax.nn.sigmoid(ref)

    assert out.shape == (N, 1, H, W)
    assert jnp.allclose(out, ref, atol=1e-5, rtol=1e-5)
    print("KERNEL_OK")
</pallas_src>

<mosaic_0001>
module attributes {stable_mosaic.version = 11 : i64} {
  func.func @_spatial_attention_kernel(%arg0: i32, %arg1: i32, %arg2: memref<1x4x256xf32, #tpu.memory_space<vmem>>, %arg3: memref<98xf32, #tpu.memory_space<smem>>, %arg4: memref<1x1x256xf32, #tpu.memory_space<vmem>>, %arg5: memref<8x256xf32, #tpu.memory_space<vmem>>, %arg6: memref<8x256xf32, #tpu.memory_space<vmem>>) attributes {dimension_semantics = [#tpu.dimension_semantics<parallel>, #tpu.dimension_semantics<arbitrary>], iteration_bounds = array<i64: 2, 1>, scalar_prefetch = 0 : i64, scratch_operands = 2 : i64, tpu.core_type = #tpu.core_type<tc>, window_params = [{transform_indices = @transform_0, window_bounds = array<i64: 1, 4, 256>}, {transform_indices = @transform_1, window_bounds = array<i64: 98>}, {transform_indices = @transform_2, window_bounds = array<i64: 1, 1, 256>}]} {
    %c0_i32 = arith.constant 0 : i32
    %0 = arith.cmpi eq, %arg1, %c0_i32 : i32
    %1 = arith.extui %0 : i1 to i32
    %c0_i32_0 = arith.constant 0 : i32
    %2 = arith.cmpi ne, %1, %c0_i32_0 : i32
    scf.if %2 {
      %cst_14 = arith.constant 0.000000e+00 : f32
      %18 = vector.broadcast %cst_14 : f32 to vector<8x256xf32>
      %c0_15 = arith.constant 0 : index
      %c0_16 = arith.constant 0 : index
      %19 = vector.load %arg5[%c0_15, %c0_16] : memref<8x256xf32, #tpu.memory_space<vmem>>, vector<8x256xf32>
      tpu.vector_store %arg5[%c0_15, %c0_16], %18 {strides = array<i32>} : memref<8x256xf32, #tpu.memory_space<vmem>>, vector<8x256xf32>,
      %cst_17 = arith.constant 0xFF800000 : f32
      %20 = vector.broadcast %cst_17 : f32 to vector<8x256xf32>
      %c0_18 = arith.constant 0 : index
      %c0_19 = arith.constant 0 : index
      %21 = vector.load %arg6[%c0_18, %c0_19] : memref<8x256xf32, #tpu.memory_space<vmem>>, vector<8x256xf32>
      tpu.vector_store %arg6[%c0_18, %c0_19], %20 {strides = array<i32>} : memref<8x256xf32, #tpu.memory_space<vmem>>, vector<8x256xf32>,
    } else {
    }
    %c0 = arith.constant 0 : index
    %c0_1 = arith.constant 0 : index
    %c0_2 = arith.constant 0 : index
    %3 = vector.load %arg2[%c0, %c0_1, %c0_2] : memref<1x4x256xf32, #tpu.memory_space<vmem>>, vector<1x4x256xf32>
    %4 = vector.shape_cast %3 : vector<1x4x256xf32> to vector<4x256xf32>
    %cst = arith.constant 0.000000e+00 : f32
    %5 = vector.broadcast %cst : f32 to vector<4x256xf32>
    %6 = tpu.concatenate %4, %5 in 0 : vector<4x256xf32>, vector<4x256xf32> -> vector<8x256xf32>
    %cst_3 = arith.constant 0xFF800000 : f32
    %7 = vector.broadcast %cst_3 : f32 to vector<4x256xf32>
    %8 = tpu.concatenate %4, %7 in 0 : vector<4x256xf32>, vector<4x256xf32> -> vector<8x256xf32>
    %c0_4 = arith.constant 0 : index
    %c0_5 = arith.constant 0 : index
    %9 = vector.load %arg5[%c0_4, %c0_5] : memref<8x256xf32, #tpu.memory_space<vmem>>, vector<8x256xf32>
    %10 = arith.addf %9, %6 : vector<8x256xf32>
    %c0_6 = arith.constant 0 : index
    %c0_7 = arith.constant 0 : index
    %11 = vector.load %arg5[%c0_6, %c0_7] : memref<8x256xf32, #tpu.memory_space<vmem>>, vector<8x256xf32>
    tpu.vector_store %arg5[%c0_6, %c0_7], %10 {strides = array<i32>} : memref<8x256xf32, #tpu.memory_space<vmem>>, vector<8x256xf32>,
    %c0_8 = arith.constant 0 : index
    %c0_9 = arith.constant 0 : index
    %12 = vector.load %arg6[%c0_8, %c0_9] : memref<8x256xf32, #tpu.memory_space<vmem>>, vector<8x256xf32>
    %13 = arith.maximumf %12, %8 : vector<8x256xf32>
    %c0_10 = arith.constant 0 : index
    %c0_11 = arith.constant 0 : index
    %14 = vector.load %arg6[%c0_10, %c0_11] : memref<8x256xf32, #tpu.memory_space<vmem>>, vector<8x256xf32>
    tpu.vector_store %arg6[%c0_10, %c0_11], %13 {strides = array<i32>} : memref<8x256xf32, #tpu.memory_space<vmem>>, vector<8x256xf32>,
    %c0_i32_12 = arith.constant 0 : i32
    %15 = arith.cmpi eq, %arg1, %c0_i32_12 : i32
    %16 = arith.extui %15 : i1 to i32
    %c0_i32_13 = arith.constant 0 : i32
    %17 = arith.cmpi ne, %16, %c0_i32_13 : i32
    scf.if %17 {
      %c0_14 = arith.constant 0 : index
      %c0_15 = arith.constant 0 : index
      %18 = vector.load %arg5[%c0_14, %c0_15] : memref<8x256xf32, #tpu.memory_space<vmem>>, vector<8x256xf32>
      %cst_16 = arith.constant dense<0.000000e+00> : vector<256xf32>
      %19 = vector.multi_reduction <add>, %18, %cst_16 [0] : vector<8x256xf32> to vector<256xf32>
      %20 = vector.shape_cast %19 : vector<256xf32> to vector<1x256xf32>
      %cst_17 = arith.constant 2.500000e-01 : f32
      %21 = vector.broadcast %cst_17 : f32 to vector<1x256xf32>
      %22 = arith.mulf %20, %21 : vector<1x256xf32>
      %c0_18 = arith.constant 0 : index
      %c0_19 = arith.constant 0 : index
      %23 = vector.load %arg6[%c0_18, %c0_19] : memref<8x256xf32, #tpu.memory_space<vmem>>, vector<8x256xf32>
      %cst_20 = arith.constant dense<0xFF800000> : vector<256xf32>
      %24 = vector.multi_reduction <maximumf>, %23, %cst_20 [0] : vector<8x256xf32> to vector<256xf32>
      %25 = vector.shape_cast %24 : vector<256xf32> to vector<1x256xf32>
      %26 = tpu.concatenate %22, %25 in 0 : vector<1x256xf32>, vector<1x256xf32> -> vector<2x256xf32>
      %c0_21 = arith.constant 0 : index
      %27 = memref.load %arg3[%c0_21] : memref<98xf32, #tpu.memory_space<smem>>
      %c1 = arith.constant 1 : index
      %28 = memref.load %arg3[%c1] : memref<98xf32, #tpu.memory_space<smem>>
      %c2 = arith.constant 2 : index
      %29 = memref.load %arg3[%c2] : memref<98xf32, #tpu.memory_space<smem>>
      %c3 = arith.constant 3 : index
      %30 = memref.load %arg3[%c3] : memref<98xf32, #tpu.memory_space<smem>>
      %c4 = arith.constant 4 : index
      %31 = memref.load %arg3[%c4] : memref<98xf32, #tpu.memory_space<smem>>
      %c5 = arith.constant 5 : index
      %32 = memref.load %arg3[%c5] : memref<98xf32, #tpu.memory_space<smem>>
      %c6 = arith.constant 6 : index
      %33 = memref.load %arg3[%c6] : memref<98xf32, #tpu.memory_space<smem>>
      %c7 = arith.constant 7 : index
      %34 = memref.load %arg3[%c7] : memref<98xf32, #tpu.memory_space<smem>>
      %c8 = arith.constant 8 : index
      %35 = memref.load %arg3[%c8] : memref<98xf32, #tpu.memory_space<smem>>
      %c9 = arith.constant 9 : index
      %36 = memref.load %arg3[%c9] : memref<98xf32, #tpu.memory_space<smem>>
      %c10 = arith.constant 10 : index
      %37 = memref.load %arg3[%c10] : memref<98xf32, #tpu.memory_space<smem>>
      %c11 = arith.constant 11 : index
      %38 = memref.load %arg3[%c11] : memref<98xf32, #tpu.memory_space<smem>>
      %c12 = arith.constant 12 : index
      %39 = memref.load %arg3[%c12] : memref<98xf32, #tpu.memory_space<smem>>
      %c13 = arith.constant 13 : index
      %40 = memref.load %arg3[%c13] : memref<98xf32, #tpu.memory_space<smem>>
      %c14 = arith.constant 14 : index
      %41 = memref.load %arg3[%c14] : memref<98xf32, #tpu.memory_space<smem>>
      %c15 = arith.constant 15 : index
      %42 = memref.load %arg3[%c15] : memref<98xf32, #tpu.memory_space<smem>>
      %c16 = arith.constant 16 : index
      %43 = memref.load %arg3[%c16] : memref<98xf32, #tpu.memory_space<smem>>
      %c17 = arith.constant 17 : index
      %44 = memref.load %arg3[%c17] : memref<98xf32, #tpu.memory_space<smem>>
      %c18 = arith.constant 18 : index
      %45 = memref.load %arg3[%c18] : memref<98xf32, #tpu.memory_space<smem>>
      %c19 = arith.constant 19 : index
      %46 = memref.load %arg3[%c19] : memref<98xf32, #tpu.memory_space<smem>>
      %c20 = arith.constant 20 : index
      %47 = memref.load %arg3[%c20] : memref<98xf32, #tpu.memory_space<smem>>
      %c21 = arith.constant 21 : index
      %48 = memref.load %arg3[%c21] : memref<98xf32, #tpu.memory_space<smem>>
      %c22 = arith.constant 22 : index
      %49 = memref.load %arg3[%c22] : memref<98xf32, #tpu.memory_space<smem>>
      %c23 = arith.constant 23 : index
      %50 = memref.load %arg3[%c23] : memref<98xf32, #tpu.memory_space<smem>>
      %c24 = arith.constant 24 : index
      %51 = memref.load %arg3[%c24] : memref<98xf32, #tpu.memory_space<smem>>
      %c25 = arith.constant 25 : index
      %52 = memref.load %arg3[%c25] : memref<98xf32, #tpu.memory_space<smem>>
      %c26 = arith.constant 26 : index
      %53 = memref.load %arg3[%c26] : memref<98xf32, #tpu.memory_space<smem>>
      %c27 = arith.constant 27 : index
      %54 = memref.load %arg3[%c27] : memref<98xf32, #tpu.memory_space<smem>>
      %c28 = arith.constant 28 : index
      %55 = memref.load %arg3[%c28] : memref<98xf32, #tpu.memory_space<smem>>
      %c29 = arith.constant 29 : index
      %56 = memref.load %arg3[%c29] : memref<98xf32, #tpu.memory_space<smem>>
      %c30 = arith.constant 30 : index
      %57 = memref.load %arg3[%c30] : memref<98xf32, #tpu.memory_space<smem>>
      %c31 = arith.constant 31 : index
      %58 = memref.load %arg3[%c31] : memref<98xf32, #tpu.memory_space<smem>>
      %c32 = arith.constant 32 : index
      %59 = memref.load %arg3[%c32] : memref<98xf32, #tpu.memory_space<smem>>
      %c33 = arith.constant 33 : index
      %60 = memref.load %arg3[%c33] : memref<98xf32, #tpu.memory_space<smem>>
      %c34 = arith.constant 34 : index
      %61 = memref.load %arg3[%c34] : memref<98xf32, #tpu.memory_space<smem>>
      %c35 = arith.constant 35 : index
      %62 = memref.load %arg3[%c35] : memref<98xf32, #tpu.memory_space<smem>>
      %c36 = arith.constant 36 : index
      %63 = memref.load %arg3[%c36] : memref<98xf32, #tpu.memory_space<smem>>
      %c37 = arith.constant 37 : index
      %64 = memref.load %arg3[%c37] : memref<98xf32, #tpu.memory_space<smem>>
      %c38 = arith.constant 38 : index
      %65 = memref.load %arg3[%c38] : memref<98xf32, #tpu.memory_space<smem>>
      %c39 = arith.constant 39 : index
      %66 = memref.load %arg3[%c39] : memref<98xf32, #tpu.memory_space<smem>>
      %c40 = arith.constant 40 : index
      %67 = memref.load %arg3[%c40] : memref<98xf32, #tpu.memory_space<smem>>
      %c41 = arith.constant 41 : index
      %68 = memref.load %arg3[%c41] : memref<98xf32, #tpu.memory_space<smem>>
      %c42 = arith.constant 42 : index
      %69 = memref.load %arg3[%c42] : memref<98xf32, #tpu.memory_space<smem>>
      %c43 = arith.constant 43 : index
      %70 = memref.load %arg3[%c43] : memref<98xf32, #tpu.memory_space<smem>>
      %c44 = arith.constant 44 : index
      %71 = memref.load %arg3[%c44] : memref<98xf32, #tpu.memory_space<smem>>
      %c45 = arith.constant 45 : index
      %72 = memref.load %arg3[%c45] : memref<98xf32, #tpu.memory_space<smem>>
      %c46 = arith.constant 46 : index
      %73 = memref.load %arg3[%c46] : memref<98xf32, #tpu.memory_space<smem>>
      %c47 = arith.constant 47 : index
      %74 = memref.load %arg3[%c47] : memref<98xf32, #tpu.memory_space<smem>>
      %c48 = arith.constant 48 : index
      %75 = memref.load %arg3[%c48] : memref<98xf32, #tpu.memory_space<smem>>
      %c49 = arith.constant 49 : index
      %76 = memref.load %arg3[%c49] : memref<98xf32, #tpu.memory_space<smem>>
      %c50 = arith.constant 50 : index
      %77 = memref.load %arg3[%c50] : memref<98xf32, #tpu.memory_space<smem>>
      %c51 = arith.constant 51 : index
      %78 = memref.load %arg3[%c51] : memref<98xf32, #tpu.memory_space<smem>>
      %c52 = arith.constant 52 : index
      %79 = memref.load %arg3[%c52] : memref<98xf32, #tpu.memory_space<smem>>
      %c53 = arith.constant 53 : index
      %80 = memref.load %arg3[%c53] : memref<98xf32, #tpu.memory_space<smem>>
      %c54 = arith.constant 54 : index
      %81 = memref.load %arg3[%c54] : memref<98xf32, #tpu.memory_space<smem>>
      %c55 = arith.constant 55 : index
      %82 = memref.load %arg3[%c55] : memref<98xf32, #tpu.memory_space<smem>>
      %c56 = arith.constant 56 : index
      %83 = memref.load %arg3[%c56] : memref<98xf32, #tpu.memory_space<smem>>
      %c57 = arith.constant 57 : index
      %84 = memref.load %arg3[%c57] : memref<98xf32, #tpu.memory_space<smem>>
      %c58 = arith.constant 58 : index
      %85 = memref.load %arg3[%c58] : memref<98xf32, #tpu.memory_space<smem>>
      %c59 = arith.constant 59 : index
      %86 = memref.load %arg3[%c59] : memref<98xf32, #tpu.memory_space<smem>>
      %c60 = arith.constant 60 : index
      %87 = memref.load %arg3[%c60] : memref<98xf32, #tpu.memory_space<smem>>
      %c61 = arith.constant 61 : index
      %88 = memref.load %arg3[%c61] : memref<98xf32, #tpu.memory_space<smem>>
      %c62 = arith.constant 62 : index
      %89 = memref.load %arg3[%c62] : memref<98xf32, #tpu.memory_space<smem>>
      %c63 = arith.constant 63 : index
      %90 = memref.load %arg3[%c63] : memref<98xf32, #tpu.memory_space<smem>>
      %c64 = arith.constant 64 : index
      %91 = memref.load %arg3[%c64] : memref<98xf32, #tpu.memory_space<smem>>
      %c65 = arith.constant 65 : index
      %92 = memref.load %arg3[%c65] : memref<98xf32, #tpu.memory_space<smem>>
      %c66 = arith.constant 66 : index
      %93 = memref.load %arg3[%c66] : memref<98xf32, #tpu.memory_space<smem>>
      %c67 = arith.constant 67 : index
      %94 = memref.load %arg3[%c67] : memref<98xf32, #tpu.memory_space<smem>>
      %c68 = arith.constant 68 : index
      %95 = memref.load %arg3[%c68] : memref<98xf32, #tpu.memory_space<smem>>
      %c69 = arith.constant 69 : index
      %96 = memref.load %arg3[%c69] : memref<98xf32, #tpu.memory_space<smem>>
      %c70 = arith.constant 70 : index
      %97 = memref.load %arg3[%c70] : memref<98xf32, #tpu.memory_space<smem>>
      %c71 = arith.constant 71 : index
      %98 = memref.load %arg3[%c71] : memref<98xf32, #tpu.memory_space<smem>>
      %c72 = arith.constant 72 : index
      %99 = memref.load %arg3[%c72] : memref<98xf32, #tpu.memory_space<smem>>
      %c73 = arith.constant 73 : index
      %100 = memref.load %arg3[%c73] : memref<98xf32, #tpu.memory_space<smem>>
      %c74 = arith.constant 74 : index
      %101 = memref.load %arg3[%c74] : memref<98xf32, #tpu.memory_space<smem>>
      %c75 = arith.constant 75 : index
      %102 = memref.load %arg3[%c75] : memref<98xf32, #tpu.memory_space<smem>>
      %c76 = arith.constant 76 : index
      %103 = memref.load %arg3[%c76] : memref<98xf32, #tpu.memory_space<smem>>
      %c77 = arith.constant 77 : index
      %104 = memref.load %arg3[%c77] : memref<98xf32, #tpu.memory_space<smem>>
      %c78 = arith.constant 78 : index
      %105 = memref.load %arg3[%c78] : memref<98xf32, #tpu.memory_space<smem>>
      %c79 = arith.constant 79 : index
      %106 = memref.load %arg3[%c79] : memref<98xf32, #tpu.memory_space<smem>>
      %c80 = arith.constant 80 : index
      %107 = memref.load %arg3[%c80] : memref<98xf32, #tpu.memory_space<smem>>
      %c81 = arith.constant 81 : index
      %108 = memref.load %arg3[%c81] : memref<98xf32, #tpu.memory_space<smem>>
      %c82 = arith.constant 82 : index
      %109 = memref.load %arg3[%c82] : memref<98xf32, #tpu.memory_space<smem>>
      %c83 = arith.constant 83 : index
      %110 = memref.load %arg3[%c83] : memref<98xf32, #tpu.memory_space<smem>>
      %c84 = arith.constant 84 : index
      %111 = memref.load %arg3[%c84] : memref<98xf32, #tpu.memory_space<smem>>
      %c85 = arith.constant 85 : index
      %112 = memref.load %arg3[%c85] : memref<98xf32, #tpu.memory_space<smem>>
      %c86 = arith.constant 86 : index
      %113 = memref.load %arg3[%c86] : memref<98xf32, #tpu.memory_space<smem>>
      %c87 = arith.constant 87 : index
      %114 = memref.load %arg3[%c87] : memref<98xf32, #tpu.memory_space<smem>>
      %c88 = arith.constant 88 : index
      %115 = memref.load %arg3[%c88] : memref<98xf32, #tpu.memory_space<smem>>
      %c89 = arith.constant 89 : index
      %116 = memref.load %arg3[%c89] : memref<98xf32, #tpu.memory_space<smem>>
      %c90 = arith.constant 90 : index
      %117 = memref.load %arg3[%c90] : memref<98xf32, #tpu.memory_space<smem>>
      %c91 = arith.constant 91 : index
      %118 = memref.load %arg3[%c91] : memref<98xf32, #tpu.memory_space<smem>>
      %c92 = arith.constant 92 : index
      %119 = memref.load %arg3[%c92] : memref<98xf32, #tpu.memory_space<smem>>
      %c93 = arith.constant 93 : index
      %120 = memref.load %arg3[%c93] : memref<98xf32, #tpu.memory_space<smem>>
      %c94 = arith.constant 94 : index
      %121 = memref.load %arg3[%c94] : memref<98xf32, #tpu.memory_space<smem>>
      %c95 = arith.constant 95 : index
      %122 = memref.load %arg3[%c95] : memref<98xf32, #tpu.memory_space<smem>>
      %c96 = arith.constant 96 : index
      %123 = memref.load %arg3[%c96] : memref<98xf32, #tpu.memory_space<smem>>
      %c97 = arith.constant 97 : index
      %124 = memref.load %arg3[%c97] : memref<98xf32, #tpu.memory_space<smem>>
      %125 = tpu.iota {dimensions = array<i32: 0>} : vector<2x1xi32>
      %126 = tpu.iota {dimensions = array<i32: 1>} : vector<2x256xi32>
      %c16_i32 = arith.constant 16 : i32
      %c0_i32_22 = arith.constant 0 : i32
      %127 = arith.cmpi eq, %c16_i32, %c0_i32_22 : i32
      %c1_i32 = arith.constant 1 : i32
      %128 = arith.select %127, %c1_i32, %c16_i32 : i32
      %129 = vector.broadcast %128 : i32 to vector<2x256xi32>
      %130 = arith.remsi %126, %129 : vector<2x256xi32>
      %c0_i32_23 = arith.constant 0 : i32
      %131 = vector.broadcast %c0_i32_23 : i32 to vector<2x256xi32>
      %132 = arith.cmpi ne, %130, %131 : vector<2x256xi32>
      %c0_i32_24 = arith.constant 0 : i32
      %133 = vector.broadcast %c0_i32_24 : i32 to vector<2x256xi32>
      %134 = arith.cmpi slt, %130, %133 : vector<2x256xi32>
      %c0_i32_25 = arith.constant 0 : i32
      %135 = arith.cmpi slt, %128, %c0_i32_25 : i32
      %136 = vector.broadcast %135 : i1 to vector<2x256xi1>
      %137 = vector.broadcast %136 : vector<2x256xi1> to vector<2x256xi1>
      %138 = arith.xori %134, %137 : vector<2x256xi1>
      %139 = arith.andi %138, %132 : vector<2x256xi1>
      %140 = vector.broadcast %128 : i32 to vector<2x256xi32>
      %141 = arith.addi %130, %140 : vector<2x256xi32>
      %142 = arith.select %139, %141, %130 : vector<2x256xi1>, vector<2x256xi32>
      %cst_26 = arith.constant 0.000000e+00 : f32
      %143 = vector.broadcast %cst_26 : f32 to vector<2x256xf32>
      %c-48_i32 = arith.constant -48 : i32
      %144 = vector.broadcast %c-48_i32 : i32 to vector<2x256xi32>
      %145 = arith.addi %126, %144 : vector<2x256xi32>
      %c0_i32_27 = arith.constant 0 : i32
      %146 = vector.broadcast %c0_i32_27 : i32 to vector<2x256xi32>
      %147 = arith.cmpi sge, %145, %146 : vector<2x256xi32>
      %c256_i32 = arith.constant 256 : i32
      %148 = vector.broadcast %c256_i32 : i32 to vector<2x256xi32>
      %149 = arith.cmpi slt, %145, %148 : vector<2x256xi32>
      %150 = arith.andi %147, %149 : vector<2x256xi1>
      %c51_i32 = arith.constant 51 : i32
      %151 = tpu.dynamic_rotate %26 by %c51_i32 dim 1 : vector<2x256xf32>, i32 -> vector<2x256xf32>
      %c-3_i32 = arith.constant -3 : i32
      %152 = vector.broadcast %c-3_i32 : i32 to vector<2x256xi32>
      %153 = arith.addi %142, %152 : vector<2x256xi32>
      %c0_i32_28 = arith.constant 0 : i32
      %154 = vector.broadcast %c0_i32_28 : i32 to vector<2x256xi32>
      %155 = arith.cmpi sge, %153, %154 : vector<2x256xi32>
      %c-3_i32_29 = arith.constant -3 : i32
      %156 = vector.broadcast %c-3_i32_29 : i32 to vector<2x256xi32>
      %157 = arith.addi %142, %156 : vector<2x256xi32>
      %c16_i32_30 = arith.constant 16 : i32
      %158 = vector.broadcast %c16_i32_30 : i32 to vector<2x256xi32>
      %159 = arith.cmpi slt, %157, %158 : vector<2x256xi32>
      %160 = arith.andi %155, %159 : vector<2x256xi1>
      %161 = arith.andi %150, %160 : vector<2x256xi1>
      %cst_31 = arith.constant 0.000000e+00 : f32
      %162 = vector.broadcast %cst_31 : f32 to vector<2x256xf32>
      %163 = arith.select %161, %151, %162 : vector<2x256xi1>, vector<2x256xf32>
      %c0_i32_32 = arith.constant 0 : i32
      %164 = vector.broadcast %c0_i32_32 : i32 to vector<2x1xi32>
      %165 = arith.cmpi eq, %125, %164 : vector<2x1xi32>
      %166 = vector.broadcast %27 : f32 to vector<2x1xf32>
      %167 = vector.broadcast %76 : f32 to vector<2x1xf32>
      %168 = arith.select %165, %166, %167 : vector<2x1xi1>, vector<2x1xf32>
      %169 = vector.broadcast %168 : vector<2x1xf32> to vector<2x256xf32>
      %170 = arith.mulf %163, %169 : vector<2x256xf32>
      %171 = arith.addf %143, %170 : vector<2x256xf32>
      %c50_i32 = arith.constant 50 : i32
      %172 = tpu.dynamic_rotate %26 by %c50_i32 dim 1 : vector<2x256xf32>, i32 -> vector<2x256xf32>
      %c-2_i32 = arith.constant -2 : i32
      %173 = vector.broadcast %c-2_i32 : i32 to vector<2x256xi32>
      %174 = arith.addi %142, %173 : vector<2x256xi32>
      %c0_i32_33 = arith.constant 0 : i32
      %175 = vector.broadcast %c0_i32_33 : i32 to vector<2x256xi32>
      %176 = arith.cmpi sge, %174, %175 : vector<2x256xi32>
      %c-2_i32_34 = arith.constant -2 : i32
      %177 = vector.broadcast %c-2_i32_34 : i32 to vector<2x256xi32>
      %178 = arith.addi %142, %177 : vector<2x256xi32>
      %c16_i32_35 = arith.constant 16 : i32
      %179 = vector.broadcast %c16_i32_35 : i32 to vector<2x256xi32>
      %180 = arith.cmpi slt, %178, %179 : vector<2x256xi32>
      %181 = arith.andi %176, %180 : vector<2x256xi1>
      %182 = arith.andi %150, %181 : vector<2x256xi1>
      %cst_36 = arith.constant 0.000000e+00 : f32
      %183 = vector.broadcast %cst_36 : f32 to vector<2x256xf32>
      %184 = arith.select %182, %172, %183 : vector<2x256xi1>, vector<2x256xf32>
      %c0_i32_37 = arith.constant 0 : i32
      %185 = vector.broadcast %c0_i32_37 : i32 to vector<2x1xi32>
      %186 = arith.cmpi eq, %125, %185 : vector<2x1xi32>
      %187 = vector.broadcast %28 : f32 to vector<2x1xf32>
      %188 = vector.broadcast %77 : f32 to vector<2x1xf32>
      %189 = arith.select %186, %187, %188 : vector<2x1xi1>, vector<2x1xf32>
      %190 = vector.broadcast %189 : vector<2x1xf32> to vector<2x256xf32>
      %191 = arith.mulf %184, %190 : vector<2x256xf32>
      %192 = arith.addf %171, %191 : vector<2x256xf32>
      %c49_i32 = arith.constant 49 : i32
      %193 = tpu.dynamic_rotate %26 by %c49_i32 dim 1 : vector<2x256xf32>, i32 -> vector<2x256xf32>
      %c-1_i32 = arith.constant -1 : i32
      %194 = vector.broadcast %c-1_i32 : i32 to vector<2x256xi32>
      %195 = arith.addi %142, %194 : vector<2x256xi32>
      %c0_i32_38 = arith.constant 0 : i32
      %196 = vector.broadcast %c0_i32_38 : i32 to vector<2x256xi32>
      %197 = arith.cmpi sge, %195, %196 : vector<2x256xi32>
      %c-1_i32_39 = arith.constant -1 : i32
      %198 = vector.broadcast %c-1_i32_39 : i32 to vector<2x256xi32>
      %199 = arith.addi %142, %198 : vector<2x256xi32>
      %c16_i32_40 = arith.constant 16 : i32
      %200 = vector.broadcast %c16_i32_40 : i32 to vector<2x256xi32>
      %201 = arith.cmpi slt, %199, %200 : vector<2x256xi32>
      %202 = arith.andi %197, %201 : vector<2x256xi1>
      %203 = arith.andi %150, %202 : vector<2x256xi1>
      %cst_41 = arith.constant 0.000000e+00 : f32
      %204 = vector.broadcast %cst_41 : f32 to vector<2x256xf32>
      %205 = arith.select %203, %193, %204 : vector<2x256xi1>, vector<2x256xf32>
      %c0_i32_42 = arith.constant 0 : i32
      %206 = vector.broadcast %c0_i32_42 : i32 to vector<2x1xi32>
      %207 = arith.cmpi eq, %125, %206 : vector<2x1xi32>
      %208 = vector.broadcast %29 : f32 to vector<2x1xf32>
      %209 = vector.broadcast %78 : f32 to vector<2x1xf32>
      %210 = arith.select %207, %208, %209 : vector<2x1xi1>, vector<2x1xf32>
      %211 = vector.broadcast %210 : vector<2x1xf32> to vector<2x256xf32>
      %212 = arith.mulf %205, %211 : vector<2x256xf32>
      %213 = arith.addf %192, %212 : vector<2x256xf32>
      %c48_i32 = arith.constant 48 : i32
      %214 = tpu.dynamic_rotate %26 by %c48_i32 dim 1 : vector<2x256xf32>, i32 -> vector<2x256xf32>
      %cst_43 = arith.constant 0.000000e+00 : f32
      %215 = vector.broadcast %cst_43 : f32 to vector<2x256xf32>
      %216 = arith.select %150, %214, %215 : vector<2x256xi1>, vector<2x256xf32>
      %c0_i32_44 = arith.constant 0 : i32
      %217 = vector.broadcast %c0_i32_44 : i32 to vector<2x1xi32>
      %218 = arith.cmpi eq, %125, %217 : vector<2x1xi32>
      %219 = vector.broadcast %30 : f32 to vector<2x1xf32>
      %220 = vector.broadcast %79 : f32 to vector<2x1xf32>
      %221 = arith.select %218, %219, %220 : vector<2x1xi1>, vector<2x1xf32>
      %222 = vector.broadcast %221 : vector<2x1xf32> to vector<2x256xf32>
      %223 = arith.mulf %216, %222 : vector<2x256xf32>
      %224 = arith.addf %213, %223 : vector<2x256xf32>
      %c47_i32 = arith.constant 47 : i32
      %225 = tpu.dynamic_rotate %26 by %c47_i32 dim 1 : vector<2x256xf32>, i32 -> vector<2x256xf32>
      %c1_i32_45 = arith.constant 1 : i32
      %226 = vector.broadcast %c1_i32_45 : i32 to vector<2x256xi32>
      %227 = arith.addi %142, %226 : vector<2x256xi32>
      %c0_i32_46 = arith.constant 0 : i32
      %228 = vector.broadcast %c0_i32_46 : i32 to vector<2x256xi32>
      %229 = arith.cmpi sge, %227, %228 : vector<2x256xi32>
      %c1_i32_47 = arith.constant 1 : i32
      %230 = vector.broadcast %c1_i32_47 : i32 to vector<2x256xi32>
      %231 = arith.addi %142, %230 : vector<2x256xi32>
      %c16_i32_48 = arith.constant 16 : i32
      %232 = vector.broadcast %c16_i32_48 : i32 to vector<2x256xi32>
      %233 = arith.cmpi slt, %231, %232 : vector<2x256xi32>
      %234 = arith.andi %229, %233 : vector<2x256xi1>
      %235 = arith.andi %150, %234 : vector<2x256xi1>
      %cst_49 = arith.constant 0.000000e+00 : f32
      %236 = vector.broadcast %cst_49 : f32 to vector<2x256xf32>
      %237 = arith.select %235, %225, %236 : vector<2x256xi1>, vector<2x256xf32>
      %c0_i32_50 = arith.constant 0 : i32
      %238 = vector.broadcast %c0_i32_50 : i32 to vector<2x1xi32>
      %239 = arith.cmpi eq, %125, %238 : vector<2x1xi32>
      %240 = vector.broadcast %31 : f32 to vector<2x1xf32>
      %241 = vector.broadcast %80 : f32 to vector<2x1xf32>
      %242 = arith.select %239, %240, %241 : vector<2x1xi1>, vector<2x1xf32>
      %243 = vector.broadcast %242 : vector<2x1xf32> to vector<2x256xf32>
      %244 = arith.mulf %237, %243 : vector<2x256xf32>
      %245 = arith.addf %224, %244 : vector<2x256xf32>
      %c46_i32 = arith.constant 46 : i32
      %246 = tpu.dynamic_rotate %26 by %c46_i32 dim 1 : vector<2x256xf32>, i32 -> vector<2x256xf32>
      %c2_i32 = arith.constant 2 : i32
      %247 = vector.broadcast %c2_i32 : i32 to vector<2x256xi32>
      %248 = arith.addi %142, %247 : vector<2x256xi32>
      %c0_i32_51 = arith.constant 0 : i32
      %249 = vector.broadcast %c0_i32_51 : i32 to vector<2x256xi32>
      %250 = arith.cmpi sge, %248, %249 : vector<2x256xi32>
      %c2_i32_52 = arith.constant 2 : i32
      %251 = vector.broadcast %c2_i32_52 : i32 to vector<2x256xi32>
      %252 = arith.addi %142, %251 : vector<2x256xi32>
      %c16_i32_53 = arith.constant 16 : i32
      %253 = vector.broadcast %c16_i32_53 : i32 to vector<2x256xi32>
      %254 = arith.cmpi slt, %252, %253 : vector<2x256xi32>
      %255 = arith.andi %250, %254 : vector<2x256xi1>
      %256 = arith.andi %150, %255 : vector<2x256xi1>
      %cst_54 = arith.constant 0.000000e+00 : f32
      %257 = vector.broadcast %cst_54 : f32 to vector<2x256xf32>
      %258 = arith.select %256, %246, %257 : vector<2x256xi1>, vector<2x256xf32>
      %c0_i32_55 = arith.constant 0 : i32
      %259 = vector.broadcast %c0_i32_55 : i32 to vector<2x1xi32>
      %260 = arith.cmpi eq, %125, %259 : vector<2x1xi32>
      %261 = vector.broadcast %32 : f32 to vector<2x1xf32>
      %262 = vector.broadcast %81 : f32 to vector<2x1xf32>
      %263 = arith.select %260, %261, %262 : vector<2x1xi1>, vector<2x1xf32>
      %264 = vector.broadcast %263 : vector<2x1xf32> to vector<2x256xf32>
      %265 = arith.mulf %258, %264 : vector<2x256xf32>
      %266 = arith.addf %245, %265 : vector<2x256xf32>
      %c45_i32 = arith.constant 45 : i32
      %267 = tpu.dynamic_rotate %26 by %c45_i32 dim 1 : vector<2x256xf32>, i32 -> vector<2x256xf32>
      %c3_i32 = arith.constant 3 : i32
      %268 = vector.broadcast %c3_i32 : i32 to vector<2x256xi32>
      %269 = arith.addi %142, %268 : vector<2x256xi32>
      %c0_i32_56 = arith.constant 0 : i32
      %270 = vector.broadcast %c0_i32_56 : i32 to vector<2x256xi32>
      %271 = arith.cmpi sge, %269, %270 : vector<2x256xi32>
      %c3_i32_57 = arith.constant 3 : i32
      %272 = vector.broadcast %c3_i32_57 : i32 to vector<2x256xi32>
      %273 = arith.addi %142, %272 : vector<2x256xi32>
      %c16_i32_58 = arith.constant 16 : i32
      %274 = vector.broadcast %c16_i32_58 : i32 to vector<2x256xi32>
      %275 = arith.cmpi slt, %273, %274 : vector<2x256xi32>
      %276 = arith.andi %271, %275 : vector<2x256xi1>
      %277 = arith.andi %150, %276 : vector<2x256xi1>
      %cst_59 = arith.constant 0.000000e+00 : f32
      %278 = vector.broadcast %cst_59 : f32 to vector<2x256xf32>
      %279 = arith.select %277, %267, %278 : vector<2x256xi1>, vector<2x256xf32>
      %c0_i32_60 = arith.constant 0 : i32
      %280 = vector.broadcast %c0_i32_60 : i32 to vector<2x1xi32>
      %281 = arith.cmpi eq, %125, %280 : vector<2x1xi32>
      %282 = vector.broadcast %33 : f32 to vector<2x1xf32>
      %283 = vector.broadcast %82 : f32 to vector<2x1xf32>
      %284 = arith.select %281, %282, %283 : vector<2x1xi1>, vector<2x1xf32>
      %285 = vector.broadcast %284 : vector<2x1xf32> to vector<2x256xf32>
      %286 = arith.mulf %279, %285 : vector<2x256xf32>
      %287 = arith.addf %266, %286 : vector<2x256xf32>
      %c-32_i32 = arith.constant -32 : i32
      %288 = vector.broadcast %c-32_i32 : i32 to vector<2x256xi32>
      %289 = arith.addi %126, %288 : vector<2x256xi32>
      %c0_i32_61 = arith.constant 0 : i32
      %290 = vector.broadcast %c0_i32_61 : i32 to vector<2x256xi32>
      %291 = arith.cmpi sge, %289, %290 : vector<2x256xi32>
      %c256_i32_62 = arith.constant 256 : i32
      %292 = vector.broadcast %c256_i32_62 : i32 to vector<2x256xi32>
      %293 = arith.cmpi slt, %289, %292 : vector<2x256xi32>
      %294 = arith.andi %291, %293 : vector<2x256xi1>
      %c35_i32 = arith.constant 35 : i32
      %295 = tpu.dynamic_rotate %26 by %c35_i32 dim 1 : vector<2x256xf32>, i32 -> vector<2x256xf32>
      %c-3_i32_63 = arith.constant -3 : i32
      %296 = vector.broadcast %c-3_i32_63 : i32 to vector<2x256xi32>
      %297 = arith.addi %142, %296 : vector<2x256xi32>
      %c0_i32_64 = arith.constant 0 : i32
      %298 = vector.broadcast %c0_i32_64 : i32 to vector<2x256xi32>
      %299 = arith.cmpi sge, %297, %298 : vector<2x256xi32>
      %c-3_i32_65 = arith.constant -3 : i32
      %300 = vector.broadcast %c-3_i32_65 : i32 to vector<2x256xi32>
      %301 = arith.addi %142, %300 : vector<2x256xi32>
      %c16_i32_66 = arith.constant 16 : i32
      %302 = vector.broadcast %c16_i32_66 : i32 to vector<2x256xi32>
      %303 = arith.cmpi slt, %301, %302 : vector<2x256xi32>
      %304 = arith.andi %299, %303 : vector<2x256xi1>
      %305 = arith.andi %294, %304 : vector<2x256xi1>
      %cst_67 = arith.constant 0.000000e+00 : f32
      %306 = vector.broadcast %cst_67 : f32 to vector<2x256xf32>
      %307 = arith.select %305, %295, %306 : vector<2x256xi1>, vector<2x256xf32>
      %c0_i32_68 = arith.constant 0 : i32
      %308 = vector.broadcast %c0_i32_68 : i32 to vector<2x1xi32>
      %309 = arith.cmpi eq, %125, %308 : vector<2x1xi32>
      %310 = vector.broadcast %34 : f32 to vector<2x1xf32>
      %311 = vector.broadcast %83 : f32 to vector<2x1xf32>
      %312 = arith.select %309, %310, %311 : vector<2x1xi1>, vector<2x1xf32>
      %313 = vector.broadcast %312 : vector<2x1xf32> to vector<2x256xf32>
      %314 = arith.mulf %307, %313 : vector<2x256xf32>
      %315 = arith.addf %287, %314 : vector<2x256xf32>
      %c34_i32 = arith.constant 34 : i32
      %316 = tpu.dynamic_rotate %26 by %c34_i32 dim 1 : vector<2x256xf32>, i32 -> vector<2x256xf32>
      %c-2_i32_69 = arith.constant -2 : i32
      %317 = vector.broadcast %c-2_i32_69 : i32 to vector<2x256xi32>
      %318 = arith.addi %142, %317 : vector<2x256xi32>
      %c0_i32_70 = arith.constant 0 : i32
      %319 = vector.broadcast %c0_i32_70 : i32 to vector<2x256xi32>
      %320 = arith.cmpi sge, %318, %319 : vector<2x256xi32>
      %c-2_i32_71 = arith.constant -2 : i32
      %321 = vector.broadcast %c-2_i32_71 : i32 to vector<2x256xi32>
      %322 = arith.addi %142, %321 : vector<2x256xi32>
      %c16_i32_72 = arith.constant 16 : i32
      %323 = vector.broadcast %c16_i32_72 : i32 to vector<2x256xi32>
      %324 = arith.cmpi slt, %322, %323 : vector<2x256xi32>
      %325 = arith.andi %320, %324 : vector<2x256xi1>
      %326 = arith.andi %294, %325 : vector<2x256xi1>
      %cst_73 = arith.constant 0.000000e+00 : f32
      %327 = vector.broadcast %cst_73 : f32 to vector<2x256xf32>
      %328 = arith.select %326, %316, %327 : vector<2x256xi1>, vector<2x256xf32>
      %c0_i32_74 = arith.constant 0 : i32
      %329 = vector.broadcast %c0_i32_74 : i32 to vector<2x1xi32>
      %330 = arith.cmpi eq, %125, %329 : vector<2x1xi32>
      %331 = vector.broadcast %35 : f32 to vector<2x1xf32>
      %332 = vector.broadcast %84 : f32 to vector<2x1xf32>
      %333 = arith.select %330, %331, %332 : vector<2x1xi1>, vector<2x1xf32>
      %334 = vector.broadcast %333 : vector<2x1xf32> to vector<2x256xf32>
      %335 = arith.mulf %328, %334 : vector<2x256xf32>
      %336 = arith.addf %315, %335 : vector<2x256xf32>
      %c33_i32 = arith.constant 33 : i32
      %337 = tpu.dynamic_rotate %26 by %c33_i32 dim 1 : vector<2x256xf32>, i32 -> vector<2x256xf32>
      %c-1_i32_75 = arith.constant -1 : i32
      %338 = vector.broadcast %c-1_i32_75 : i32 to vector<2x256xi32>
      %339 = arith.addi %142, %338 : vector<2x256xi32>
      %c0_i32_76 = arith.constant 0 : i32
      %340 = vector.broadcast %c0_i32_76 : i32 to vector<2x256xi32>
      %341 = arith.cmpi sge, %339, %340 : vector<2x256xi32>
      %c-1_i32_77 = arith.constant -1 : i32
      %342 = vector.broadcast %c-1_i32_77 : i32 to vector<2x256xi32>
      %343 = arith.addi %142, %342 : vector<2x256xi32>
      %c16_i32_78 = arith.constant 16 : i32
      %344 = vector.broadcast %c16_i32_78 : i32 to vector<2x256xi32>
      %345 = arith.cmpi slt, %343, %344 : vector<2x256xi32>
      %346 = arith.andi %341, %345 : vector<2x256xi1>
      %347 = arith.andi %294, %346 : vector<2x256xi1>
      %cst_79 = arith.constant 0.000000e+00 : f32
      %348 = vector.broadcast %cst_79 : f32 to vector<2x256xf32>
      %349 = arith.select %347, %337, %348 : vector<2x256xi1>, vector<2x256xf32>
      %c0_i32_80 = arith.constant 0 : i32
      %350 = vector.broadcast %c0_i32_80 : i32 to vector<2x1xi32>
      %351 = arith.cmpi eq, %125, %350 : vector<2x1xi32>
      %352 = vector.broadcast %36 : f32 to vector<2x1xf32>
      %353 = vector.broadcast %85 : f32 to vector<2x1xf32>
      %354 = arith.select %351, %352, %353 : vector<2x1xi1>, vector<2x1xf32>
      %355 = vector.broadcast %354 : vector<2x1xf32> to vector<2x256xf32>
      %356 = arith.mulf %349, %355 : vector<2x256xf32>
      %357 = arith.addf %336, %356 : vector<2x256xf32>
      %c32_i32 = arith.constant 32 : i32
      %358 = tpu.dynamic_rotate %26 by %c32_i32 dim 1 : vector<2x256xf32>, i32 -> vector<2x256xf32>
      %cst_81 = arith.constant 0.000000e+00 : f32
      %359 = vector.broadcast %cst_81 : f32 to vector<2x256xf32>
      %360 = arith.select %294, %358, %359 : vector<2x256xi1>, vector<2x256xf32>
      %c0_i32_82 = arith.constant 0 : i32
      %361 = vector.broadcast %c0_i32_82 : i32 to vector<2x1xi32>
      %362 = arith.cmpi eq, %125, %361 : vector<2x1xi32>
      %363 = vector.broadcast %37 : f32 to vector<2x1xf32>
      %364 = vector.broadcast %86 : f32 to vector<2x1xf32>
      %365 = arith.select %362, %363, %364 : vector<2x1xi1>, vector<2x1xf32>
      %366 = vector.broadcast %365 : vector<2x1xf32> to vector<2x256xf32>
      %367 = arith.mulf %360, %366 : vector<2x256xf32>
      %368 = arith.addf %357, %367 : vector<2x256xf32>
      %c31_i32 = arith.constant 31 : i32
      %369 = tpu.dynamic_rotate %26 by %c31_i32 dim 1 : vector<2x256xf32>, i32 -> vector<2x256xf32>
      %c1_i32_83 = arith.constant 1 : i32
      %370 = vector.broadcast %c1_i32_83 : i32 to vector<2x256xi32>
      %371 = arith.addi %142, %370 : vector<2x256xi32>
      %c0_i32_84 = arith.constant 0 : i32
      %372 = vector.broadcast %c0_i32_84 : i32 to vector<2x256xi32>
      %373 = arith.cmpi sge, %371, %372 : vector<2x256xi32>
      %c1_i32_85 = arith.constant 1 : i32
      %374 = vector.broadcast %c1_i32_85 : i32 to vector<2x256xi32>
      %375 = arith.addi %142, %374 : vector<2x256xi32>
      %c16_i32_86 = arith.constant 16 : i32
      %376 = vector.broadcast %c16_i32_86 : i32 to vector<2x256xi32>
      %377 = arith.cmpi slt, %375, %376 : vector<2x256xi32>
      %378 = arith.andi %373, %377 : vector<2x256xi1>
      %379 = arith.andi %294, %378 : vector<2x256xi1>
      %cst_87 = arith.constant 0.000000e+00 : f32
      %380 = vector.broadcast %cst_87 : f32 to vector<2x256xf32>
      %381 = arith.select %379, %369, %380 : vector<2x256xi1>, vector<2x256xf32>
      %c0_i32_88 = arith.constant 0 : i32
      %382 = vector.broadcast %c0_i32_88 : i32 to vector<2x1xi32>
      %383 = arith.cmpi eq, %125, %382 : vector<2x1xi32>
      %384 = vector.broadcast %38 : f32 to vector<2x1xf32>
      %385 = vector.broadcast %87 : f32 to vector<2x1xf32>
      %386 = arith.select %383, %384, %385 : vector<2x1xi1>, vector<2x1xf32>
      %387 = vector.broadcast %386 : vector<2x1xf32> to vector<2x256xf32>
      %388 = arith.mulf %381, %387 : vector<2x256xf32>
      %389 = arith.addf %368, %388 : vector<2x256xf32>
      %c30_i32 = arith.constant 30 : i32
      %390 = tpu.dynamic_rotate %26 by %c30_i32 dim 1 : vector<2x256xf32>, i32 -> vector<2x256xf32>
      %c2_i32_89 = arith.constant 2 : i32
      %391 = vector.broadcast %c2_i32_89 : i32 to vector<2x256xi32>
      %392 = arith.addi %142, %391 : vector<2x256xi32>
      %c0_i32_90 = arith.constant 0 : i32
      %393 = vector.broadcast %c0_i32_90 : i32 to vector<2x256xi32>
      %394 = arith.cmpi sge, %392, %393 : vector<2x256xi32>
      %c2_i32_91 = arith.constant 2 : i32
      %395 = vector.broadcast %c2_i32_91 : i32 to vector<2x256xi32>
      %396 = arith.addi %142, %395 : vector<2x256xi32>
      %c16_i32_92 = arith.constant 16 : i32
      %397 = vector.broadcast %c16_i32_92 : i32 to vector<2x256xi32>
      %398 = arith.cmpi slt, %396, %397 : vector<2x256xi32>
      %399 = arith.andi %394, %398 : vector<2x256xi1>
      %400 = arith.andi %294, %399 : vector<2x256xi1>
      %cst_93 = arith.constant 0.000000e+00 : f32
      %401 = vector.broadcast %cst_93 : f32 to vector<2x256xf32>
      %402 = arith.select %400, %390, %401 : vector<2x256xi1>, vector<2x256xf32>
      %c0_i32_94 = arith.constant 0 : i32
      %403 = vector.broadcast %c0_i32_94 : i32 to vector<2x1xi32>
      %404 = arith.cmpi eq, %125, %403 : vector<2x1xi32>
      %405 = vector.broadcast %39 : f32 to vector<2x1xf32>
      %406 = vector.broadcast %88 : f32 to vector<2x1xf32>
      %407 = arith.select %404, %405, %406 : vector<2x1xi1>, vector<2x1xf32>
      %408 = vector.broadcast %407 : vector<2x1xf32> to vector<2x256xf32>
      %409 = arith.mulf %402, %408 : vector<2x256xf32>
      %410 = arith.addf %389, %409 : vector<2x256xf32>
      %c29_i32 = arith.constant 29 : i32
      %411 = tpu.dynamic_rotate %26 by %c29_i32 dim 1 : vector<2x256xf32>, i32 -> vector<2x256xf32>
      %c3_i32_95 = arith.constant 3 : i32
      %412 = vector.broadcast %c3_i32_95 : i32 to vector<2x256xi32>
      %413 = arith.addi %142, %412 : vector<2x256xi32>
      %c0_i32_96 = arith.constant 0 : i32
      %414 = vector.broadcast %c0_i32_96 : i32 to vector<2x256xi32>
      %415 = arith.cmpi sge, %413, %414 : vector<2x256xi32>
      %c3_i32_97 = arith.constant 3 : i32
      %416 = vector.broadcast %c3_i32_97 : i32 to vector<2x256xi32>
      %417 = arith.addi %142, %416 : vector<2x256xi32>
      %c16_i32_98 = arith.constant 16 : i32
      %418 = vector.broadcast %c16_i32_98 : i32 to vector<2x256xi32>
      %419 = arith.cmpi slt, %417, %418 : vector<2x256xi32>
      %420 = arith.andi %415, %419 : vector<2x256xi1>
      %421 = arith.andi %294, %420 : vector<2x256xi1>
      %cst_99 = arith.constant 0.000000e+00 : f32
      %422 = vector.broadcast %cst_99 : f32 to vector<2x256xf32>
      %423 = arith.select %421, %411, %422 : vector<2x256xi1>, vector<2x256xf32>
      %c0_i32_100 = arith.constant 0 : i32
      %424 = vector.broadcast %c0_i32_100 : i32 to vector<2x1xi32>
      %425 = arith.cmpi eq, %125, %424 : vector<2x1xi32>
      %426 = vector.broadcast %40 : f32 to vector<2x1xf32>
      %427 = vector.broadcast %89 : f32 to vector<2x1xf32>
      %428 = arith.select %425, %426, %427 : vector<2x1xi1>, vector<2x1xf32>
      %429 = vector.broadcast %428 : vector<2x1xf32> to vector<2x256xf32>
      %430 = arith.mulf %423, %429 : vector<2x256xf32>
      %431 = arith.addf %410, %430 : vector<2x256xf32>
      %c-16_i32 = arith.constant -16 : i32
      %432 = vector.broadcast %c-16_i32 : i32 to vector<2x256xi32>
      %433 = arith.addi %126, %432 : vector<2x256xi32>
      %c0_i32_101 = arith.constant 0 : i32
      %434 = vector.broadcast %c0_i32_101 : i32 to vector<2x256xi32>
      %435 = arith.cmpi sge, %433, %434 : vector<2x256xi32>
      %c256_i32_102 = arith.constant 256 : i32
      %436 = vector.broadcast %c256_i32_102 : i32 to vector<2x256xi32>
      %437 = arith.cmpi slt, %433, %436 : vector<2x256xi32>
      %438 = arith.andi %435, %437 : vector<2x256xi1>
      %c19_i32 = arith.constant 19 : i32
      %439 = tpu.dynamic_rotate %26 by %c19_i32 dim 1 : vector<2x256xf32>, i32 -> vector<2x256xf32>
      %c-3_i32_103 = arith.constant -3 : i32
      %440 = vector.broadcast %c-3_i32_103 : i32 to vector<2x256xi32>
      %441 = arith.addi %142, %440 : vector<2x256xi32>
      %c0_i32_104 = arith.constant 0 : i32
      %442 = vector.broadcast %c0_i32_104 : i32 to vector<2x256xi32>
      %443 = arith.cmpi sge, %441, %442 : vector<2x256xi32>
      %c-3_i32_105 = arith.constant -3 : i32
      %444 = vector.broadcast %c-3_i32_105 : i32 to vector<2x256xi32>
      %445 = arith.addi %142, %444 : vector<2x256xi32>
      %c16_i32_106 = arith.constant 16 : i32
      %446 = vector.broadcast %c16_i32_106 : i32 to vector<2x256xi32>
      %447 = arith.cmpi slt, %445, %446 : vector<2x256xi32>
      %448 = arith.andi %443, %447 : vector<2x256xi1>
      %449 = arith.andi %438, %448 : vector<2x256xi1>
      %cst_107 = arith.constant 0.000000e+00 : f32
      %450 = vector.broadcast %cst_107 : f32 to vector<2x256xf32>
      %451 = arith.select %449, %439, %450 : vector<2x256xi1>, vector<2x256xf32>
      %c0_i32_108 = arith.constant 0 : i32
      %452 = vector.broadcast %c0_i32_108 : i32 to vector<2x1xi32>
      %453 = arith.cmpi eq, %125, %452 : vector<2x1xi32>
      %454 = vector.broadcast %41 : f32 to vector<2x1xf32>
      %455 = vector.broadcast %90 : f32 to vector<2x1xf32>
      %456 = arith.select %453, %454, %455 : vector<2x1xi1>, vector<2x1xf32>
      %457 = vector.broadcast %456 : vector<2x1xf32> to vector<2x256xf32>
      %458 = arith.mulf %451, %457 : vector<2x256xf32>
      %459 = arith.addf %431, %458 : vector<2x256xf32>
      %c18_i32 = arith.constant 18 : i32
      %460 = tpu.dynamic_rotate %26 by %c18_i32 dim 1 : vector<2x256xf32>, i32 -> vector<2x256xf32>
      %c-2_i32_109 = arith.constant -2 : i32
      %461 = vector.broadcast %c-2_i32_109 : i32 to vector<2x256xi32>
      %462 = arith.addi %142, %461 : vector<2x256xi32>
      %c0_i32_110 = arith.constant 0 : i32
      %463 = vector.broadcast %c0_i32_110 : i32 to vector<2x256xi32>
      %464 = arith.cmpi sge, %462, %463 : vector<2x256xi32>
      %c-2_i32_111 = arith.constant -2 : i32
      %465 = vector.broadcast %c-2_i32_111 : i32 to vector<2x256xi32>
      %466 = arith.addi %142, %465 : vector<2x256xi32>
      %c16_i32_112 = arith.constant 16 : i32
      %467 = vector.broadcast %c16_i32_112 : i32 to vector<2x256xi32>
      %468 = arith.cmpi slt, %466, %467 : vector<2x256xi32>
      %469 = arith.andi %464, %468 : vector<2x256xi1>
      %470 = arith.andi %438, %469 : vector<2x256xi1>
      %cst_113 = arith.constant 0.000000e+00 : f32
      %471 = vector.broadcast %cst_113 : f32 to vector<2x256xf32>
      %472 = arith.select %470, %460, %471 : vector<2x256xi1>, vector<2x256xf32>
      %c0_i32_114 = arith.constant 0 : i32
      %473 = vector.broadcast %c0_i32_114 : i32 to vector<2x1xi32>
      %474 = arith.cmpi eq, %125, %473 : vector<2x1xi32>
      %475 = vector.broadcast %42 : f32 to vector<2x1xf32>
      %476 = vector.broadcast %91 : f32 to vector<2x1xf32>
      %477 = arith.select %474, %475, %476 : vector<2x1xi1>, vector<2x1xf32>
      %478 = vector.broadcast %477 : vector<2x1xf32> to vector<2x256xf32>
      %479 = arith.mulf %472, %478 : vector<2x256xf32>
      %480 = arith.addf %459, %479 : vector<2x256xf32>
      %c17_i32 = arith.constant 17 : i32
      %481 = tpu.dynamic_rotate %26 by %c17_i32 dim 1 : vector<2x256xf32>, i32 -> vector<2x256xf32>
      %c-1_i32_115 = arith.constant -1 : i32
      %482 = vector.broadcast %c-1_i32_115 : i32 to vector<2x256xi32>
      %483 = arith.addi %142, %482 : vector<2x256xi32>
      %c0_i32_116 = arith.constant 0 : i32
      %484 = vector.broadcast %c0_i32_116 : i32 to vector<2x256xi32>
      %485 = arith.cmpi sge, %483, %484 : vector<2x256xi32>
      %c-1_i32_117 = arith.constant -1 : i32
      %486 = vector.broadcast %c-1_i32_117 : i32 to vector<2x256xi32>
      %487 = arith.addi %142, %486 : vector<2x256xi32>
      %c16_i32_118 = arith.constant 16 : i32
      %488 = vector.broadcast %c16_i32_118 : i32 to vector<2x256xi32>
      %489 = arith.cmpi slt, %487, %488 : vector<2x256xi32>
      %490 = arith.andi %485, %489 : vector<2x256xi1>
      %491 = arith.andi %438, %490 : vector<2x256xi1>
      %cst_119 = arith.constant 0.000000e+00 : f32
      %492 = vector.broadcast %cst_119 : f32 to vector<2x256xf32>
      %493 = arith.select %491, %481, %492 : vector<2x256xi1>, vector<2x256xf32>
      %c0_i32_120 = arith.constant 0 : i32
      %494 = vector.broadcast %c0_i32_120 : i32 to vector<2x1xi32>
      %495 = arith.cmpi eq, %125, %494 : vector<2x1xi32>
      %496 = vector.broadcast %43 : f32 to vector<2x1xf32>
      %497 = vector.broadcast %92 : f32 to vector<2x1xf32>
      %498 = arith.select %495, %496, %497 : vector<2x1xi1>, vector<2x1xf32>
      %499 = vector.broadcast %498 : vector<2x1xf32> to vector<2x256xf32>
      %500 = arith.mulf %493, %499 : vector<2x256xf32>
      %501 = arith.addf %480, %500 : vector<2x256xf32>
      %c16_i32_121 = arith.constant 16 : i32
      %502 = tpu.dynamic_rotate %26 by %c16_i32_121 dim 1 : vector<2x256xf32>, i32 -> vector<2x256xf32>
      %cst_122 = arith.constant 0.000000e+00 : f32
      %503 = vector.broadcast %cst_122 : f32 to vector<2x256xf32>
      %504 = arith.select %438, %502, %503 : vector<2x256xi1>, vector<2x256xf32>
      %c0_i32_123 = arith.constant 0 : i32
      %505 = vector.broadcast %c0_i32_123 : i32 to vector<2x1xi32>
      %506 = arith.cmpi eq, %125, %505 : vector<2x1xi32>
      %507 = vector.broadcast %44 : f32 to vector<2x1xf32>
      %508 = vector.broadcast %93 : f32 to vector<2x1xf32>
      %509 = arith.select %506, %507, %508 : vector<2x1xi1>, vector<2x1xf32>
      %510 = vector.broadcast %509 : vector<2x1xf32> to vector<2x256xf32>
      %511 = arith.mulf %504, %510 : vector<2x256xf32>
      %512 = arith.addf %501, %511 : vector<2x256xf32>
      %c15_i32 = arith.constant 15 : i32
      %513 = tpu.dynamic_rotate %26 by %c15_i32 dim 1 : vector<2x256xf32>, i32 -> vector<2x256xf32>
      %c1_i32_124 = arith.constant 1 : i32
      %514 = vector.broadcast %c1_i32_124 : i32 to vector<2x256xi32>
      %515 = arith.addi %142, %514 : vector<2x256xi32>
      %c0_i32_125 = arith.constant 0 : i32
      %516 = vector.broadcast %c0_i32_125 : i32 to vector<2x256xi32>
      %517 = arith.cmpi sge, %515, %516 : vector<2x256xi32>
      %c1_i32_126 = arith.constant 1 : i32
      %518 = vector.broadcast %c1_i32_126 : i32 to vector<2x256xi32>
      %519 = arith.addi %142, %518 : vector<2x256xi32>
      %c16_i32_127 = arith.constant 16 : i32
      %520 = vector.broadcast %c16_i32_127 : i32 to vector<2x256xi32>
      %521 = arith.cmpi slt, %519, %520 : vector<2x256xi32>
      %522 = arith.andi %517, %521 : vector<2x256xi1>
      %523 = arith.andi %438, %522 : vector<2x256xi1>
      %cst_128 = arith.constant 0.000000e+00 : f32
      %524 = vector.broadcast %cst_128 : f32 to vector<2x256xf32>
      %525 = arith.select %523, %513, %524 : vector<2x256xi1>, vector<2x256xf32>
      %c0_i32_129 = arith.constant 0 : i32
      %526 = vector.broadcast %c0_i32_129 : i32 to vector<2x1xi32>
      %527 = arith.cmpi eq, %125, %526 : vector<2x1xi32>
      %528 = vector.broadcast %45 : f32 to vector<2x1xf32>
      %529 = vector.broadcast %94 : f32 to vector<2x1xf32>
      %530 = arith.select %527, %528, %529 : vector<2x1xi1>, vector<2x1xf32>
      %531 = vector.broadcast %530 : vector<2x1xf32> to vector<2x256xf32>
      %532 = arith.mulf %525, %531 : vector<2x256xf32>
      %533 = arith.addf %512, %532 : vector<2x256xf32>
      %c14_i32 = arith.constant 14 : i32
      %534 = tpu.dynamic_rotate %26 by %c14_i32 dim 1 : vector<2x256xf32>, i32 -> vector<2x256xf32>
      %c2_i32_130 = arith.constant 2 : i32
      %535 = vector.broadcast %c2_i32_130 : i32 to vector<2x256xi32>
      %536 = arith.addi %142, %535 : vector<2x256xi32>
      %c0_i32_131 = arith.constant 0 : i32
      %537 = vector.broadcast %c0_i32_131 : i32 to vector<2x256xi32>
      %538 = arith.cmpi sge, %536, %537 : vector<2x256xi32>
      %c2_i32_132 = arith.constant 2 : i32
      %539 = vector.broadcast %c2_i32_132 : i32 to vector<2x256xi32>
      %540 = arith.addi %142, %539 : vector<2x256xi32>
      %c16_i32_133 = arith.constant 16 : i32
      %541 = vector.broadcast %c16_i32_133 : i32 to vector<2x256xi32>
      %542 = arith.cmpi slt, %540, %541 : vector<2x256xi32>
      %543 = arith.andi %538, %542 : vector<2x256xi1>
      %544 = arith.andi %438, %543 : vector<2x256xi1>
      %cst_134 = arith.constant 0.000000e+00 : f32
      %545 = vector.broadcast %cst_134 : f32 to vector<2x256xf32>
      %546 = arith.select %544, %534, %545 : vector<2x256xi1>, vector<2x256xf32>
      %c0_i32_135 = arith.constant 0 : i32
      %547 = vector.broadcast %c0_i32_135 : i32 to vector<2x1xi32>
      %548 = arith.cmpi eq, %125, %547 : vector<2x1xi32>
      %549 = vector.broadcast %46 : f32 to vector<2x1xf32>
      %550 = vector.broadcast %95 : f32 to vector<2x1xf32>
      %551 = arith.select %548, %549, %550 : vector<2x1xi1>, vector<2x1xf32>
      %552 = vector.broadcast %551 : vector<2x1xf32> to vector<2x256xf32>
      %553 = arith.mulf %546, %552 : vector<2x256xf32>
      %554 = arith.addf %533, %553 : vector<2x256xf32>
      %c13_i32 = arith.constant 13 : i32
      %555 = tpu.dynamic_rotate %26 by %c13_i32 dim 1 : vector<2x256xf32>, i32 -> vector<2x256xf32>
      %c3_i32_136 = arith.constant 3 : i32
      %556 = vector.broadcast %c3_i32_136 : i32 to vector<2x256xi32>
      %557 = arith.addi %142, %556 : vector<2x256xi32>
      %c0_i32_137 = arith.constant 0 : i32
      %558 = vector.broadcast %c0_i32_137 : i32 to vector<2x256xi32>
      %559 = arith.cmpi sge, %557, %558 : vector<2x256xi32>
      %c3_i32_138 = arith.constant 3 : i32
      %560 = vector.broadcast %c3_i32_138 : i32 to vector<2x256xi32>
      %561 = arith.addi %142, %560 : vector<2x256xi32>
      %c16_i32_139 = arith.constant 16 : i32
      %562 = vector.broadcast %c16_i32_139 : i32 to vector<2x256xi32>
      %563 = arith.cmpi slt, %561, %562 : vector<2x256xi32>
      %564 = arith.andi %559, %563 : vector<2x256xi1>
      %565 = arith.andi %438, %564 : vector<2x256xi1>
      %cst_140 = arith.constant 0.000000e+00 : f32
      %566 = vector.broadcast %cst_140 : f32 to vector<2x256xf32>
      %567 = arith.select %565, %555, %566 : vector<2x256xi1>, vector<2x256xf32>
      %c0_i32_141 = arith.constant 0 : i32
      %568 = vector.broadcast %c0_i32_141 : i32 to vector<2x1xi32>
      %569 = arith.cmpi eq, %125, %568 : vector<2x1xi32>
      %570 = vector.broadcast %47 : f32 to vector<2x1xf32>
      %571 = vector.broadcast %96 : f32 to vector<2x1xf32>
      %572 = arith.select %569, %570, %571 : vector<2x1xi1>, vector<2x1xf32>
      %573 = vector.broadcast %572 : vector<2x1xf32> to vector<2x256xf32>
      %574 = arith.mulf %567, %573 : vector<2x256xf32>
      %575 = arith.addf %554, %574 : vector<2x256xf32>
      %c3_i32_142 = arith.constant 3 : i32
      %576 = tpu.dynamic_rotate %26 by %c3_i32_142 dim 1 : vector<2x256xf32>, i32 -> vector<2x256xf32>
      %c-3_i32_143 = arith.constant -3 : i32
      %577 = vector.broadcast %c-3_i32_143 : i32 to vector<2x256xi32>
      %578 = arith.addi %142, %577 : vector<2x256xi32>
      %c0_i32_144 = arith.constant 0 : i32
      %579 = vector.broadcast %c0_i32_144 : i32 to vector<2x256xi32>
      %580 = arith.cmpi sge, %578, %579 : vector<2x256xi32>
      %c-3_i32_145 = arith.constant -3 : i32
      %581 = vector.broadcast %c-3_i32_145 : i32 to vector<2x256xi32>
      %582 = arith.addi %142, %581 : vector<2x256xi32>
      %c16_i32_146 = arith.constant 16 : i32
      %583 = vector.broadcast %c16_i32_146 : i32 to vector<2x256xi32>
      %584 = arith.cmpi slt, %582, %583 : vector<2x256xi32>
      %585 = arith.andi %580, %584 : vector<2x256xi1>
      %cst_147 = arith.constant 0.000000e+00 : f32
      %586 = vector.broadcast %cst_147 : f32 to vector<2x256xf32>
      %587 = arith.select %585, %576, %586 : vector<2x256xi1>, vector<2x256xf32>
      %c0_i32_148 = arith.constant 0 : i32
      %588 = vector.broadcast %c0_i32_148 : i32 to vector<2x1xi32>
      %589 = arith.cmpi eq, %125, %588 : vector<2x1xi32>
      %590 = vector.broadcast %48 : f32 to vector<2x1xf32>
      %591 = vector.broadcast %97 : f32 to vector<2x1xf32>
      %592 = arith.select %589, %590, %591 : vector<2x1xi1>, vector<2x1xf32>
      %593 = vector.broadcast %592 : vector<2x1xf32> to vector<2x256xf32>
      %594 = arith.mulf %587, %593 : vector<2x256xf32>
      %595 = arith.addf %575, %594 : vector<2x256xf32>
      %c2_i32_149 = arith.constant 2 : i32
      %596 = tpu.dynamic_rotate %26 by %c2_i32_149 dim 1 : vector<2x256xf32>, i32 -> vector<2x256xf32>
      %c-2_i32_150 = arith.constant -2 : i32
      %597 = vector.broadcast %c-2_i32_150 : i32 to vector<2x256xi32>
      %598 = arith.addi %142, %597 : vector<2x256xi32>
      %c0_i32_151 = arith.constant 0 : i32
      %599 = vector.broadcast %c0_i32_151 : i32 to vector<2x256xi32>
      %600 = arith.cmpi sge, %598, %599 : vector<2x256xi32>
      %c-2_i32_152 = arith.constant -2 : i32
      %601 = vector.broadcast %c-2_i32_152 : i32 to vector<2x256xi32>
      %602 = arith.addi %142, %601 : vector<2x256xi32>
      %c16_i32_153 = arith.constant 16 : i32
      %603 = vector.broadcast %c16_i32_153 : i32 to vector<2x256xi32>
      %604 = arith.cmpi slt, %602, %603 : vector<2x256xi32>
      %605 = arith.andi %600, %604 : vector<2x256xi1>
      %cst_154 = arith.constant 0.000000e+00 : f32
      %606 = vector.broadcast %cst_154 : f32 to vector<2x256xf32>
      %607 = arith.select %605, %596, %606 : vector<2x256xi1>, vector<2x256xf32>
      %c0_i32_155 = arith.constant 0 : i32
      %608 = vector.broadcast %c0_i32_155 : i32 to vector<2x1xi32>
      %609 = arith.cmpi eq, %125, %608 : vector<2x1xi32>
      %610 = vector.broadcast %49 : f32 to vector<2x1xf32>
      %611 = vector.broadcast %98 : f32 to vector<2x1xf32>
      %612 = arith.select %609, %610, %611 : vector<2x1xi1>, vector<2x1xf32>
      %613 = vector.broadcast %612 : vector<2x1xf32> to vector<2x256xf32>
      %614 = arith.mulf %607, %613 : vector<2x256xf32>
      %615 = arith.addf %595, %614 : vector<2x256xf32>
      %c1_i32_156 = arith.constant 1 : i32
      %616 = tpu.dynamic_rotate %26 by %c1_i32_156 dim 1 : vector<2x256xf32>, i32 -> vector<2x256xf32>
      %c-1_i32_157 = arith.constant -1 : i32
      %617 = vector.broadcast %c-1_i32_157 : i32 to vector<2x256xi32>
      %618 = arith.addi %142, %617 : vector<2x256xi32>
      %c0_i32_158 = arith.constant 0 : i32
      %619 = vector.broadcast %c0_i32_158 : i32 to vector<2x256xi32>
      %620 = arith.cmpi sge, %618, %619 : vector<2x256xi32>
      %c-1_i32_159 = arith.constant -1 : i32
      %621 = vector.broadcast %c-1_i32_159 : i32 to vector<2x256xi32>
      %622 = arith.addi %142, %621 : vector<2x256xi32>
      %c16_i32_160 = arith.constant 16 : i32
      %623 = vector.broadcast %c16_i32_160 : i32 to vector<2x256xi32>
      %624 = arith.cmpi slt, %622, %623 : vector<2x256xi32>
      %625 = arith.andi %620, %624 : vector<2x256xi1>
      %cst_161 = arith.constant 0.000000e+00 : f32
      %626 = vector.broadcast %cst_161 : f32 to vector<2x256xf32>
      %627 = arith.select %625, %616, %626 : vector<2x256xi1>, vector<2x256xf32>
      %c0_i32_162 = arith.constant 0 : i32
      %628 = vector.broadcast %c0_i32_162 : i32 to vector<2x1xi32>
      %629 = arith.cmpi eq, %125, %628 : vector<2x1xi32>
      %630 = vector.broadcast %50 : f32 to vector<2x1xf32>
      %631 = vector.broadcast %99 : f32 to vector<2x1xf32>
      %632 = arith.select %629, %630, %631 : vector<2x1xi1>, vector<2x1xf32>
      %633 = vector.broadcast %632 : vector<2x1xf32> to vector<2x256xf32>
      %634 = arith.mulf %627, %633 : vector<2x256xf32>
      %635 = arith.addf %615, %634 : vector<2x256xf32>
      %c0_i32_163 = arith.constant 0 : i32
      %636 = vector.broadcast %c0_i32_163 : i32 to vector<2x1xi32>
      %637 = arith.cmpi eq, %125, %636 : vector<2x1xi32>
      %638 = vector.broadcast %51 : f32 to vector<2x1xf32>
      %639 = vector.broadcast %100 : f32 to vector<2x1xf32>
      %640 = arith.select %637, %638, %639 : vector<2x1xi1>, vector<2x1xf32>
      %641 = vector.broadcast %640 : vector<2x1xf32> to vector<2x256xf32>
      %642 = arith.mulf %26, %641 : vector<2x256xf32>
      %643 = arith.addf %635, %642 : vector<2x256xf32>
      %c255_i32 = arith.constant 255 : i32
      %644 = tpu.dynamic_rotate %26 by %c255_i32 dim 1 : vector<2x256xf32>, i32 -> vector<2x256xf32>
      %c1_i32_164 = arith.constant 1 : i32
      %645 = vector.broadcast %c1_i32_164 : i32 to vector<2x256xi32>
      %646 = arith.addi %142, %645 : vector<2x256xi32>
      %c0_i32_165 = arith.constant 0 : i32
      %647 = vector.broadcast %c0_i32_165 : i32 to vector<2x256xi32>
      %648 = arith.cmpi sge, %646, %647 : vector<2x256xi32>
      %c1_i32_166 = arith.constant 1 : i32
      %649 = vector.broadcast %c1_i32_166 : i32 to vector<2x256xi32>
      %650 = arith.addi %142, %649 : vector<2x256xi32>
      %c16_i32_167 = arith.constant 16 : i32
      %651 = vector.broadcast %c16_i32_167 : i32 to vector<2x256xi32>
      %652 = arith.cmpi slt, %650, %651 : vector<2x256xi32>
      %653 = arith.andi %648, %652 : vector<2x256xi1>
      %cst_168 = arith.constant 0.000000e+00 : f32
      %654 = vector.broadcast %cst_168 : f32 to vector<2x256xf32>
      %655 = arith.select %653, %644, %654 : vector<2x256xi1>, vector<2x256xf32>
      %c0_i32_169 = arith.constant 0 : i32
      %656 = vector.broadcast %c0_i32_169 : i32 to vector<2x1xi32>
      %657 = arith.cmpi eq, %125, %656 : vector<2x1xi32>
      %658 = vector.broadcast %52 : f32 to vector<2x1xf32>
      %659 = vector.broadcast %101 : f32 to vector<2x1xf32>
      %660 = arith.select %657, %658, %659 : vector<2x1xi1>, vector<2x1xf32>
      %661 = vector.broadcast %660 : vector<2x1xf32> to vector<2x256xf32>
      %662 = arith.mulf %655, %661 : vector<2x256xf32>
      %663 = arith.addf %643, %662 : vector<2x256xf32>
      %c254_i32 = arith.constant 254 : i32
      %664 = tpu.dynamic_rotate %26 by %c254_i32 dim 1 : vector<2x256xf32>, i32 -> vector<2x256xf32>
      %c2_i32_170 = arith.constant 2 : i32
      %665 = vector.broadcast %c2_i32_170 : i32 to vector<2x256xi32>
      %666 = arith.addi %142, %665 : vector<2x256xi32>
      %c0_i32_171 = arith.constant 0 : i32
      %667 = vector.broadcast %c0_i32_171 : i32 to vector<2x256xi32>
      %668 = arith.cmpi sge, %666, %667 : vector<2x256xi32>
      %c2_i32_172 = arith.constant 2 : i32
      %669 = vector.broadcast %c2_i32_172 : i32 to vector<2x256xi32>
      %670 = arith.addi %142, %669 : vector<2x256xi32>
      %c16_i32_173 = arith.constant 16 : i32
      %671 = vector.broadcast %c16_i32_173 : i32 to vector<2x256xi32>
      %672 = arith.cmpi slt, %670, %671 : vector<2x256xi32>
      %673 = arith.andi %668, %672 : vector<2x256xi1>
      %cst_174 = arith.constant 0.000000e+00 : f32
      %674 = vector.broadcast %cst_174 : f32 to vector<2x256xf32>
      %675 = arith.select %673, %664, %674 : vector<2x256xi1>, vector<2x256xf32>
      %c0_i32_175 = arith.constant 0 : i32
      %676 = vector.broadcast %c0_i32_175 : i32 to vector<2x1xi32>
      %677 = arith.cmpi eq, %125, %676 : vector<2x1xi32>
      %678 = vector.broadcast %53 : f32 to vector<2x1xf32>
      %679 = vector.broadcast %102 : f32 to vector<2x1xf32>
      %680 = arith.select %677, %678, %679 : vector<2x1xi1>, vector<2x1xf32>
      %681 = vector.broadcast %680 : vector<2x1xf32> to vector<2x256xf32>
      %682 = arith.mulf %675, %681 : vector<2x256xf32>
      %683 = arith.addf %663, %682 : vector<2x256xf32>
      %c253_i32 = arith.constant 253 : i32
      %684 = tpu.dynamic_rotate %26 by %c253_i32 dim 1 : vector<2x256xf32>, i32 -> vector<2x256xf32>
      %c3_i32_176 = arith.constant 3 : i32
      %685 = vector.broadcast %c3_i32_176 : i32 to vector<2x256xi32>
      %686 = arith.addi %142, %685 : vector<2x256xi32>
      %c0_i32_177 = arith.constant 0 : i32
      %687 = vector.broadcast %c0_i32_177 : i32 to vector<2x256xi32>
      %688 = arith.cmpi sge, %686, %687 : vector<2x256xi32>
      %c3_i32_178 = arith.constant 3 : i32
      %689 = vector.broadcast %c3_i32_178 : i32 to vector<2x256xi32>
      %690 = arith.addi %142, %689 : vector<2x256xi32>
      %c16_i32_179 = arith.constant 16 : i32
      %691 = vector.broadcast %c16_i32_179 : i32 to vector<2x256xi32>
      %692 = arith.cmpi slt, %690, %691 : vector<2x256xi32>
      %693 = arith.andi %688, %692 : vector<2x256xi1>
      %cst_180 = arith.constant 0.000000e+00 : f32
      %694 = vector.broadcast %cst_180 : f32 to vector<2x256xf32>
      %695 = arith.select %693, %684, %694 : vector<2x256xi1>, vector<2x256xf32>
      %c0_i32_181 = arith.constant 0 : i32
      %696 = vector.broadcast %c0_i32_181 : i32 to vector<2x1xi32>
      %697 = arith.cmpi eq, %125, %696 : vector<2x1xi32>
      %698 = vector.broadcast %54 : f32 to vector<2x1xf32>
      %699 = vector.broadcast %103 : f32 to vector<2x1xf32>
      %700 = arith.select %697, %698, %699 : vector<2x1xi1>, vector<2x1xf32>
      %701 = vector.broadcast %700 : vector<2x1xf32> to vector<2x256xf32>
      %702 = arith.mulf %695, %701 : vector<2x256xf32>
      %703 = arith.addf %683, %702 : vector<2x256xf32>
      %c16_i32_182 = arith.constant 16 : i32
      %704 = vector.broadcast %c16_i32_182 : i32 to vector<2x256xi32>
      %705 = arith.addi %126, %704 : vector<2x256xi32>
      %c0_i32_183 = arith.constant 0 : i32
      %706 = vector.broadcast %c0_i32_183 : i32 to vector<2x256xi32>
      %707 = arith.cmpi sge, %705, %706 : vector<2x256xi32>
      %c256_i32_184 = arith.constant 256 : i32
      %708 = vector.broadcast %c256_i32_184 : i32 to vector<2x256xi32>
      %709 = arith.cmpi slt, %705, %708 : vector<2x256xi32>
      %710 = arith.andi %707, %709 : vector<2x256xi1>
      %c243_i32 = arith.constant 243 : i32
      %711 = tpu.dynamic_rotate %26 by %c243_i32 dim 1 : vector<2x256xf32>, i32 -> vector<2x256xf32>
      %c-3_i32_185 = arith.constant -3 : i32
      %712 = vector.broadcast %c-3_i32_185 : i32 to vector<2x256xi32>
      %713 = arith.addi %142, %712 : vector<2x256xi32>
      %c0_i32_186 = arith.constant 0 : i32
      %714 = vector.broadcast %c0_i32_186 : i32 to vector<2x256xi32>
      %715 = arith.cmpi sge, %713, %714 : vector<2x256xi32>
      %c-3_i32_187 = arith.constant -3 : i32
      %716 = vector.broadcast %c-3_i32_187 : i32 to vector<2x256xi32>
      %717 = arith.addi %142, %716 : vector<2x256xi32>
      %c16_i32_188 = arith.constant 16 : i32
      %718 = vector.broadcast %c16_i32_188 : i32 to vector<2x256xi32>
      %719 = arith.cmpi slt, %717, %718 : vector<2x256xi32>
      %720 = arith.andi %715, %719 : vector<2x256xi1>
      %721 = arith.andi %710, %720 : vector<2x256xi1>
      %cst_189 = arith.constant 0.000000e+00 : f32
      %722 = vector.broadcast %cst_189 : f32 to vector<2x256xf32>
      %723 = arith.select %721, %711, %722 : vector<2x256xi1>, vector<2x256xf32>
      %c0_i32_190 = arith.constant 0 : i32
      %724 = vector.broadcast %c0_i32_190 : i32 to vector<2x1xi32>
      %725 = arith.cmpi eq, %125, %724 : vector<2x1xi32>
      %726 = vector.broadcast %55 : f32 to vector<2x1xf32>
      %727 = vector.broadcast %104 : f32 to vector<2x1xf32>
      %728 = arith.select %725, %726, %727 : vector<2x1xi1>, vector<2x1xf32>
      %729 = vector.broadcast %728 : vector<2x1xf32> to vector<2x256xf32>
      %730 = arith.mulf %723, %729 : vector<2x256xf32>
      %731 = arith.addf %703, %730 : vector<2x256xf32>
      %c242_i32 = arith.constant 242 : i32
      %732 = tpu.dynamic_rotate %26 by %c242_i32 dim 1 : vector<2x256xf32>, i32 -> vector<2x256xf32>
      %c-2_i32_191 = arith.constant -2 : i32
      %733 = vector.broadcast %c-2_i32_191 : i32 to vector<2x256xi32>
      %734 = arith.addi %142, %733 : vector<2x256xi32>
      %c0_i32_192 = arith.constant 0 : i32
      %735 = vector.broadcast %c0_i32_192 : i32 to vector<2x256xi32>
      %736 = arith.cmpi sge, %734, %735 : vector<2x256xi32>
      %c-2_i32_193 = arith.constant -2 : i32
      %737 = vector.broadcast %c-2_i32_193 : i32 to vector<2x256xi32>
      %738 = arith.addi %142, %737 : vector<2x256xi32>
      %c16_i32_194 = arith.constant 16 : i32
      %739 = vector.broadcast %c16_i32_194 : i32 to vector<2x256xi32>
      %740 = arith.cmpi slt, %738, %739 : vector<2x256xi32>
      %741 = arith.andi %736, %740 : vector<2x256xi1>
      %742 = arith.andi %710, %741 : vector<2x256xi1>
      %cst_195 = arith.constant 0.000000e+00 : f32
      %743 = vector.broadcast %cst_195 : f32 to vector<2x256xf32>
      %744 = arith.select %742, %732, %743 : vector<2x256xi1>, vector<2x256xf32>
      %c0_i32_196 = arith.constant 0 : i32
      %745 = vector.broadcast %c0_i32_196 : i32 to vector<2x1xi32>
      %746 = arith.cmpi eq, %125, %745 : vector<2x1xi32>
      %747 = vector.broadcast %56 : f32 to vector<2x1xf32>
      %748 = vector.broadcast %105 : f32 to vector<2x1xf32>
      %749 = arith.select %746, %747, %748 : vector<2x1xi1>, vector<2x1xf32>
      %750 = vector.broadcast %749 : vector<2x1xf32> to vector<2x256xf32>
      %751 = arith.mulf %744, %750 : vector<2x256xf32>
      %752 = arith.addf %731, %751 : vector<2x256xf32>
      %c241_i32 = arith.constant 241 : i32
      %753 = tpu.dynamic_rotate %26 by %c241_i32 dim 1 : vector<2x256xf32>, i32 -> vector<2x256xf32>
      %c-1_i32_197 = arith.constant -1 : i32
      %754 = vector.broadcast %c-1_i32_197 : i32 to vector<2x256xi32>
      %755 = arith.addi %142, %754 : vector<2x256xi32>
      %c0_i32_198 = arith.constant 0 : i32
      %756 = vector.broadcast %c0_i32_198 : i32 to vector<2x256xi32>
      %757 = arith.cmpi sge, %755, %756 : vector<2x256xi32>
      %c-1_i32_199 = arith.constant -1 : i32
      %758 = vector.broadcast %c-1_i32_199 : i32 to vector<2x256xi32>
      %759 = arith.addi %142, %758 : vector<2x256xi32>
      %c16_i32_200 = arith.constant 16 : i32
      %760 = vector.broadcast %c16_i32_200 : i32 to vector<2x256xi32>
      %761 = arith.cmpi slt, %759, %760 : vector<2x256xi32>
      %762 = arith.andi %757, %761 : vector<2x256xi1>
      %763 = arith.andi %710, %762 : vector<2x256xi1>
      %cst_201 = arith.constant 0.000000e+00 : f32
      %764 = vector.broadcast %cst_201 : f32 to vector<2x256xf32>
      %765 = arith.select %763, %753, %764 : vector<2x256xi1>, vector<2x256xf32>
      %c0_i32_202 = arith.constant 0 : i32
      %766 = vector.broadcast %c0_i32_202 : i32 to vector<2x1xi32>
      %767 = arith.cmpi eq, %125, %766 : vector<2x1xi32>
      %768 = vector.broadcast %57 : f32 to vector<2x1xf32>
      %769 = vector.broadcast %106 : f32 to vector<2x1xf32>
      %770 = arith.select %767, %768, %769 : vector<2x1xi1>, vector<2x1xf32>
      %771 = vector.broadcast %770 : vector<2x1xf32> to vector<2x256xf32>
      %772 = arith.mulf %765, %771 : vector<2x256xf32>
      %773 = arith.addf %752, %772 : vector<2x256xf32>
      %c240_i32 = arith.constant 240 : i32
      %774 = tpu.dynamic_rotate %26 by %c240_i32 dim 1 : vector<2x256xf32>, i32 -> vector<2x256xf32>
      %cst_203 = arith.constant 0.000000e+00 : f32
      %775 = vector.broadcast %cst_203 : f32 to vector<2x256xf32>
      %776 = arith.select %710, %774, %775 : vector<2x256xi1>, vector<2x256xf32>
      %c0_i32_204 = arith.constant 0 : i32
      %777 = vector.broadcast %c0_i32_204 : i32 to vector<2x1xi32>
      %778 = arith.cmpi eq, %125, %777 : vector<2x1xi32>
      %779 = vector.broadcast %58 : f32 to vector<2x1xf32>
      %780 = vector.broadcast %107 : f32 to vector<2x1xf32>
      %781 = arith.select %778, %779, %780 : vector<2x1xi1>, vector<2x1xf32>
      %782 = vector.broadcast %781 : vector<2x1xf32> to vector<2x256xf32>
      %783 = arith.mulf %776, %782 : vector<2x256xf32>
      %784 = arith.addf %773, %783 : vector<2x256xf32>
      %c239_i32 = arith.constant 239 : i32
      %785 = tpu.dynamic_rotate %26 by %c239_i32 dim 1 : vector<2x256xf32>, i32 -> vector<2x256xf32>
      %c1_i32_205 = arith.constant 1 : i32
      %786 = vector.broadcast %c1_i32_205 : i32 to vector<2x256xi32>
      %787 = arith.addi %142, %786 : vector<2x256xi32>
      %c0_i32_206 = arith.constant 0 : i32
      %788 = vector.broadcast %c0_i32_206 : i32 to vector<2x256xi32>
      %789 = arith.cmpi sge, %787, %788 : vector<2x256xi32>
      %c1_i32_207 = arith.constant 1 : i32
      %790 = vector.broadcast %c1_i32_207 : i32 to vector<2x256xi32>
      %791 = arith.addi %142, %790 : vector<2x256xi32>
      %c16_i32_208 = arith.constant 16 : i32
      %792 = vector.broadcast %c16_i32_208 : i32 to vector<2x256xi32>
      %793 = arith.cmpi slt, %791, %792 : vector<2x256xi32>
      %794 = arith.andi %789, %793 : vector<2x256xi1>
      %795 = arith.andi %710, %794 : vector<2x256xi1>
      %cst_209 = arith.constant 0.000000e+00 : f32
      %796 = vector.broadcast %cst_209 : f32 to vector<2x256xf32>
      %797 = arith.select %795, %785, %796 : vector<2x256xi1>, vector<2x256xf32>
      %c0_i32_210 = arith.constant 0 : i32
      %798 = vector.broadcast %c0_i32_210 : i32 to vector<2x1xi32>
      %799 = arith.cmpi eq, %125, %798 : vector<2x1xi32>
      %800 = vector.broadcast %59 : f32 to vector<2x1xf32>
      %801 = vector.broadcast %108 : f32 to vector<2x1xf32>
      %802 = arith.select %799, %800, %801 : vector<2x1xi1>, vector<2x1xf32>
      %803 = vector.broadcast %802 : vector<2x1xf32> to vector<2x256xf32>
      %804 = arith.mulf %797, %803 : vector<2x256xf32>
      %805 = arith.addf %784, %804 : vector<2x256xf32>
      %c238_i32 = arith.constant 238 : i32
      %806 = tpu.dynamic_rotate %26 by %c238_i32 dim 1 : vector<2x256xf32>, i32 -> vector<2x256xf32>
      %c2_i32_211 = arith.constant 2 : i32
      %807 = vector.broadcast %c2_i32_211 : i32 to vector<2x256xi32>
      %808 = arith.addi %142, %807 : vector<2x256xi32>
      %c0_i32_212 = arith.constant 0 : i32
      %809 = vector.broadcast %c0_i32_212 : i32 to vector<2x256xi32>
      %810 = arith.cmpi sge, %808, %809 : vector<2x256xi32>
      %c2_i32_213 = arith.constant 2 : i32
      %811 = vector.broadcast %c2_i32_213 : i32 to vector<2x256xi32>
      %812 = arith.addi %142, %811 : vector<2x256xi32>
      %c16_i32_214 = arith.constant 16 : i32
      %813 = vector.broadcast %c16_i32_214 : i32 to vector<2x256xi32>
      %814 = arith.cmpi slt, %812, %813 : vector<2x256xi32>
      %815 = arith.andi %810, %814 : vector<2x256xi1>
      %816 = arith.andi %710, %815 : vector<2x256xi1>
      %cst_215 = arith.constant 0.000000e+00 : f32
      %817 = vector.broadcast %cst_215 : f32 to vector<2x256xf32>
      %818 = arith.select %816, %806, %817 : vector<2x256xi1>, vector<2x256xf32>
      %c0_i32_216 = arith.constant 0 : i32
      %819 = vector.broadcast %c0_i32_216 : i32 to vector<2x1xi32>
      %820 = arith.cmpi eq, %125, %819 : vector<2x1xi32>
      %821 = vector.broadcast %60 : f32 to vector<2x1xf32>
      %822 = vector.broadcast %109 : f32 to vector<2x1xf32>
      %823 = arith.select %820, %821, %822 : vector<2x1xi1>, vector<2x1xf32>
      %824 = vector.broadcast %823 : vector<2x1xf32> to vector<2x256xf32>
      %825 = arith.mulf %818, %824 : vector<2x256xf32>
      %826 = arith.addf %805, %825 : vector<2x256xf32>
      %c237_i32 = arith.constant 237 : i32
      %827 = tpu.dynamic_rotate %26 by %c237_i32 dim 1 : vector<2x256xf32>, i32 -> vector<2x256xf32>
      %c3_i32_217 = arith.constant 3 : i32
      %828 = vector.broadcast %c3_i32_217 : i32 to vector<2x256xi32>
      %829 = arith.addi %142, %828 : vector<2x256xi32>
      %c0_i32_218 = arith.constant 0 : i32
      %830 = vector.broadcast %c0_i32_218 : i32 to vector<2x256xi32>
      %831 = arith.cmpi sge, %829, %830 : vector<2x256xi32>
      %c3_i32_219 = arith.constant 3 : i32
      %832 = vector.broadcast %c3_i32_219 : i32 to vector<2x256xi32>
      %833 = arith.addi %142, %832 : vector<2x256xi32>
      %c16_i32_220 = arith.constant 16 : i32
      %834 = vector.broadcast %c16_i32_220 : i32 to vector<2x256xi32>
      %835 = arith.cmpi slt, %833, %834 : vector<2x256xi32>
      %836 = arith.andi %831, %835 : vector<2x256xi1>
      %837 = arith.andi %710, %836 : vector<2x256xi1>
      %cst_221 = arith.constant 0.000000e+00 : f32
      %838 = vector.broadcast %cst_221 : f32 to vector<2x256xf32>
      %839 = arith.select %837, %827, %838 : vector<2x256xi1>, vector<2x256xf32>
      %c0_i32_222 = arith.constant 0 : i32
      %840 = vector.broadcast %c0_i32_222 : i32 to vector<2x1xi32>
      %841 = arith.cmpi eq, %125, %840 : vector<2x1xi32>
      %842 = vector.broadcast %61 : f32 to vector<2x1xf32>
      %843 = vector.broadcast %110 : f32 to vector<2x1xf32>
      %844 = arith.select %841, %842, %843 : vector<2x1xi1>, vector<2x1xf32>
      %845 = vector.broadcast %844 : vector<2x1xf32> to vector<2x256xf32>
      %846 = arith.mulf %839, %845 : vector<2x256xf32>
      %847 = arith.addf %826, %846 : vector<2x256xf32>
      %c32_i32_223 = arith.constant 32 : i32
      %848 = vector.broadcast %c32_i32_223 : i32 to vector<2x256xi32>
      %849 = arith.addi %126, %848 : vector<2x256xi32>
      %c0_i32_224 = arith.constant 0 : i32
      %850 = vector.broadcast %c0_i32_224 : i32 to vector<2x256xi32>
      %851 = arith.cmpi sge, %849, %850 : vector<2x256xi32>
      %c256_i32_225 = arith.constant 256 : i32
      %852 = vector.broadcast %c256_i32_225 : i32 to vector<2x256xi32>
      %853 = arith.cmpi slt, %849, %852 : vector<2x256xi32>
      %854 = arith.andi %851, %853 : vector<2x256xi1>
      %c227_i32 = arith.constant 227 : i32
      %855 = tpu.dynamic_rotate %26 by %c227_i32 dim 1 : vector<2x256xf32>, i32 -> vector<2x256xf32>
      %c-3_i32_226 = arith.constant -3 : i32
      %856 = vector.broadcast %c-3_i32_226 : i32 to vector<2x256xi32>
      %857 = arith.addi %142, %856 : vector<2x256xi32>
      %c0_i32_227 = arith.constant 0 : i32
      %858 = vector.broadcast %c0_i32_227 : i32 to vector<2x256xi32>
      %859 = arith.cmpi sge, %857, %858 : vector<2x256xi32>
      %c-3_i32_228 = arith.constant -3 : i32
      %860 = vector.broadcast %c-3_i32_228 : i32 to vector<2x256xi32>
      %861 = arith.addi %142, %860 : vector<2x256xi32>
      %c16_i32_229 = arith.constant 16 : i32
      %862 = vector.broadcast %c16_i32_229 : i32 to vector<2x256xi32>
      %863 = arith.cmpi slt, %861, %862 : vector<2x256xi32>
      %864 = arith.andi %859, %863 : vector<2x256xi1>
      %865 = arith.andi %854, %864 : vector<2x256xi1>
      %cst_230 = arith.constant 0.000000e+00 : f32
      %866 = vector.broadcast %cst_230 : f32 to vector<2x256xf32>
      %867 = arith.select %865, %855, %866 : vector<2x256xi1>, vector<2x256xf32>
      %c0_i32_231 = arith.constant 0 : i32
      %868 = vector.broadcast %c0_i32_231 : i32 to vector<2x1xi32>
      %869 = arith.cmpi eq, %125, %868 : vector<2x1xi32>
      %870 = vector.broadcast %62 : f32 to vector<2x1xf32>
      %871 = vector.broadcast %111 : f32 to vector<2x1xf32>
      %872 = arith.select %869, %870, %871 : vector<2x1xi1>, vector<2x1xf32>
      %873 = vector.broadcast %872 : vector<2x1xf32> to vector<2x256xf32>
      %874 = arith.mulf %867, %873 : vector<2x256xf32>
      %875 = arith.addf %847, %874 : vector<2x256xf32>
      %c226_i32 = arith.constant 226 : i32
      %876 = tpu.dynamic_rotate %26 by %c226_i32 dim 1 : vector<2x256xf32>, i32 -> vector<2x256xf32>
      %c-2_i32_232 = arith.constant -2 : i32
      %877 = vector.broadcast %c-2_i32_232 : i32 to vector<2x256xi32>
      %878 = arith.addi %142, %877 : vector<2x256xi32>
      %c0_i32_233 = arith.constant 0 : i32
      %879 = vector.broadcast %c0_i32_233 : i32 to vector<2x256xi32>
      %880 = arith.cmpi sge, %878, %879 : vector<2x256xi32>
      %c-2_i32_234 = arith.constant -2 : i32
      %881 = vector.broadcast %c-2_i32_234 : i32 to vector<2x256xi32>
      %882 = arith.addi %142, %881 : vector<2x256xi32>
      %c16_i32_235 = arith.constant 16 : i32
      %883 = vector.broadcast %c16_i32_235 : i32 to vector<2x256xi32>
      %884 = arith.cmpi slt, %882, %883 : vector<2x256xi32>
      %885 = arith.andi %880, %884 : vector<2x256xi1>
      %886 = arith.andi %854, %885 : vector<2x256xi1>
      %cst_236 = arith.constant 0.000000e+00 : f32
      %887 = vector.broadcast %cst_236 : f32 to vector<2x256xf32>
      %888 = arith.select %886, %876, %887 : vector<2x256xi1>, vector<2x256xf32>
      %c0_i32_237 = arith.constant 0 : i32
      %889 = vector.broadcast %c0_i32_237 : i32 to vector<2x1xi32>
      %890 = arith.cmpi eq, %125, %889 : vector<2x1xi32>
      %891 = vector.broadcast %63 : f32 to vector<2x1xf32>
      %892 = vector.broadcast %112 : f32 to vector<2x1xf32>
      %893 = arith.select %890, %891, %892 : vector<2x1xi1>, vector<2x1xf32>
      %894 = vector.broadcast %893 : vector<2x1xf32> to vector<2x256xf32>
      %895 = arith.mulf %888, %894 : vector<2x256xf32>
      %896 = arith.addf %875, %895 : vector<2x256xf32>
      %c225_i32 = arith.constant 225 : i32
      %897 = tpu.dynamic_rotate %26 by %c225_i32 dim 1 : vector<2x256xf32>, i32 -> vector<2x256xf32>
      %c-1_i32_238 = arith.constant -1 : i32
      %898 = vector.broadcast %c-1_i32_238 : i32 to vector<2x256xi32>
      %899 = arith.addi %142, %898 : vector<2x256xi32>
      %c0_i32_239 = arith.constant 0 : i32
      %900 = vector.broadcast %c0_i32_239 : i32 to vector<2x256xi32>
      %901 = arith.cmpi sge, %899, %900 : vector<2x256xi32>
      %c-1_i32_240 = arith.constant -1 : i32
      %902 = vector.broadcast %c-1_i32_240 : i32 to vector<2x256xi32>
      %903 = arith.addi %142, %902 : vector<2x256xi32>
      %c16_i32_241 = arith.constant 16 : i32
      %904 = vector.broadcast %c16_i32_241 : i32 to vector<2x256xi32>
      %905 = arith.cmpi slt, %903, %904 : vector<2x256xi32>
      %906 = arith.andi %901, %905 : vector<2x256xi1>
      %907 = arith.andi %854, %906 : vector<2x256xi1>
      %cst_242 = arith.constant 0.000000e+00 : f32
      %908 = vector.broadcast %cst_242 : f32 to vector<2x256xf32>
      %909 = arith.select %907, %897, %908 : vector<2x256xi1>, vector<2x256xf32>
      %c0_i32_243 = arith.constant 0 : i32
      %910 = vector.broadcast %c0_i32_243 : i32 to vector<2x1xi32>
      %911 = arith.cmpi eq, %125, %910 : vector<2x1xi32>
      %912 = vector.broadcast %64 : f32 to vector<2x1xf32>
      %913 = vector.broadcast %113 : f32 to vector<2x1xf32>
      %914 = arith.select %911, %912, %913 : vector<2x1xi1>, vector<2x1xf32>
      %915 = vector.broadcast %914 : vector<2x1xf32> to vector<2x256xf32>
      %916 = arith.mulf %909, %915 : vector<2x256xf32>
      %917 = arith.addf %896, %916 : vector<2x256xf32>
      %c224_i32 = arith.constant 224 : i32
      %918 = tpu.dynamic_rotate %26 by %c224_i32 dim 1 : vector<2x256xf32>, i32 -> vector<2x256xf32>
      %cst_244 = arith.constant 0.000000e+00 : f32
      %919 = vector.broadcast %cst_244 : f32 to vector<2x256xf32>
      %920 = arith.select %854, %918, %919 : vector<2x256xi1>, vector<2x256xf32>
      %c0_i32_245 = arith.constant 0 : i32
      %921 = vector.broadcast %c0_i32_245 : i32 to vector<2x1xi32>
      %922 = arith.cmpi eq, %125, %921 : vector<2x1xi32>
      %923 = vector.broadcast %65 : f32 to vector<2x1xf32>
      %924 = vector.broadcast %114 : f32 to vector<2x1xf32>
      %925 = arith.select %922, %923, %924 : vector<2x1xi1>, vector<2x1xf32>
      %926 = vector.broadcast %925 : vector<2x1xf32> to vector<2x256xf32>
      %927 = arith.mulf %920, %926 : vector<2x256xf32>
      %928 = arith.addf %917, %927 : vector<2x256xf32>
      %c223_i32 = arith.constant 223 : i32
      %929 = tpu.dynamic_rotate %26 by %c223_i32 dim 1 : vector<2x256xf32>, i32 -> vector<2x256xf32>
      %c1_i32_246 = arith.constant 1 : i32
      %930 = vector.broadcast %c1_i32_246 : i32 to vector<2x256xi32>
      %931 = arith.addi %142, %930 : vector<2x256xi32>
      %c0_i32_247 = arith.constant 0 : i32
      %932 = vector.broadcast %c0_i32_247 : i32 to vector<2x256xi32>
      %933 = arith.cmpi sge, %931, %932 : vector<2x256xi32>
      %c1_i32_248 = arith.constant 1 : i32
      %934 = vector.broadcast %c1_i32_248 : i32 to vector<2x256xi32>
      %935 = arith.addi %142, %934 : vector<2x256xi32>
      %c16_i32_249 = arith.constant 16 : i32
      %936 = vector.broadcast %c16_i32_249 : i32 to vector<2x256xi32>
      %937 = arith.cmpi slt, %935, %936 : vector<2x256xi32>
      %938 = arith.andi %933, %937 : vector<2x256xi1>
      %939 = arith.andi %854, %938 : vector<2x256xi1>
      %cst_250 = arith.constant 0.000000e+00 : f32
      %940 = vector.broadcast %cst_250 : f32 to vector<2x256xf32>
      %941 = arith.select %939, %929, %940 : vector<2x256xi1>, vector<2x256xf32>
      %c0_i32_251 = arith.constant 0 : i32
      %942 = vector.broadcast %c0_i32_251 : i32 to vector<2x1xi32>
      %943 = arith.cmpi eq, %125, %942 : vector<2x1xi32>
      %944 = vector.broadcast %66 : f32 to vector<2x1xf32>
      %945 = vector.broadcast %115 : f32 to vector<2x1xf32>
      %946 = arith.select %943, %944, %945 : vector<2x1xi1>, vector<2x1xf32>
      %947 = vector.broadcast %946 : vector<2x1xf32> to vector<2x256xf32>
      %948 = arith.mulf %941, %947 : vector<2x256xf32>
      %949 = arith.addf %928, %948 : vector<2x256xf32>
      %c222_i32 = arith.constant 222 : i32
      %950 = tpu.dynamic_rotate %26 by %c222_i32 dim 1 : vector<2x256xf32>, i32 -> vector<2x256xf32>
      %c2_i32_252 = arith.constant 2 : i32
      %951 = vector.broadcast %c2_i32_252 : i32 to vector<2x256xi32>
      %952 = arith.addi %142, %951 : vector<2x256xi32>
      %c0_i32_253 = arith.constant 0 : i32
      %953 = vector.broadcast %c0_i32_253 : i32 to vector<2x256xi32>
      %954 = arith.cmpi sge, %952, %953 : vector<2x256xi32>
      %c2_i32_254 = arith.constant 2 : i32
      %955 = vector.broadcast %c2_i32_254 : i32 to vector<2x256xi32>
      %956 = arith.addi %142, %955 : vector<2x256xi32>
      %c16_i32_255 = arith.constant 16 : i32
      %957 = vector.broadcast %c16_i32_255 : i32 to vector<2x256xi32>
      %958 = arith.cmpi slt, %956, %957 : vector<2x256xi32>
      %959 = arith.andi %954, %958 : vector<2x256xi1>
      %960 = arith.andi %854, %959 : vector<2x256xi1>
      %cst_256 = arith.constant 0.000000e+00 : f32
      %961 = vector.broadcast %cst_256 : f32 to vector<2x256xf32>
      %962 = arith.select %960, %950, %961 : vector<2x256xi1>, vector<2x256xf32>
      %c0_i32_257 = arith.constant 0 : i32
      %963 = vector.broadcast %c0_i32_257 : i32 to vector<2x1xi32>
      %964 = arith.cmpi eq, %125, %963 : vector<2x1xi32>
      %965 = vector.broadcast %67 : f32 to vector<2x1xf32>
      %966 = vector.broadcast %116 : f32 to vector<2x1xf32>
      %967 = arith.select %964, %965, %966 : vector<2x1xi1>, vector<2x1xf32>
      %968 = vector.broadcast %967 : vector<2x1xf32> to vector<2x256xf32>
      %969 = arith.mulf %962, %968 : vector<2x256xf32>
      %970 = arith.addf %949, %969 : vector<2x256xf32>
      %c221_i32 = arith.constant 221 : i32
      %971 = tpu.dynamic_rotate %26 by %c221_i32 dim 1 : vector<2x256xf32>, i32 -> vector<2x256xf32>
      %c3_i32_258 = arith.constant 3 : i32
      %972 = vector.broadcast %c3_i32_258 : i32 to vector<2x256xi32>
      %973 = arith.addi %142, %972 : vector<2x256xi32>
      %c0_i32_259 = arith.constant 0 : i32
      %974 = vector.broadcast %c0_i32_259 : i32 to vector<2x256xi32>
      %975 = arith.cmpi sge, %973, %974 : vector<2x256xi32>
      %c3_i32_260 = arith.constant 3 : i32
      %976 = vector.broadcast %c3_i32_260 : i32 to vector<2x256xi32>
      %977 = arith.addi %142, %976 : vector<2x256xi32>
      %c16_i32_261 = arith.constant 16 : i32
      %978 = vector.broadcast %c16_i32_261 : i32 to vector<2x256xi32>
      %979 = arith.cmpi slt, %977, %978 : vector<2x256xi32>
      %980 = arith.andi %975, %979 : vector<2x256xi1>
      %981 = arith.andi %854, %980 : vector<2x256xi1>
      %cst_262 = arith.constant 0.000000e+00 : f32
      %982 = vector.broadcast %cst_262 : f32 to vector<2x256xf32>
      %983 = arith.select %981, %971, %982 : vector<2x256xi1>, vector<2x256xf32>
      %c0_i32_263 = arith.constant 0 : i32
      %984 = vector.broadcast %c0_i32_263 : i32 to vector<2x1xi32>
      %985 = arith.cmpi eq, %125, %984 : vector<2x1xi32>
      %986 = vector.broadcast %68 : f32 to vector<2x1xf32>
      %987 = vector.broadcast %117 : f32 to vector<2x1xf32>
      %988 = arith.select %985, %986, %987 : vector<2x1xi1>, vector<2x1xf32>
      %989 = vector.broadcast %988 : vector<2x1xf32> to vector<2x256xf32>
      %990 = arith.mulf %983, %989 : vector<2x256xf32>
      %991 = arith.addf %970, %990 : vector<2x256xf32>
      %c48_i32_264 = arith.constant 48 : i32
      %992 = vector.broadcast %c48_i32_264 : i32 to vector<2x256xi32>
      %993 = arith.addi %126, %992 : vector<2x256xi32>
      %c0_i32_265 = arith.constant 0 : i32
      %994 = vector.broadcast %c0_i32_265 : i32 to vector<2x256xi32>
      %995 = arith.cmpi sge, %993, %994 : vector<2x256xi32>
      %c256_i32_266 = arith.constant 256 : i32
      %996 = vector.broadcast %c256_i32_266 : i32 to vector<2x256xi32>
      %997 = arith.cmpi slt, %993, %996 : vector<2x256xi32>
      %998 = arith.andi %995, %997 : vector<2x256xi1>
      %c211_i32 = arith.constant 211 : i32
      %999 = tpu.dynamic_rotate %26 by %c211_i32 dim 1 : vector<2x256xf32>, i32 -> vector<2x256xf32>
      %c-3_i32_267 = arith.constant -3 : i32
      %1000 = vector.broadcast %c-3_i32_267 : i32 to vector<2x256xi32>
      %1001 = arith.addi %142, %1000 : vector<2x256xi32>
      %c0_i32_268 = arith.constant 0 : i32
      %1002 = vector.broadcast %c0_i32_268 : i32 to vector<2x256xi32>
      %1003 = arith.cmpi sge, %1001, %1002 : vector<2x256xi32>
      %c-3_i32_269 = arith.constant -3 : i32
      %1004 = vector.broadcast %c-3_i32_269 : i32 to vector<2x256xi32>
      %1005 = arith.addi %142, %1004 : vector<2x256xi32>
      %c16_i32_270 = arith.constant 16 : i32
      %1006 = vector.broadcast %c16_i32_270 : i32 to vector<2x256xi32>
      %1007 = arith.cmpi slt, %1005, %1006 : vector<2x256xi32>
      %1008 = arith.andi %1003, %1007 : vector<2x256xi1>
      %1009 = arith.andi %998, %1008 : vector<2x256xi1>
      %cst_271 = arith.constant 0.000000e+00 : f32
      %1010 = vector.broadcast %cst_271 : f32 to vector<2x256xf32>
      %1011 = arith.select %1009, %999, %1010 : vector<2x256xi1>, vector<2x256xf32>
      %c0_i32_272 = arith.constant 0 : i32
      %1012 = vector.broadcast %c0_i32_272 : i32 to vector<2x1xi32>
      %1013 = arith.cmpi eq, %125, %1012 : vector<2x1xi32>
      %1014 = vector.broadcast %69 : f32 to vector<2x1xf32>
      %1015 = vector.broadcast %118 : f32 to vector<2x1xf32>
      %1016 = arith.select %1013, %1014, %1015 : vector<2x1xi1>, vector<2x1xf32>
      %1017 = vector.broadcast %1016 : vector<2x1xf32> to vector<2x256xf32>
      %1018 = arith.mulf %1011, %1017 : vector<2x256xf32>
      %1019 = arith.addf %991, %1018 : vector<2x256xf32>
      %c210_i32 = arith.constant 210 : i32
      %1020 = tpu.dynamic_rotate %26 by %c210_i32 dim 1 : vector<2x256xf32>, i32 -> vector<2x256xf32>
      %c-2_i32_273 = arith.constant -2 : i32
      %1021 = vector.broadcast %c-2_i32_273 : i32 to vector<2x256xi32>
      %1022 = arith.addi %142, %1021 : vector<2x256xi32>
      %c0_i32_274 = arith.constant 0 : i32
      %1023 = vector.broadcast %c0_i32_274 : i32 to vector<2x256xi32>
      %1024 = arith.cmpi sge, %1022, %1023 : vector<2x256xi32>
      %c-2_i32_275 = arith.constant -2 : i32
      %1025 = vector.broadcast %c-2_i32_275 : i32 to vector<2x256xi32>
      %1026 = arith.addi %142, %1025 : vector<2x256xi32>
      %c16_i32_276 = arith.constant 16 : i32
      %1027 = vector.broadcast %c16_i32_276 : i32 to vector<2x256xi32>
      %1028 = arith.cmpi slt, %1026, %1027 : vector<2x256xi32>
      %1029 = arith.andi %1024, %1028 : vector<2x256xi1>
      %1030 = arith.andi %998, %1029 : vector<2x256xi1>
      %cst_277 = arith.constant 0.000000e+00 : f32
      %1031 = vector.broadcast %cst_277 : f32 to vector<2x256xf32>
      %1032 = arith.select %1030, %1020, %1031 : vector<2x256xi1>, vector<2x256xf32>
      %c0_i32_278 = arith.constant 0 : i32
      %1033 = vector.broadcast %c0_i32_278 : i32 to vector<2x1xi32>
      %1034 = arith.cmpi eq, %125, %1033 : vector<2x1xi32>
      %1035 = vector.broadcast %70 : f32 to vector<2x1xf32>
      %1036 = vector.broadcast %119 : f32 to vector<2x1xf32>
      %1037 = arith.select %1034, %1035, %1036 : vector<2x1xi1>, vector<2x1xf32>
      %1038 = vector.broadcast %1037 : vector<2x1xf32> to vector<2x256xf32>
      %1039 = arith.mulf %1032, %1038 : vector<2x256xf32>
      %1040 = arith.addf %1019, %1039 : vector<2x256xf32>
      %c209_i32 = arith.constant 209 : i32
      %1041 = tpu.dynamic_rotate %26 by %c209_i32 dim 1 : vector<2x256xf32>, i32 -> vector<2x256xf32>
      %c-1_i32_279 = arith.constant -1 : i32
      %1042 = vector.broadcast %c-1_i32_279 : i32 to vector<2x256xi32>
      %1043 = arith.addi %142, %1042 : vector<2x256xi32>
      %c0_i32_280 = arith.constant 0 : i32
      %1044 = vector.broadcast %c0_i32_280 : i32 to vector<2x256xi32>
      %1045 = arith.cmpi sge, %1043, %1044 : vector<2x256xi32>
      %c-1_i32_281 = arith.constant -1 : i32
      %1046 = vector.broadcast %c-1_i32_281 : i32 to vector<2x256xi32>
      %1047 = arith.addi %142, %1046 : vector<2x256xi32>
      %c16_i32_282 = arith.constant 16 : i32
      %1048 = vector.broadcast %c16_i32_282 : i32 to vector<2x256xi32>
      %1049 = arith.cmpi slt, %1047, %1048 : vector<2x256xi32>
      %1050 = arith.andi %1045, %1049 : vector<2x256xi1>
      %1051 = arith.andi %998, %1050 : vector<2x256xi1>
      %cst_283 = arith.constant 0.000000e+00 : f32
      %1052 = vector.broadcast %cst_283 : f32 to vector<2x256xf32>
      %1053 = arith.select %1051, %1041, %1052 : vector<2x256xi1>, vector<2x256xf32>
      %c0_i32_284 = arith.constant 0 : i32
      %1054 = vector.broadcast %c0_i32_284 : i32 to vector<2x1xi32>
      %1055 = arith.cmpi eq, %125, %1054 : vector<2x1xi32>
      %1056 = vector.broadcast %71 : f32 to vector<2x1xf32>
      %1057 = vector.broadcast %120 : f32 to vector<2x1xf32>
      %1058 = arith.select %1055, %1056, %1057 : vector<2x1xi1>, vector<2x1xf32>
      %1059 = vector.broadcast %1058 : vector<2x1xf32> to vector<2x256xf32>
      %1060 = arith.mulf %1053, %1059 : vector<2x256xf32>
      %1061 = arith.addf %1040, %1060 : vector<2x256xf32>
      %c208_i32 = arith.constant 208 : i32
      %1062 = tpu.dynamic_rotate %26 by %c208_i32 dim 1 : vector<2x256xf32>, i32 -> vector<2x256xf32>
      %cst_285 = arith.constant 0.000000e+00 : f32
      %1063 = vector.broadcast %cst_285 : f32 to vector<2x256xf32>
      %1064 = arith.select %998, %1062, %1063 : vector<2x256xi1>, vector<2x256xf32>
      %c0_i32_286 = arith.constant 0 : i32
      %1065 = vector.broadcast %c0_i32_286 : i32 to vector<2x1xi32>
      %1066 = arith.cmpi eq, %125, %1065 : vector<2x1xi32>
      %1067 = vector.broadcast %72 : f32 to vector<2x1xf32>
      %1068 = vector.broadcast %121 : f32 to vector<2x1xf32>
      %1069 = arith.select %1066, %1067, %1068 : vector<2x1xi1>, vector<2x1xf32>
      %1070 = vector.broadcast %1069 : vector<2x1xf32> to vector<2x256xf32>
      %1071 = arith.mulf %1064, %1070 : vector<2x256xf32>
      %1072 = arith.addf %1061, %1071 : vector<2x256xf32>
      %c207_i32 = arith.constant 207 : i32
      %1073 = tpu.dynamic_rotate %26 by %c207_i32 dim 1 : vector<2x256xf32>, i32 -> vector<2x256xf32>
      %c1_i32_287 = arith.constant 1 : i32
      %1074 = vector.broadcast %c1_i32_287 : i32 to vector<2x256xi32>
      %1075 = arith.addi %142, %1074 : vector<2x256xi32>
      %c0_i32_288 = arith.constant 0 : i32
      %1076 = vector.broadcast %c0_i32_288 : i32 to vector<2x256xi32>
      %1077 = arith.cmpi sge, %1075, %1076 : vector<2x256xi32>
      %c1_i32_289 = arith.constant 1 : i32
      %1078 = vector.broadcast %c1_i32_289 : i32 to vector<2x256xi32>
      %1079 = arith.addi %142, %1078 : vector<2x256xi32>
      %c16_i32_290 = arith.constant 16 : i32
      %1080 = vector.broadcast %c16_i32_290 : i32 to vector<2x256xi32>
      %1081 = arith.cmpi slt, %1079, %1080 : vector<2x256xi32>
      %1082 = arith.andi %1077, %1081 : vector<2x256xi1>
      %1083 = arith.andi %998, %1082 : vector<2x256xi1>
      %cst_291 = arith.constant 0.000000e+00 : f32
      %1084 = vector.broadcast %cst_291 : f32 to vector<2x256xf32>
      %1085 = arith.select %1083, %1073, %1084 : vector<2x256xi1>, vector<2x256xf32>
      %c0_i32_292 = arith.constant 0 : i32
      %1086 = vector.broadcast %c0_i32_292 : i32 to vector<2x1xi32>
      %1087 = arith.cmpi eq, %125, %1086 : vector<2x1xi32>
      %1088 = vector.broadcast %73 : f32 to vector<2x1xf32>
      %1089 = vector.broadcast %122 : f32 to vector<2x1xf32>
      %1090 = arith.select %1087, %1088, %1089 : vector<2x1xi1>, vector<2x1xf32>
      %1091 = vector.broadcast %1090 : vector<2x1xf32> to vector<2x256xf32>
      %1092 = arith.mulf %1085, %1091 : vector<2x256xf32>
      %1093 = arith.addf %1072, %1092 : vector<2x256xf32>
      %c206_i32 = arith.constant 206 : i32
      %1094 = tpu.dynamic_rotate %26 by %c206_i32 dim 1 : vector<2x256xf32>, i32 -> vector<2x256xf32>
      %c2_i32_293 = arith.constant 2 : i32
      %1095 = vector.broadcast %c2_i32_293 : i32 to vector<2x256xi32>
      %1096 = arith.addi %142, %1095 : vector<2x256xi32>
      %c0_i32_294 = arith.constant 0 : i32
      %1097 = vector.broadcast %c0_i32_294 : i32 to vector<2x256xi32>
      %1098 = arith.cmpi sge, %1096, %1097 : vector<2x256xi32>
      %c2_i32_295 = arith.constant 2 : i32
      %1099 = vector.broadcast %c2_i32_295 : i32 to vector<2x256xi32>
      %1100 = arith.addi %142, %1099 : vector<2x256xi32>
      %c16_i32_296 = arith.constant 16 : i32
      %1101 = vector.broadcast %c16_i32_296 : i32 to vector<2x256xi32>
      %1102 = arith.cmpi slt, %1100, %1101 : vector<2x256xi32>
      %1103 = arith.andi %1098, %1102 : vector<2x256xi1>
      %1104 = arith.andi %998, %1103 : vector<2x256xi1>
      %cst_297 = arith.constant 0.000000e+00 : f32
      %1105 = vector.broadcast %cst_297 : f32 to vector<2x256xf32>
      %1106 = arith.select %1104, %1094, %1105 : vector<2x256xi1>, vector<2x256xf32>
      %c0_i32_298 = arith.constant 0 : i32
      %1107 = vector.broadcast %c0_i32_298 : i32 to vector<2x1xi32>
      %1108 = arith.cmpi eq, %125, %1107 : vector<2x1xi32>
      %1109 = vector.broadcast %74 : f32 to vector<2x1xf32>
      %1110 = vector.broadcast %123 : f32 to vector<2x1xf32>
      %1111 = arith.select %1108, %1109, %1110 : vector<2x1xi1>, vector<2x1xf32>
      %1112 = vector.broadcast %1111 : vector<2x1xf32> to vector<2x256xf32>
      %1113 = arith.mulf %1106, %1112 : vector<2x256xf32>
      %1114 = arith.addf %1093, %1113 : vector<2x256xf32>
      %c205_i32 = arith.constant 205 : i32
      %1115 = tpu.dynamic_rotate %26 by %c205_i32 dim 1 : vector<2x256xf32>, i32 -> vector<2x256xf32>
      %c3_i32_299 = arith.constant 3 : i32
      %1116 = vector.broadcast %c3_i32_299 : i32 to vector<2x256xi32>
      %1117 = arith.addi %142, %1116 : vector<2x256xi32>
      %c0_i32_300 = arith.constant 0 : i32
      %1118 = vector.broadcast %c0_i32_300 : i32 to vector<2x256xi32>
      %1119 = arith.cmpi sge, %1117, %1118 : vector<2x256xi32>
      %c3_i32_301 = arith.constant 3 : i32
      %1120 = vector.broadcast %c3_i32_301 : i32 to vector<2x256xi32>
      %1121 = arith.addi %142, %1120 : vector<2x256xi32>
      %c16_i32_302 = arith.constant 16 : i32
      %1122 = vector.broadcast %c16_i32_302 : i32 to vector<2x256xi32>
      %1123 = arith.cmpi slt, %1121, %1122 : vector<2x256xi32>
      %1124 = arith.andi %1119, %1123 : vector<2x256xi1>
      %1125 = arith.andi %998, %1124 : vector<2x256xi1>
      %cst_303 = arith.constant 0.000000e+00 : f32
      %1126 = vector.broadcast %cst_303 : f32 to vector<2x256xf32>
      %1127 = arith.select %1125, %1115, %1126 : vector<2x256xi1>, vector<2x256xf32>
      %c0_i32_304 = arith.constant 0 : i32
      %1128 = vector.broadcast %c0_i32_304 : i32 to vector<2x1xi32>
      %1129 = arith.cmpi eq, %125, %1128 : vector<2x1xi32>
      %1130 = vector.broadcast %75 : f32 to vector<2x1xf32>
      %1131 = vector.broadcast %124 : f32 to vector<2x1xf32>
      %1132 = arith.select %1129, %1130, %1131 : vector<2x1xi1>, vector<2x1xf32>
      %1133 = vector.broadcast %1132 : vector<2x1xf32> to vector<2x256xf32>
      %1134 = arith.mulf %1127, %1133 : vector<2x256xf32>
      %1135 = arith.addf %1114, %1134 : vector<2x256xf32>
      %cst_305 = arith.constant dense<0.000000e+00> : vector<256xf32>
      %1136 = vector.multi_reduction <add>, %1135, %cst_305 [0] : vector<2x256xf32> to vector<256xf32>
      %1137 = vector.shape_cast %1136 : vector<256xf32> to vector<1x256xf32>
      %1138 = arith.negf %1137 : vector<1x256xf32>
      %1139 = math.exp %1138 : vector<1x256xf32>
      %cst_306 = arith.constant 1.000000e+00 : f32
      %1140 = vector.broadcast %cst_306 : f32 to vector<1x256xf32>
      %1141 = arith.addf %1140, %1139 : vector<1x256xf32>
      %1142 = arith.divf %1140, %1141 : vector<1x256xf32>
      %c0_307 = arith.constant 0 : index
      %c0_308 = arith.constant 0 : index
      %c0_309 = arith.constant 0 : index
      %1143 = vector.load %arg4[%c0_307, %c0_308, %c0_309] : memref<1x1x256xf32, #tpu.memory_space<vmem>>, vector<1x1x256xf32>
      %1144 = vector.shape_cast %1143 : vector<1x1x256xf32> to vector<1x256xf32>
      %1145 = vector.shape_cast %1142 : vector<1x256xf32> to vector<1x1x256xf32>
      tpu.vector_store %arg4[%c0_307, %c0_308, %c0_309], %1145 {strides = array<i32>} : memref<1x1x256xf32, #tpu.memory_space<vmem>>, vector<1x1x256xf32>,
    } else {
    }
    return
  }
  func.func @transform_0(%arg0: i32, %arg1: i32) -> (i32, i32, i32) {
    %c0_i32 = arith.constant 0 : i32
    %c0_i32_0 = arith.constant 0 : i32
    return %arg0, %arg1, %c0_i32 : i32, i32, i32
  }
  func.func @transform_1(%arg0: i32, %arg1: i32) -> i32 {
    %c0_i32 = arith.constant 0 : i32
    %c0_i32_0 = arith.constant 0 : i32
    return %c0_i32 : i32
  }
  func.func @transform_2(%arg0: i32, %arg1: i32) -> (i32, i32, i32) {
    %c0_i32 = arith.constant 0 : i32
    %c0_i32_0 = arith.constant 0 : i32
    %c0_i32_1 = arith.constant 0 : i32
    return %arg0, %c0_i32, %c0_i32_0 : i32, i32, i32
  }
}

</mosaic_0001>

<llo_original>
// kernel: tpu_custom_call.1
$region0: #{tpu_custom_call.1}
  #allocation0 [shape = 'u32[]', space=smem, size = 0x4, offset = 0x4, fixed_abs, tag = 'smem constant byte address 0x4 - core index']
  #allocation1 [shape = 'u32[144,128]{1,0:T(1,128)}', space=vmem, size = 0x12000, scoped, tag = 'internal scratch']
  #allocation2 [shape = 'f32[8,256]{1,0:T(8,128)}', space=vmem, size = 0x2000, scoped, tag = 'scratch operand']
  #allocation3 [shape = 'f32[8,256]{1,0:T(8,128)}', space=vmem, size = 0x2000, scoped, tag = 'scratch operand']
  %s0 = inlined_call_operand.hbm [shape: f32[2,4,256], index: 0, kind: input, shape index: {}]
  %s1 = inlined_call_operand.vmem [shape: f32[98], index: 1, kind: input, shape index: {}]
  %s2 = inlined_call_operand.hbm [shape: f32[2,1,256], index: 2, kind: output, shape index: {}]
  %s3 = sld [smem:[#allocation0]]
  $region57: #{tpu_custom_call.1} parent=0
    _
  %s5 = ssub.s32 1, %s3
  %s6 = scalar_select 0, %s5, %s3
  $region1: #{tpu_custom_call.1} parent=0
    #allocation4 [shape = 'u8[8192]{0}', space=vmem, size = 0x2000, scoped, tag = 'input window, operand 0']
    #allocation5 [shape = 's32[2]{0}', space=sflag, size = 0x8, scoped, tag = 'scoped memory for tpu_custom_call.1']
    #allocation6 [shape = 's32[2]{0}', space=sflag, size = 0x8, scoped, tag = 'scoped memory for tpu_custom_call.1']
    #allocation7 [shape = 's32[2]{0}', space=sflag, size = 0x8, scoped, tag = 'scoped memory for tpu_custom_call.1']
    #allocation8 [shape = 'u8[512]{0}', space=smem, size = 0x200, scoped, tag = 'input window, operand 1, single buffered']
    #allocation9 [shape = 'u8[2048]{0}', space=vmem, size = 0x800, scoped, tag = 'output window, operand 0']
    %7 = vsyncpa [#allocation5], 0
    %s8 = scalar_lea.sflag [#allocation5], 1
    %9 = vsyncpa %s8, 0
    %10 = vsyncpa [#allocation7], 0
    %11 = vsyncpa [#allocation6], 0
    %s12 = scalar_lea.sflag [#allocation6], 1
    %13 = vsyncpa %s12, 0
    loop: start=0, step=1, limit=4
    $region2: #{tpu_custom_call.1} parent=1 // loop_pre_header
      _
    $region3: #{tpu_custom_call.1} parent=1 // loop_header
      %s15 = sphi 0, %s19
      %p16 = scmp.ge.s32.totalorder %s15, 4
      %s22 = sphi 0, %s34
      %s23 = sphi 0, %s30
      %s24 = sphi 0, %s22
      %s25 = sphi 0, %s23
      %s26 = sphi 0, %s24
      %s27 = sphi 0, %s25
      %s39 = sphi 0, %s41
      %s42 = sphi 0, %s39
      %s43 = sphi 0, %s42
      %s59 = sphi 0, %s43
      %s63 = sphi 0, %s63
      %s65 = sphi 0, %s63
      %s66 = sphi 0, %s65
      %s80 = sphi 0, %s66
      %s86 = sphi 0, %s88
      %s89 = sphi 0, %s86
      %s90 = sphi 0, %s89
      %s106 = sphi 0, %s90
    $region4: #{tpu_custom_call.1} parent=1 // loop_header_branch
      %18 = sbr.rel (%p16) target = $region8
    $region5: #{tpu_custom_call.1} parent=1 // loop_body
      %s20 = ssub.s32 %s15, 1
      %s21 = ssub.s32 %s15, 2
      %s28 = sadd.s32 1, %s23
      %p29 = scmp.ge.s32.totalorder %s28, 1
      %s30 = scalar_select %p29, 0, %s28
      %s31 = sadd.s32 1, %s22
      %s32 = scalar_select %p29, %s31, %s22
      %p33 = scmp.ge.s32.totalorder %s32, 2
      %s34 = scalar_select %p33, 0, %s32
      %s35 = ssub.s32 %s22, %s34
      %s36 = ssub.s32 %s23, %s30
      %s37 = sor.u32 %s35, %s36
      %p38 = scmp.eq.s32.totalorder %s37, 0
      %s40 = sadd.s32 %s39, 1
      %s41 = scalar_select %p38, %s39, %s40
      %p44 = pneg %p38
      %p45 = scmp.eq.s32.totalorder %s15, 1
      %p46 = por %p44, %p45
      %p47 = scmp.ne.s32.totalorder %s39, %s42
      %p48 = scmp.eq.s32.totalorder %s15, 0
      %p49 = por %p47, %p48
      %p50 = scmp.ne.s32.totalorder %s39, %s42
      %p51 = scmp.eq.s32.totalorder %s20, 1
      %p52 = por %p50, %p51
      %p53 = scmp.ne.s32.totalorder %s42, %s43
      %p54 = scmp.eq.s32.totalorder %s20, 0
      %p55 = por %p53, %p54
      %p56 = scmp.ne.s32.totalorder %s42, %s43
      %p57 = scmp.eq.s32.totalorder %s21, 1
      %p58 = por %p56, %p57
      %p60 = scmp.ne.s32.totalorder %s43, %s59
      %p61 = scmp.eq.s32.totalorder %s21, 0
      %p62 = por %p60, %p61
      %s64 = sadd.s32 %s63, 1
      %p67 = scmp.eq.s32.totalorder %s15, 1
      %p68 = scmp.ne.s32.totalorder %s63, %s65
      %p69 = scmp.eq.s32.totalorder %s15, 0
      %p70 = por %p68, %p69
      %p71 = scmp.ne.s32.totalorder %s63, %s65
      %p72 = scmp.eq.s32.totalorder %s20, 1
      %p73 = por %p71, %p72
      %p74 = scmp.ne.s32.totalorder %s65, %s66
      %p75 = scmp.eq.s32.totalorder %s20, 0
      %p76 = por %p74, %p75
      %p77 = scmp.ne.s32.totalorder %s65, %s66
      %p78 = scmp.eq.s32.totalorder %s21, 1
      %p79 = por %p77, %p78
      %p81 = scmp.ne.s32.totalorder %s66, %s80
      %p82 = scmp.eq.s32.totalorder %s21, 0
      %p83 = por %p81, %p82
      %s84 = ssub.s32 %s22, %s34
      %p85 = scmp.eq.s32.totalorder %s84, 0
      %s87 = sadd.s32 %s86, 1
      %s88 = scalar_select %p85, %s86, %s87
      %p91 = pneg %p85
      %p92 = scmp.eq.s32.totalorder %s15, 1
      %p93 = por %p91, %p92
      %p94 = scmp.ne.s32.totalorder %s86, %s89
      %p95 = scmp.eq.s32.totalorder %s15, 0
      %p96 = por %p94, %p95
      %p97 = scmp.ne.s32.totalorder %s86, %s89
      %p98 = scmp.eq.s32.totalorder %s20, 1
      %p99 = por %p97, %p98
      %p100 = scmp.ne.s32.totalorder %s89, %s90
      %p101 = scmp.eq.s32.totalorder %s20, 0
      %p102 = por %p100, %p101
      %p103 = scmp.ne.s32.totalorder %s89, %s90
      %p104 = scmp.eq.s32.totalorder %s21, 1
      %p105 = por %p103, %p104
      %p107 = scmp.ne.s32.totalorder %s90, %s106
      %p108 = scmp.eq.s32.totalorder %s21, 0
      %p109 = por %p107, %p108
      %p110 = scmp.le.s32.totalorder 1, %s15
      %p111 = scmp.lt.s32.totalorder %s15, 3
      %p112 = pnand %p110, %p111
      %p113 = pneg %p112
      // Predicated region
      $region9: #{tpu_custom_call.1} parent=5 // pred_check
        _
      $region10: #{tpu_custom_call.1} parent=5 // pred_check_branch
        %115 = sbr.rel (%p112) target = $region12
      $region11: #{tpu_custom_call.1} parent=5 // pred_region
        %s116 = ssub.s32 %s15, 1
        // Predicated region
        $region13: #{tpu_custom_call.1} parent=11 // pred_check
          %p117 = pneg %p76
        $region14: #{tpu_custom_call.1} parent=11 // pred_check_branch
          %119 = sbr.rel (%p117) target = $region16
        $region15: #{tpu_custom_call.1} parent=11 // pred_region
          %s121 = ssub.s32 16, 16
          %122 = vsyncadd [#allocation7], %s121
          %s124 = sshll.u32 %s1, 4
          %s125 = int_to_ptr.vmem [resolvable:$true] %s124
          %127 = dma.vmem_to_smem %s125, 16, [#allocation8], [#allocation7]
        $region16: #{tpu_custom_call.1} parent=11 // pred_fallthru
          _
      $region12: #{tpu_custom_call.1} parent=5 // pred_fallthru
        _
      %p128 = scmp.lt.s32.totalorder %s15, 2
      // Predicated region
      $region17: #{tpu_custom_call.1} parent=5 // pred_check
        %p129 = pneg %p128
      $region18: #{tpu_custom_call.1} parent=5 // pred_check_branch
        %131 = sbr.rel (%p129) target = $region20
      $region19: #{tpu_custom_call.1} parent=5 // pred_region
        // Predicated region
        $region21: #{tpu_custom_call.1} parent=19 // pred_check
          %p132 = pneg %p49
        $region22: #{tpu_custom_call.1} parent=19 // pred_check_branch
          %134 = sbr.rel (%p132) target = $region24
        $region23: #{tpu_custom_call.1} parent=19 // pred_region
          %s135 = sand.u32 %s39, 1
          %s136 = scalar_lea.sflag [#allocation5], %s135
          %s137 = sand.u32 %s39, 1
          %s138 = smul.addr %s137, 8
          %s139 = scalar_lea.vmem [#allocation4], %s138
          %s141 = ssub.s32 128, 128
          %142 = vsyncadd %s136, %s141
          %s143 = smul.addr %s23, 2
          %s144 = smul.addr %s22, 2
          %s145 = sadd.s32 %s143, %s144
          %s146 = smul.addr %s145, 64
          %s147 = scalar_lea.hbm %s0, %s146
          %s149 = sshll.u32 %s139, 4
          %s150 = int_to_ptr.vmem [resolvable:$true] %s149
          %152 = dma.hbm_to_vmem [thread:$0]  %s147, 128, %s150, %s136
        $region24: #{tpu_custom_call.1} parent=19 // pred_fallthru
          _
      $region20: #{tpu_custom_call.1} parent=5 // pred_fallthru
        _
      %p153 = scmp.le.s32.totalorder 1, %s15
      %p154 = scmp.lt.s32.totalorder %s15, 3
      %p155 = pnand %p153, %p154
      %p156 = pneg %p155
      // Predicated region
      $region25: #{tpu_custom_call.1} parent=5 // pred_check
        _
      $region26: #{tpu_custom_call.1} parent=5 // pred_check_branch
        %158 = sbr.rel (%p155) target = $region28
      $region27: #{tpu_custom_call.1} parent=5 // pred_region
        %s159 = ssub.s32 %s15, 1
        %s160 = sand.u32 %s42, 1
        %s161 = scalar_lea.sflag [#allocation5], %s160
        %s162 = sand.u32 %s42, 1
        %s163 = smul.addr %s162, 8
        %s164 = scalar_lea.vmem [#allocation4], %s163
        // Predicated region
        $region29: #{tpu_custom_call.1} parent=27 // pred_check
          %p165 = pneg %p55
        $region30: #{tpu_custom_call.1} parent=27 // pred_check_branch
          %167 = sbr.rel (%p165) target = $region32
        $region31: #{tpu_custom_call.1} parent=27 // pred_region
          %168 = dma.done %s161, 128
        $region32: #{tpu_custom_call.1} parent=27 // pred_fallthru
          _
        // Predicated region
        $region33: #{tpu_custom_call.1} parent=27 // pred_check
          %p169 = pneg %p76
        $region34: #{tpu_custom_call.1} parent=27 // pred_check_branch
          %171 = sbr.rel (%p169) target = $region36
        $region35: #{tpu_custom_call.1} parent=27 // pred_region
          %172 = dma.done [#allocation7], 16
        $region36: #{tpu_custom_call.1} parent=27 // pred_fallthru
          _
        %173 = sfence
        %s174 = sand.u32 %s42, 1
        %s175 = scalar_lea.sflag [#allocation5], %s174
        %s176 = sand.u32 %s42, 1
        %s177 = smul.addr %s176, 8
        %s178 = scalar_lea.vmem [#allocation4], %s177
        %p179 = pneg %p55
        %p180 = pneg %p52
        %p181 = pneg %p76
        %p182 = pneg %p73
        %p183 = pneg %p102
        %p184 = pneg %p99
        %s185 = sand.u32 %s89, 1
        %s186 = scalar_lea.sflag [#allocation6], %s185
        %s187 = sand.u32 %s89, 1
        %s188 = smul.addr %s187, 2
        %s189 = scalar_lea.vmem [#allocation9], %s188
        %p190 = scmp.eq.s32.totalorder %s25, 0
        // Predicated region
        $region37: #{tpu_custom_call.1} parent=27 // pred_check
          %p191 = pneg %p190
        $region38: #{tpu_custom_call.1} parent=27 // pred_check_branch
          %193 = sbr.rel (%p191) target = $region40
        $region39: #{tpu_custom_call.1} parent=27 // pred_region
          %194 = vst [vmem:[#allocation2] sm:$0xff] 0.0
          %195 = vst [vmem:[#allocation2 + $0x8] sm:$0xff] 0.0
          %196 = vst [vmem:[#allocation3] sm:$0xff] -inf
          %197 = vst [vmem:[#allocation3 + $0x8] sm:$0xff] -inf
        $region40: #{tpu_custom_call.1} parent=27 // pred_fallthru
          _
        %v198 = vld [vmem:[%s164] sm:$0xff]
        %v200 = vcombine.high %v198, %v198
        %vm202 = vcmask 1043456
        %v203 = vsel %vm202, %v198, 0.0
        %v204 = vsel %vm202, %v200, 0.0
        %v205 = vsel %vm202, %v198, -inf
        %v206 = vsel %vm202, %v200, -inf
        %v207 = vld [vmem:[#allocation2] sm:$0xff]
        %v208 = vld [vmem:[#allocation2 + $0x8] sm:$0xff]
        %v209 = vadd.f32 %v207, %v203
        %v210 = vadd.f32 %v208, %v204
        %211 = vst [vmem:[#allocation2] sm:$0xff] %v209
        %212 = vst [vmem:[#allocation2 + $0x8] sm:$0xff] %v210
        %v213 = vld [vmem:[#allocation3] sm:$0xff]
        %v214 = vld [vmem:[#allocation3 + $0x8] sm:$0xff]
        %v215 = vmax.f32 %v213, %v205
        %v216 = vmax.f32 %v214, %v206
        %217 = vst [vmem:[#allocation3] sm:$0xff] %v215
        %218 = vst [vmem:[#allocation3 + $0x8] sm:$0xff] %v216
        // Predicated region
        $region41: #{tpu_custom_call.1} parent=27 // pred_check
          %p219 = pneg %p190
        $region42: #{tpu_custom_call.1} parent=27 // pred_check_branch
          %221 = sbr.rel (%p219) target = $region44
        $region43: #{tpu_custom_call.1} parent=27 // pred_region
          %v222 = vld [vmem:[#allocation2] sm:$0xff]
          %v223 = vld [vmem:[#allocation2 + $0x8] sm:$0xff]
          %v224 = vrot.slane %v222, 4
          %v225 = vadd.f32 %v222, %v224
          %v226 = vrot.slane %v225, 2
          %v227 = vadd.f32 %v225, %v226
          %v228 = vrot.slane %v227, 1
          %v229 = vadd.f32 %v227, %v228
          %v230 = vrot.slane %v223, 4
          %v231 = vadd.f32 %v223, %v230
          %v232 = vrot.slane %v231, 2
          %v233 = vadd.f32 %v231, %v232
          %v234 = vrot.slane %v233, 1
          %v235 = vadd.f32 %v233, %v234
          %v236 = vmul.f32 %v229, 0.25
          %v237 = vmul.f32 %v235, 0.25
          %v238 = vld [vmem:[#allocation3] sm:$0xff]
          %v239 = vld [vmem:[#allocation3 + $0x8] sm:$0xff]
          %v240 = vrot.slane %v238, 4
          %v241 = vmax.f32 %v238, %v240
          %v242 = vrot.slane %v241, 2
          %v243 = vmax.f32 %v241, %v242
          %v244 = vrot.slane %v243, 1
          %v245 = vmax.f32 %v243, %v244
          %v246 = vrot.slane %v239, 4
          %v247 = vmax.f32 %v239, %v246
          %v248 = vrot.slane %v247, 2
          %v249 = vmax.f32 %v247, %v248
          %v250 = vrot.slane %v249, 1
          %v251 = vmax.f32 %v249, %v250
          %vm252 = vcmask 1040384
          %v253 = vsel %vm252, %v236, %v245
          %v254 = vsel %vm252, %v237, %v251
          %s255 = sld [smem:[#allocation8]]
          %s256 = sld [smem:[#allocation8 + $0x1]]
          %s257 = sld [smem:[#allocation8 + $0x2]]
          %s258 = sld [smem:[#allocation8 + $0x3]]
          %s259 = sld [smem:[#allocation8 + $0x4]]
          %s260 = sld [smem:[#allocation8 + $0x5]]
          %s261 = sld [smem:[#allocation8 + $0x6]]
          %s262 = sld [smem:[#allocation8 + $0x7]]
          %s263 = sld [smem:[#allocation8 + $0x8]]
          %s264 = sld [smem:[#allocation8 + $0x9]]
          %s265 = sld [smem:[#allocation8 + $0xa]]
          %s266 = sld [smem:[#allocation8 + $0xb]]
          %s267 = sld [smem:[#allocation8 + $0xc]]
          %s268 = sld [smem:[#allocation8 + $0xd]]
          %s269 = sld [smem:[#allocation8 + $0xe]]
          %s270 = sld [smem:[#allocation8 + $0xf]]
          %s271 = sld [smem:[#allocation8 + $0x10]]
          %s272 = sld [smem:[#allocation8 + $0x11]]
          %s273 = sld [smem:[#allocation8 + $0x12]]
          %s274 = sld [smem:[#allocation8 + $0x13]]
          %s275 = sld [smem:[#allocation8 + $0x14]]
          %s276 = sld [smem:[#allocation8 + $0x15]]
          %s277 = sld [smem:[#allocation8 + $0x16]]
          %s278 = sld [smem:[#allocation8 + $0x17]]
          %s279 = sld [smem:[#allocation8 + $0x18]]
          %s280 = sld [smem:[#allocation8 + $0x19]]
          %s281 = sld [smem:[#allocation8 + $0x1a]]
          %s282 = sld [smem:[#allocation8 + $0x1b]]
          %s283 = sld [smem:[#allocation8 + $0x1c]]
          %s284 = sld [smem:[#allocation8 + $0x1d]]
          %s285 = sld [smem:[#allocation8 + $0x1e]]
          %s286 = sld [smem:[#allocation8 + $0x1f]]
          %s287 = sld [smem:[#allocation8 + $0x20]]
          %s288 = sld [smem:[#allocation8 + $0x21]]
          %s289 = sld [smem:[#allocation8 + $0x22]]
          %s290 = sld [smem:[#allocation8 + $0x23]]
          %s291 = sld [smem:[#allocation8 + $0x24]]
          %s292 = sld [smem:[#allocation8 + $0x25]]
          %s293 = sld [smem:[#allocation8 + $0x26]]
          %s294 = sld [smem:[#allocation8 + $0x27]]
          %s295 = sld [smem:[#allocation8 + $0x28]]
          %s296 = sld [smem:[#allocation8 + $0x29]]
          %s297 = sld [smem:[#allocation8 + $0x2a]]
          %s298 = sld [smem:[#allocation8 + $0x2b]]
          %s299 = sld [smem:[#allocation8 + $0x2c]]
          %s300 = sld [smem:[#allocation8 + $0x2d]]
          %s301 = sld [smem:[#allocation8 + $0x2e]]
          %s302 = sld [smem:[#allocation8 + $0x2f]]
          %s303 = sld [smem:[#allocation8 + $0x30]]
          %s304 = sld [smem:[#allocation8 + $0x31]]
          %s305 = sld [smem:[#allocation8 + $0x32]]
          %s306 = sld [smem:[#allocation8 + $0x33]]
          %s307 = sld [smem:[#allocation8 + $0x34]]
          %s308 = sld [smem:[#allocation8 + $0x35]]
          %s309 = sld [smem:[#allocation8 + $0x36]]
          %s310 = sld [smem:[#allocation8 + $0x37]]
          %s311 = sld [smem:[#allocation8 + $0x38]]
          %s312 = sld [smem:[#allocation8 + $0x39]]
          %s313 = sld [smem:[#allocation8 + $0x3a]]
          %s314 = sld [smem:[#allocation8 + $0x3b]]
          %s315 = sld [smem:[#allocation8 + $0x3c]]
          %s316 = sld [smem:[#allocation8 + $0x3d]]
          %s317 = sld [smem:[#allocation8 + $0x3e]]
          %s318 = sld [smem:[#allocation8 + $0x3f]]
          %s319 = sld [smem:[#allocation8 + $0x40]]
          %s320 = sld [smem:[#allocation8 + $0x41]]
          %s321 = sld [smem:[#allocation8 + $0x42]]
          %s322 = sld [smem:[#allocation8 + $0x43]]
          %s323 = sld [smem:[#allocation8 + $0x44]]
          %s324 = sld [smem:[#allocation8 + $0x45]]
          %s325 = sld [smem:[#allocation8 + $0x46]]
          %s326 = sld [smem:[#allocation8 + $0x47]]
          %s327 = sld [smem:[#allocation8 + $0x48]]
          %s328 = sld [smem:[#allocation8 + $0x49]]
          %s329 = sld [smem:[#allocation8 + $0x4a]]
          %s330 = sld [smem:[#allocation8 + $0x4b]]
          %s331 = sld [smem:[#allocation8 + $0x4c]]
          %s332 = sld [smem:[#allocation8 + $0x4d]]
          %s333 = sld [smem:[#allocation8 + $0x4e]]
          %s334 = sld [smem:[#allocation8 + $0x4f]]
          %s335 = sld [smem:[#allocation8 + $0x50]]
          %s336 = sld [smem:[#allocation8 + $0x51]]
          %s337 = sld [smem:[#allocation8 + $0x52]]
          %s338 = sld [smem:[#allocation8 + $0x53]]
          %s339 = sld [smem:[#allocation8 + $0x54]]
          %s340 = sld [smem:[#allocation8 + $0x55]]
          %s341 = sld [smem:[#allocation8 + $0x56]]
          %s342 = sld [smem:[#allocation8 + $0x57]]
          %s343 = sld [smem:[#allocation8 + $0x58]]
          %s344 = sld [smem:[#allocation8 + $0x59]]
          %s345 = sld [smem:[#allocation8 + $0x5a]]
          %s346 = sld [smem:[#allocation8 + $0x5b]]
          %s347 = sld [smem:[#allocation8 + $0x5c]]
          %s348 = sld [smem:[#allocation8 + $0x5d]]
          %s349 = sld [smem:[#allocation8 + $0x5e]]
          %s350 = sld [smem:[#allocation8 + $0x5f]]
          %s351 = sld [smem:[#allocation8 + $0x60]]
          %s352 = sld [smem:[#allocation8 + $0x61]]
          %v353 = vlaneseq
          %v354 = vshrl.u32 %v353, 7
          %v355 = vlaneseq
          %v356 = vand.u32 %v355, 127
          %v357 = vadd.s32 %v356, 128
          %vm358 = vcmp.lt.s32.totalorder %v356, 0
          %v359 = vsub.s32 0, %v356
          %v360 = vsel %vm358, %v359, %v356
          %v361 = vshrl.u32 %v360, 4
          %v362 = vand.u32 %v360, 15
          %v363 = vsub.s32 0, %v362
          %v364 = vsel %vm358, %v363, %v362
          %vm365 = vcmp.lt.s32.totalorder %v357, 0
          %v366 = vsub.s32 0, %v357
          %v367 = vsel %vm365, %v366, %v357
          %v368 = vshrl.u32 %v367, 4
          %v369 = vand.u32 %v367, 15
          %v370 = vsub.s32 0, %v369
          %v371 = vsel %vm365, %v370, %v369
          %vm372 = vcmp.ne.s32.totalorder %v364, 0
          %vm373 = vcmp.ne.s32.totalorder %v371, 0
          %vm374 = vcmp.lt.s32.totalorder %v364, 0
          %vm375 = vcmp.lt.s32.totalorder %v371, 0
          %vm376 = vmand %vm374, %vm372
          %vm377 = vmand %vm375, %vm373
          %v378 = vadd.s32 %v364, 16
          %v379 = vadd.s32 %v371, 16
          %v380 = vsel %vm376, %v378, %v364
          %v381 = vsel %vm377, %v379, %v371
          %v382 = vadd.s32 %v356, 4294967248
          %v383 = vadd.s32 %v357, 4294967248
          %vm384 = vcmp.ge.s32.totalorder %v382, 0
          %vm385 = vcmp.ge.s32.totalorder %v383, 0
          %vm386 = vcmp.lt.s32.totalorder %v382, 256
          %vm387 = vcmp.lt.s32.totalorder %v383, 256
          %vm388 = vmand %vm384, %vm386
          %vm389 = vmand %vm385, %vm387
          %390 = vrot.lane.b32.xlu0 %v253, 51
          %v391 = vpop.permute.xlu0 %390
          %392 = vrot.lane.b32.xlu0 %v254, 51
          %v393 = vpop.permute.xlu0 %392
          %vm394 = vcmp.lt.s32.totalorder %v356, 51
          %v395 = vsel %vm394, %v391, %v393
          %v396 = vsel %vm394, %v393, %v391
          %v397 = vadd.s32 %v380, 4294967293
          %v398 = vadd.s32 %v381, 4294967293
          %vm399 = vcmp.ge.s32.totalorder %v397, 0
          %vm400 = vcmp.ge.s32.totalorder %v398, 0
          %vm401 = vcmp.lt.s32.totalorder %v397, 16
          %vm402 = vcmp.lt.s32.totalorder %v398, 16
          %vm403 = vmand %vm399, %vm401
          %vm404 = vmand %vm400, %vm402
          %vm405 = vmand %vm388, %vm403
          %vm406 = vmand %vm389, %vm404
          %v407 = vsel %vm405, %v396, 0.0
          %v408 = vsel %vm406, %v395, 0.0
          %vm409 = vcmp.eq.s32.totalorder %v354, 0
          %v410 = vstv %s255
          %v411 = vstv %s304
          %v412 = vsel %vm409, %v410, %v411
          %v413 = vmul.f32 %v407, %v412
          %v414 = vmul.f32 %v408, %v412
          %v415 = vadd.f32 %v413, 0.0
          %v416 = vadd.f32 %v414, 0.0
          %417 = vrot.lane.b32.xlu0 %v253, 50
          %v418 = vpop.permute.xlu0 %417
          %419 = vrot.lane.b32.xlu0 %v254, 50
          %v420 = vpop.permute.xlu0 %419
          %vm421 = vcmp.lt.s32.totalorder %v356, 50
          %v422 = vsel %vm421, %v418, %v420
          %v423 = vsel %vm421, %v420, %v418
          %v424 = vadd.s32 %v380, 4294967294
          %v425 = vadd.s32 %v381, 4294967294
          %vm426 = vcmp.ge.s32.totalorder %v424, 0
          %vm427 = vcmp.ge.s32.totalorder %v425, 0
          %vm428 = vcmp.lt.s32.totalorder %v424, 16
          %vm429 = vcmp.lt.s32.totalorder %v425, 16
          %vm430 = vmand %vm426, %vm428
          %vm431 = vmand %vm427, %vm429
          %vm432 = vmand %vm388, %vm430
          %vm433 = vmand %vm389, %vm431
          %v434 = vsel %vm432, %v423, 0.0
          %v435 = vsel %vm433, %v422, 0.0
          %v436 = vstv %s256
          %v437 = vstv %s305
          %v438 = vsel %vm409, %v436, %v437
          %v439 = vmul.f32 %v434, %v438
          %v440 = vmul.f32 %v435, %v438
          %v441 = vadd.f32 %v415, %v439
          %v442 = vadd.f32 %v416, %v440
          %443 = vrot.lane.b32.xlu0 %v253, 49
          %v444 = vpop.permute.xlu0 %443
          %445 = vrot.lane.b32.xlu0 %v254, 49
          %v446 = vpop.permute.xlu0 %445
          %vm447 = vcmp.lt.s32.totalorder %v356, 49
          %v448 = vsel %vm447, %v444, %v446
          %v449 = vsel %vm447, %v446, %v444
          %v450 = vadd.s32 %v380, 4294967295
          %v451 = vadd.s32 %v381, 4294967295
          %vm452 = vcmp.ge.s32.totalorder %v450, 0
          %vm453 = vcmp.ge.s32.totalorder %v451, 0
          %vm454 = vcmp.lt.s32.totalorder %v450, 16
          %vm455 = vcmp.lt.s32.totalorder %v451, 16
          %vm456 = vmand %vm452, %vm454
          %vm457 = vmand %vm453, %vm455
          %vm458 = vmand %vm388, %vm456
          %vm459 = vmand %vm389, %vm457
          %v460 = vsel %vm458, %v449, 0.0
          %v461 = vsel %vm459, %v448, 0.0
          %v462 = vstv %s257
          %v463 = vstv %s306
          %v464 = vsel %vm409, %v462, %v463
          %v465 = vmul.f32 %v460, %v464
          %v466 = vmul.f32 %v461, %v464
          %v467 = vadd.f32 %v441, %v465
          %v468 = vadd.f32 %v442, %v466
          %469 = vrot.lane.b32.xlu0 %v253, 48
          %v470 = vpop.permute.xlu0 %469
          %471 = vrot.lane.b32.xlu0 %v254, 48
          %v472 = vpop.permute.xlu0 %471
          %vm473 = vcmp.lt.s32.totalorder %v356, 48
          %v474 = vsel %vm473, %v470, %v472
          %v475 = vsel %vm473, %v472, %v470
          %v476 = vsel %vm388, %v475, 0.0
          %v477 = vsel %vm389, %v474, 0.0
          %v478 = vstv %s258
          %v479 = vstv %s307
          %v480 = vsel %vm409, %v478, %v479
          %v481 = vmul.f32 %v476, %v480
          %v482 = vmul.f32 %v477, %v480
          %v483 = vadd.f32 %v467, %v481
          %v484 = vadd.f32 %v468, %v482
          %485 = vrot.lane.b32.xlu0 %v253, 47
          %v486 = vpop.permute.xlu0 %485
          %487 = vrot.lane.b32.xlu0 %v254, 47
          %v488 = vpop.permute.xlu0 %487
          %vm489 = vcmp.lt.s32.totalorder %v356, 47
          %v490 = vsel %vm489, %v486, %v488
          %v491 = vsel %vm489, %v488, %v486
          %v492 = vadd.s32 %v380, 1
          %v493 = vadd.s32 %v381, 1
          %vm494 = vcmp.ge.s32.totalorder %v492, 0
          %vm495 = vcmp.ge.s32.totalorder %v493, 0
          %vm496 = vcmp.lt.s32.totalorder %v492, 16
          %vm497 = vcmp.lt.s32.totalorder %v493, 16
          %vm498 = vmand %vm494, %vm496
          %vm499 = vmand %vm495, %vm497
          %vm500 = vmand %vm388, %vm498
          %vm501 = vmand %vm389, %vm499
          %v502 = vsel %vm500, %v491, 0.0
          %v503 = vsel %vm501, %v490, 0.0
          %v504 = vstv %s259
          %v505 = vstv %s308
          %v506 = vsel %vm409, %v504, %v505
          %v507 = vmul.f32 %v502, %v506
          %v508 = vmul.f32 %v503, %v506
          %v509 = vadd.f32 %v483, %v507
          %v510 = vadd.f32 %v484, %v508
          %511 = vrot.lane.b32.xlu0 %v253, 46
          %v512 = vpop.permute.xlu0 %511
          %513 = vrot.lane.b32.xlu0 %v254, 46
          %v514 = vpop.permute.xlu0 %513
          %vm515 = vcmp.lt.s32.totalorder %v356, 46
          %v516 = vsel %vm515, %v512, %v514
          %v517 = vsel %vm515, %v514, %v512
          %v518 = vadd.s32 %v380, 2
          %v519 = vadd.s32 %v381, 2
          %vm520 = vcmp.ge.s32.totalorder %v518, 0
          %vm521 = vcmp.ge.s32.totalorder %v519, 0
          %vm522 = vcmp.lt.s32.totalorder %v518, 16
          %vm523 = vcmp.lt.s32.totalorder %v519, 16
          %vm524 = vmand %vm520, %vm522
          %vm525 = vmand %vm521, %vm523
          %vm526 = vmand %vm388, %vm524
          %vm527 = vmand %vm389, %vm525
          %v528 = vsel %vm526, %v517, 0.0
          %v529 = vsel %vm527, %v516, 0.0
          %v530 = vstv %s260
          %v531 = vstv %s309
          %v532 = vsel %vm409, %v530, %v531
          %v533 = vmul.f32 %v528, %v532
          %v534 = vmul.f32 %v529, %v532
          %v535 = vadd.f32 %v509, %v533
          %v536 = vadd.f32 %v510, %v534
          %537 = vrot.lane.b32.xlu0 %v253, 45
          %v538 = vpop.permute.xlu0 %537
          %539 = vrot.lane.b32.xlu0 %v254, 45
          %v540 = vpop.permute.xlu0 %539
          %vm541 = vcmp.lt.s32.totalorder %v356, 45
          %v542 = vsel %vm541, %v538, %v540
          %v543 = vsel %vm541, %v540, %v538
          %v544 = vadd.s32 %v380, 3
          %v545 = vadd.s32 %v381, 3
          %vm546 = vcmp.ge.s32.totalorder %v544, 0
          %vm547 = vcmp.ge.s32.totalorder %v545, 0
          %vm548 = vcmp.lt.s32.totalorder %v544, 16
          %vm549 = vcmp.lt.s32.totalorder %v545, 16
          %vm550 = vmand %vm546, %vm548
          %vm551 = vmand %vm547, %vm549
          %vm552 = vmand %vm388, %vm550
          %vm553 = vmand %vm389, %vm551
          %v554 = vsel %vm552, %v543, 0.0
          %v555 = vsel %vm553, %v542, 0.0
          %v556 = vstv %s261
          %v557 = vstv %s310
          %v558 = vsel %vm409, %v556, %v557
          %v559 = vmul.f32 %v554, %v558
          %v560 = vmul.f32 %v555, %v558
          %v561 = vadd.f32 %v535, %v559
          %v562 = vadd.f32 %v536, %v560
          %v563 = vadd.s32 %v356, 4294967264
          %v564 = vadd.s32 %v357, 4294967264
          %vm565 = vcmp.ge.s32.totalorder %v563, 0
          %vm566 = vcmp.ge.s32.totalorder %v564, 0
          %vm567 = vcmp.lt.s32.totalorder %v563, 256
          %vm568 = vcmp.lt.s32.totalorder %v564, 256
          %vm569 = vmand %vm565, %vm567
          %vm570 = vmand %vm566, %vm568
          %571 = vrot.lane.b32.xlu0 %v253, 35
          %v572 = vpop.permute.xlu0 %571
          %573 = vrot.lane.b32.xlu0 %v254, 35
          %v574 = vpop.permute.xlu0 %573
          %vm575 = vcmp.lt.s32.totalorder %v356, 35
          %v576 = vsel %vm575, %v572, %v574
          %v577 = vsel %vm575, %v574, %v572
          %vm578 = vmand %vm569, %vm403
          %vm579 = vmand %vm570, %vm404
          %v580 = vsel %vm578, %v577, 0.0
          %v581 = vsel %vm579, %v576, 0.0
          %v582 = vstv %s262
          %v583 = vstv %s311
          %v584 = vsel %vm409, %v582, %v583
          %v585 = vmul.f32 %v580, %v584
          %v586 = vmul.f32 %v581, %v584
          %v587 = vadd.f32 %v561, %v585
          %v588 = vadd.f32 %v562, %v586
          %589 = vrot.lane.b32.xlu0 %v253, 34
          %v590 = vpop.permute.xlu0 %589
          %591 = vrot.lane.b32.xlu0 %v254, 34
          %v592 = vpop.permute.xlu0 %591
          %vm593 = vcmp.lt.s32.totalorder %v356, 34
          %v594 = vsel %vm593, %v590, %v592
          %v595 = vsel %vm593, %v592, %v590
          %vm596 = vmand %vm569, %vm430
          %vm597 = vmand %vm570, %vm431
          %v598 = vsel %vm596, %v595, 0.0
          %v599 = vsel %vm597, %v594, 0.0
          %v600 = vstv %s263
          %v601 = vstv %s312
          %v602 = vsel %vm409, %v600, %v601
          %v603 = vmul.f32 %v598, %v602
          %v604 = vmul.f32 %v599, %v602
          %v605 = vadd.f32 %v587, %v603
          %v606 = vadd.f32 %v588, %v604
          %607 = vrot.lane.b32.xlu0 %v253, 33
          %v608 = vpop.permute.xlu0 %607
          %609 = vrot.lane.b32.xlu0 %v254, 33
          %v610 = vpop.permute.xlu0 %609
          %vm611 = vcmp.lt.s32.totalorder %v356, 33
          %v612 = vsel %vm611, %v608, %v610
          %v613 = vsel %vm611, %v610, %v608
          %vm614 = vmand %vm569, %vm456
          %vm615 = vmand %vm570, %vm457
          %v616 = vsel %vm614, %v613, 0.0
          %v617 = vsel %vm615, %v612, 0.0
          %v618 = vstv %s264
          %v619 = vstv %s313
          %v620 = vsel %vm409, %v618, %v619
          %v621 = vmul.f32 %v616, %v620
          %v622 = vmul.f32 %v617, %v620
          %v623 = vadd.f32 %v605, %v621
          %v624 = vadd.f32 %v606, %v622
          %625 = vrot.lane.b32.xlu0 %v253, 32
          %v626 = vpop.permute.xlu0 %625
          %627 = vrot.lane.b32.xlu0 %v254, 32
          %v628 = vpop.permute.xlu0 %627
          %vm629 = vcmp.lt.s32.totalorder %v356, 32
          %v630 = vsel %vm629, %v626, %v628
          %v631 = vsel %vm629, %v628, %v626
          %v632 = vsel %vm569, %v631, 0.0
          %v633 = vsel %vm570, %v630, 0.0
          %v634 = vstv %s265
          %v635 = vstv %s314
          %v636 = vsel %vm409, %v634, %v635
          %v637 = vmul.f32 %v632, %v636
          %v638 = vmul.f32 %v633, %v636
          %v639 = vadd.f32 %v623, %v637
          %v640 = vadd.f32 %v624, %v638
          %641 = vrot.lane.b32.xlu0 %v253, 31
          %v642 = vpop.permute.xlu0 %641
          %643 = vrot.lane.b32.xlu0 %v254, 31
          %v644 = vpop.permute.xlu0 %643
          %vm645 = vcmp.lt.s32.totalorder %v356, 31
          %v646 = vsel %vm645, %v642, %v644
          %v647 = vsel %vm645, %v644, %v642
          %vm648 = vmand %vm569, %vm498
          %vm649 = vmand %vm570, %vm499
          %v650 = vsel %vm648, %v647, 0.0
          %v651 = vsel %vm649, %v646, 0.0
          %v652 = vstv %s266
          %v653 = vstv %s315
          %v654 = vsel %vm409, %v652, %v653
          %v655 = vmul.f32 %v650, %v654
          %v656 = vmul.f32 %v651, %v654
          %v657 = vadd.f32 %v639, %v655
          %v658 = vadd.f32 %v640, %v656
          %659 = vrot.lane.b32.xlu0 %v253, 30
          %v660 = vpop.permute.xlu0 %659
          %661 = vrot.lane.b32.xlu0 %v254, 30
          %v662 = vpop.permute.xlu0 %661
          %vm663 = vcmp.lt.s32.totalorder %v356, 30
          %v664 = vsel %vm663, %v660, %v662
          %v665 = vsel %vm663, %v662, %v660
          %vm666 = vmand %vm569, %vm524
          %vm667 = vmand %vm570, %vm525
          %v668 = vsel %vm666, %v665, 0.0
          %v669 = vsel %vm667, %v664, 0.0
          %v670 = vstv %s267
          %v671 = vstv %s316
          %v672 = vsel %vm409, %v670, %v671
          %v673 = vmul.f32 %v668, %v672
          %v674 = vmul.f32 %v669, %v672
          %v675 = vadd.f32 %v657, %v673
          %v676 = vadd.f32 %v658, %v674
          %677 = vrot.lane.b32.xlu0 %v253, 29
          %v678 = vpop.permute.xlu0 %677
          %679 = vrot.lane.b32.xlu0 %v254, 29
          %v680 = vpop.permute.xlu0 %679
          %vm681 = vcmp.lt.s32.totalorder %v356, 29
          %v682 = vsel %vm681, %v678, %v680
          %v683 = vsel %vm681, %v680, %v678
          %vm684 = vmand %vm569, %vm550
          %vm685 = vmand %vm570, %vm551
          %v686 = vsel %vm684, %v683, 0.0
          %v687 = vsel %vm685, %v682, 0.0
          %v688 = vstv %s268
          %v689 = vstv %s317
          %v690 = vsel %vm409, %v688, %v689
          %v691 = vmul.f32 %v686, %v690
          %v692 = vmul.f32 %v687, %v690
          %v693 = vadd.f32 %v675, %v691
          %v694 = vadd.f32 %v676, %v692
          %v695 = vadd.s32 %v356, 4294967280
          %v696 = vadd.s32 %v357, 4294967280
          %vm697 = vcmp.ge.s32.totalorder %v695, 0
          %vm698 = vcmp.ge.s32.totalorder %v696, 0
          %vm699 = vcmp.lt.s32.totalorder %v695, 256
          %vm700 = vcmp.lt.s32.totalorder %v696, 256
          %vm701 = vmand %vm697, %vm699
          %vm702 = vmand %vm698, %vm700
          %703 = vrot.lane.b32.xlu0 %v253, 19
          %v704 = vpop.permute.xlu0 %703
          %705 = vrot.lane.b32.xlu0 %v254, 19
          %v706 = vpop.permute.xlu0 %705
          %vm707 = vcmp.lt.s32.totalorder %v356, 19
          %v708 = vsel %vm707, %v704, %v706
          %v709 = vsel %vm707, %v706, %v704
          %vm710 = vmand %vm701, %vm403
          %vm711 = vmand %vm702, %vm404
          %v712 = vsel %vm710, %v709, 0.0
          %v713 = vsel %vm711, %v708, 0.0
          %v714 = vstv %s269
          %v715 = vstv %s318
          %v716 = vsel %vm409, %v714, %v715
          %v717 = vmul.f32 %v712, %v716
          %v718 = vmul.f32 %v713, %v716
          %v719 = vadd.f32 %v693, %v717
          %v720 = vadd.f32 %v694, %v718
          %721 = vrot.lane.b32.xlu0 %v253, 18
          %v722 = vpop.permute.xlu0 %721
          %723 = vrot.lane.b32.xlu0 %v254, 18
          %v724 = vpop.permute.xlu0 %723
          %vm725 = vcmp.lt.s32.totalorder %v356, 18
          %v726 = vsel %vm725, %v722, %v724
          %v727 = vsel %vm725, %v724, %v722
          %vm728 = vmand %vm701, %vm430
          %vm729 = vmand %vm702, %vm431
          %v730 = vsel %vm728, %v727, 0.0
          %v731 = vsel %vm729, %v726, 0.0
          %v732 = vstv %s270
          %v733 = vstv %s319
          %v734 = vsel %vm409, %v732, %v733
          %v735 = vmul.f32 %v730, %v734
          %v736 = vmul.f32 %v731, %v734
          %v737 = vadd.f32 %v719, %v735
          %v738 = vadd.f32 %v720, %v736
          %739 = vrot.lane.b32.xlu0 %v253, 17
          %v740 = vpop.permute.xlu0 %739
          %741 = vrot.lane.b32.xlu0 %v254, 17
          %v742 = vpop.permute.xlu0 %741
          %vm743 = vcmp.lt.s32.totalorder %v356, 17
          %v744 = vsel %vm743, %v740, %v742
          %v745 = vsel %vm743, %v742, %v740
          %vm746 = vmand %vm701, %vm456
          %vm747 = vmand %vm702, %vm457
          %v748 = vsel %vm746, %v745, 0.0
          %v749 = vsel %vm747, %v744, 0.0
          %v750 = vstv %s271
          %v751 = vstv %s320
          %v752 = vsel %vm409, %v750, %v751
          %v753 = vmul.f32 %v748, %v752
          %v754 = vmul.f32 %v749, %v752
          %v755 = vadd.f32 %v737, %v753
          %v756 = vadd.f32 %v738, %v754
          %757 = vrot.lane.b32.xlu0 %v253, 16
          %v758 = vpop.permute.xlu0 %757
          %759 = vrot.lane.b32.xlu0 %v254, 16
          %v760 = vpop.permute.xlu0 %759
          %vm761 = vcmp.lt.s32.totalorder %v356, 16
          %v762 = vsel %vm761, %v758, %v760
          %v763 = vsel %vm761, %v760, %v758
          %v764 = vsel %vm701, %v763, 0.0
          %v765 = vsel %vm702, %v762, 0.0
          %v766 = vstv %s272
          %v767 = vstv %s321
          %v768 = vsel %vm409, %v766, %v767
          %v769 = vmul.f32 %v764, %v768
          %v770 = vmul.f32 %v765, %v768
          %v771 = vadd.f32 %v755, %v769
          %v772 = vadd.f32 %v756, %v770
          %773 = vrot.lane.b32.xlu0 %v253, 15
          %v774 = vpop.permute.xlu0 %773
          %775 = vrot.lane.b32.xlu0 %v254, 15
          %v776 = vpop.permute.xlu0 %775
          %vm777 = vcmp.lt.s32.totalorder %v356, 15
          %v778 = vsel %vm777, %v774, %v776
          %v779 = vsel %vm777, %v776, %v774
          %vm780 = vmand %vm701, %vm498
          %vm781 = vmand %vm702, %vm499
          %v782 = vsel %vm780, %v779, 0.0
          %v783 = vsel %vm781, %v778, 0.0
          %v784 = vstv %s273
          %v785 = vstv %s322
          %v786 = vsel %vm409, %v784, %v785
          %v787 = vmul.f32 %v782, %v786
          %v788 = vmul.f32 %v783, %v786
          %v789 = vadd.f32 %v771, %v787
          %v790 = vadd.f32 %v772, %v788
          %791 = vrot.lane.b32.xlu0 %v253, 14
          %v792 = vpop.permute.xlu0 %791
          %793 = vrot.lane.b32.xlu0 %v254, 14
          %v794 = vpop.permute.xlu0 %793
          %vm795 = vcmp.lt.s32.totalorder %v356, 14
          %v796 = vsel %vm795, %v792, %v794
          %v797 = vsel %vm795, %v794, %v792
          %vm798 = vmand %vm701, %vm524
          %vm799 = vmand %vm702, %vm525
          %v800 = vsel %vm798, %v797, 0.0
          %v801 = vsel %vm799, %v796, 0.0
          %v802 = vstv %s274
          %v803 = vstv %s323
          %v804 = vsel %vm409, %v802, %v803
          %v805 = vmul.f32 %v800, %v804
          %v806 = vmul.f32 %v801, %v804
          %v807 = vadd.f32 %v789, %v805
          %v808 = vadd.f32 %v790, %v806
          %809 = vrot.lane.b32.xlu0 %v253, 13
          %v810 = vpop.permute.xlu0 %809
          %811 = vrot.lane.b32.xlu0 %v254, 13
          %v812 = vpop.permute.xlu0 %811
          %vm813 = vcmp.lt.s32.totalorder %v356, 13
          %v814 = vsel %vm813, %v810, %v812
          %v815 = vsel %vm813, %v812, %v810
          %vm816 = vmand %vm701, %vm550
          %vm817 = vmand %vm702, %vm551
          %v818 = vsel %vm816, %v815, 0.0
          %v819 = vsel %vm817, %v814, 0.0
          %v820 = vstv %s275
          %v821 = vstv %s324
          %v822 = vsel %vm409, %v820, %v821
          %v823 = vmul.f32 %v818, %v822
          %v824 = vmul.f32 %v819, %v822
          %v825 = vadd.f32 %v807, %v823
          %v826 = vadd.f32 %v808, %v824
          %827 = vrot.lane.b32.xlu0 %v253, 3
          %v828 = vpop.permute.xlu0 %827
          %829 = vrot.lane.b32.xlu0 %v254, 3
          %v830 = vpop.permute.xlu0 %829
          %vm831 = vcmp.lt.s32.totalorder %v356, 3
          %v832 = vsel %vm831, %v828, %v830
          %v833 = vsel %vm831, %v830, %v828
          %v834 = vsel %vm403, %v833, 0.0
          %v835 = vsel %vm404, %v832, 0.0
          %v836 = vstv %s276
          %v837 = vstv %s325
          %v838 = vsel %vm409, %v836, %v837
          %v839 = vmul.f32 %v834, %v838
          %v840 = vmul.f32 %v835, %v838
          %v841 = vadd.f32 %v825, %v839
          %v842 = vadd.f32 %v826, %v840
          %843 = vrot.lane.b32.xlu0 %v253, 2
          %v844 = vpop.permute.xlu0 %843
          %845 = vrot.lane.b32.xlu0 %v254, 2
          %v846 = vpop.permute.xlu0 %845
          %vm847 = vcmp.lt.s32.totalorder %v356, 2
          %v848 = vsel %vm847, %v844, %v846
          %v849 = vsel %vm847, %v846, %v844
          %v850 = vsel %vm430, %v849, 0.0
          %v851 = vsel %vm431, %v848, 0.0
          %v852 = vstv %s277
          %v853 = vstv %s326
          %v854 = vsel %vm409, %v852, %v853
          %v855 = vmul.f32 %v850, %v854
          %v856 = vmul.f32 %v851, %v854
          %v857 = vadd.f32 %v841, %v855
          %v858 = vadd.f32 %v842, %v856
          %859 = vrot.lane.b32.xlu0 %v253, 1
          %v860 = vpop.permute.xlu0 %859
          %861 = vrot.lane.b32.xlu0 %v254, 1
          %v862 = vpop.permute.xlu0 %861
          %vm863 = vcmp.lt.s32.totalorder %v356, 1
          %v864 = vsel %vm863, %v860, %v862
          %v865 = vsel %vm863, %v862, %v860
          %v866 = vsel %vm456, %v865, 0.0
          %v867 = vsel %vm457, %v864, 0.0
          %v868 = vstv %s278
          %v869 = vstv %s327
          %v870 = vsel %vm409, %v868, %v869
          %v871 = vmul.f32 %v866, %v870
          %v872 = vmul.f32 %v867, %v870
          %v873 = vadd.f32 %v857, %v871
          %v874 = vadd.f32 %v858, %v872
          %v875 = vstv %s279
          %v876 = vstv %s328
          %v877 = vsel %vm409, %v875, %v876
          %v878 = vmul.f32 %v253, %v877
          %v879 = vmul.f32 %v254, %v877
          %v880 = vadd.f32 %v873, %v878
          %v881 = vadd.f32 %v874, %v879
          %882 = vrot.lane.b32.xlu0 %v253, 127
          %v883 = vpop.permute.xlu0 %882
          %884 = vrot.lane.b32.xlu0 %v254, 127
          %v885 = vpop.permute.xlu0 %884
          %vm886 = vcmp.lt.s32.totalorder %v356, 127
          %v887 = vsel %vm886, %v883, %v885
          %v888 = vsel %vm886, %v885, %v883
          %v889 = vsel %vm498, %v887, 0.0
          %v890 = vsel %vm499, %v888, 0.0
          %v891 = vstv %s280
          %v892 = vstv %s329
          %v893 = vsel %vm409, %v891, %v892
          %v894 = vmul.f32 %v889, %v893
          %v895 = vmul.f32 %v890, %v893
          %v896 = vadd.f32 %v880, %v894
          %v897 = vadd.f32 %v881, %v895
          %898 = vrot.lane.b32.xlu0 %v253, 126
          %v899 = vpop.permute.xlu0 %898
          %900 = vrot.lane.b32.xlu0 %v254, 126
          %v901 = vpop.permute.xlu0 %900
          %vm902 = vcmp.lt.s32.totalorder %v356, 126
          %v903 = vsel %vm902, %v899, %v901
          %v904 = vsel %vm902, %v901, %v899
          %v905 = vsel %vm524, %v903, 0.0
          %v906 = vsel %vm525, %v904, 0.0
          %v907 = vstv %s281
          %v908 = vstv %s330
          %v909 = vsel %vm409, %v907, %v908
          %v910 = vmul.f32 %v905, %v909
          %v911 = vmul.f32 %v906, %v909
          %v912 = vadd.f32 %v896, %v910
          %v913 = vadd.f32 %v897, %v911
          %914 = vrot.lane.b32.xlu0 %v253, 125
          %v915 = vpop.permute.xlu0 %914
          %916 = vrot.lane.b32.xlu0 %v254, 125
          %v917 = vpop.permute.xlu0 %916
          %vm918 = vcmp.lt.s32.totalorder %v356, 125
          %v919 = vsel %vm918, %v915, %v917
          %v920 = vsel %vm918, %v917, %v915
          %v921 = vsel %vm550, %v919, 0.0
          %v922 = vsel %vm551, %v920, 0.0
          %v923 = vstv %s282
          %v924 = vstv %s331
          %v925 = vsel %vm409, %v923, %v924
          %v926 = vmul.f32 %v921, %v925
          %v927 = vmul.f32 %v922, %v925
          %v928 = vadd.f32 %v912, %v926
          %v929 = vadd.f32 %v913, %v927
          %v930 = vadd.s32 %v356, 16
          %v931 = vadd.s32 %v357, 16
          %vm932 = vcmp.ge.s32.totalorder %v930, 0
          %vm933 = vcmp.ge.s32.totalorder %v931, 0
          %vm934 = vcmp.lt.s32.totalorder %v930, 256
          %vm935 = vcmp.lt.s32.totalorder %v931, 256
          %vm936 = vmand %vm932, %vm934
          %vm937 = vmand %vm933, %vm935
          %938 = vrot.lane.b32.xlu0 %v253, 115
          %v939 = vpop.permute.xlu0 %938
          %940 = vrot.lane.b32.xlu0 %v254, 115
          %v941 = vpop.permute.xlu0 %940
          %vm942 = vcmp.lt.s32.totalorder %v356, 115
          %v943 = vsel %vm942, %v939, %v941
          %v944 = vsel %vm942, %v941, %v939
          %vm945 = vmand %vm936, %vm403
          %vm946 = vmand %vm937, %vm404
          %v947 = vsel %vm945, %v943, 0.0
          %v948 = vsel %vm946, %v944, 0.0
          %v949 = vstv %s283
          %v950 = vstv %s332
          %v951 = vsel %vm409, %v949, %v950
          %v952 = vmul.f32 %v947, %v951
          %v953 = vmul.f32 %v948, %v951
          %v954 = vadd.f32 %v928, %v952
          %v955 = vadd.f32 %v929, %v953
          %956 = vrot.lane.b32.xlu0 %v253, 114
          %v957 = vpop.permute.xlu0 %956
          %958 = vrot.lane.b32.xlu0 %v254, 114
          %v959 = vpop.permute.xlu0 %958
          %vm960 = vcmp.lt.s32.totalorder %v356, 114
          %v961 = vsel %vm960, %v957, %v959
          %v962 = vsel %vm960, %v959, %v957
          %vm963 = vmand %vm936, %vm430
          %vm964 = vmand %vm937, %vm431
          %v965 = vsel %vm963, %v961, 0.0
          %v966 = vsel %vm964, %v962, 0.0
          %v967 = vstv %s284
          %v968 = vstv %s333
          %v969 = vsel %vm409, %v967, %v968
          %v970 = vmul.f32 %v965, %v969
          %v971 = vmul.f32 %v966, %v969
          %v972 = vadd.f32 %v954, %v970
          %v973 = vadd.f32 %v955, %v971
          %974 = vrot.lane.b32.xlu0 %v253, 113
          %v975 = vpop.permute.xlu0 %974
          %976 = vrot.lane.b32.xlu0 %v254, 113
          %v977 = vpop.permute.xlu0 %976
          %vm978 = vcmp.lt.s32.totalorder %v356, 113
          %v979 = vsel %vm978, %v975, %v977
          %v980 = vsel %vm978, %v977, %v975
          %vm981 = vmand %vm936, %vm456
          %vm982 = vmand %vm937, %vm457
          %v983 = vsel %vm981, %v979, 0.0
          %v984 = vsel %vm982, %v980, 0.0
          %v985 = vstv %s285
          %v986 = vstv %s334
          %v987 = vsel %vm409, %v985, %v986
          %v988 = vmul.f32 %v983, %v987
          %v989 = vmul.f32 %v984, %v987
          %v990 = vadd.f32 %v972, %v988
          %v991 = vadd.f32 %v973, %v989
          %992 = vrot.lane.b32.xlu0 %v253, 112
          %v993 = vpop.permute.xlu0 %992
          %994 = vrot.lane.b32.xlu0 %v254, 112
          %v995 = vpop.permute.xlu0 %994
          %vm996 = vcmp.lt.s32.totalorder %v356, 112
          %v997 = vsel %vm996, %v993, %v995
          %v998 = vsel %vm996, %v995, %v993
          %v999 = vsel %vm936, %v997, 0.0
          %v1000 = vsel %vm937, %v998, 0.0
          %v1001 = vstv %s286
          %v1002 = vstv %s335
          %v1003 = vsel %vm409, %v1001, %v1002
          %v1004 = vmul.f32 %v999, %v1003
          %v1005 = vmul.f32 %v1000, %v1003
          %v1006 = vadd.f32 %v990, %v1004
          %v1007 = vadd.f32 %v991, %v1005
          %1008 = vrot.lane.b32.xlu0 %v253, 111
          %v1009 = vpop.permute.xlu0 %1008
          %1010 = vrot.lane.b32.xlu0 %v254, 111
          %v1011 = vpop.permute.xlu0 %1010
          %vm1012 = vcmp.lt.s32.totalorder %v356, 111
          %v1013 = vsel %vm1012, %v1009, %v1011
          %v1014 = vsel %vm1012, %v1011, %v1009
          %vm1015 = vmand %vm936, %vm498
          %vm1016 = vmand %vm937, %vm499
          %v1017 = vsel %vm1015, %v1013, 0.0
          %v1018 = vsel %vm1016, %v1014, 0.0
          %v1019 = vstv %s287
          %v1020 = vstv %s336
          %v1021 = vsel %vm409, %v1019, %v1020
          %v1022 = vmul.f32 %v1017, %v1021
          %v1023 = vmul.f32 %v1018, %v1021
          %v1024 = vadd.f32 %v1006, %v1022
          %v1025 = vadd.f32 %v1007, %v1023
          %1026 = vrot.lane.b32.xlu0 %v253, 110
          %v1027 = vpop.permute.xlu0 %1026
          %1028 = vrot.lane.b32.xlu0 %v254, 110
          %v1029 = vpop.permute.xlu0 %1028
          %vm1030 = vcmp.lt.s32.totalorder %v356, 110
          %v1031 = vsel %vm1030, %v1027, %v1029
          %v1032 = vsel %vm1030, %v1029, %v1027
          %vm1033 = vmand %vm936, %vm524
          %vm1034 = vmand %vm937, %vm525
          %v1035 = vsel %vm1033, %v1031, 0.0
          %v1036 = vsel %vm1034, %v1032, 0.0
          %v1037 = vstv %s288
          %v1038 = vstv %s337
          %v1039 = vsel %vm409, %v1037, %v1038
          %v1040 = vmul.f32 %v1035, %v1039
          %v1041 = vmul.f32 %v1036, %v1039
          %v1042 = vadd.f32 %v1024, %v1040
          %v1043 = vadd.f32 %v1025, %v1041
          %1044 = vrot.lane.b32.xlu0 %v253, 109
          %v1045 = vpop.permute.xlu0 %1044
          %1046 = vrot.lane.b32.xlu0 %v254, 109
          %v1047 = vpop.permute.xlu0 %1046
          %vm1048 = vcmp.lt.s32.totalorder %v356, 109
          %v1049 = vsel %vm1048, %v1045, %v1047
          %v1050 = vsel %vm1048, %v1047, %v1045
          %vm1051 = vmand %vm936, %vm550
          %vm1052 = vmand %vm937, %vm551
          %v1053 = vsel %vm1051, %v1049, 0.0
          %v1054 = vsel %vm1052, %v1050, 0.0
          %v1055 = vstv %s289
          %v1056 = vstv %s338
          %v1057 = vsel %vm409, %v1055, %v1056
          %v1058 = vmul.f32 %v1053, %v1057
          %v1059 = vmul.f32 %v1054, %v1057
          %v1060 = vadd.f32 %v1042, %v1058
          %v1061 = vadd.f32 %v1043, %v1059
          %v1062 = vadd.s32 %v356, 32
          %v1063 = vadd.s32 %v357, 32
          %vm1064 = vcmp.ge.s32.totalorder %v1062, 0
          %vm1065 = vcmp.ge.s32.totalorder %v1063, 0
          %vm1066 = vcmp.lt.s32.totalorder %v1062, 256
          %vm1067 = vcmp.lt.s32.totalorder %v1063, 256
          %vm1068 = vmand %vm1064, %vm1066
          %vm1069 = vmand %vm1065, %vm1067
          %1070 = vrot.lane.b32.xlu0 %v253, 99
          %v1071 = vpop.permute.xlu0 %1070
          %1072 = vrot.lane.b32.xlu0 %v254, 99
          %v1073 = vpop.permute.xlu0 %1072
          %vm1074 = vcmp.lt.s32.totalorder %v356, 99
          %v1075 = vsel %vm1074, %v1071, %v1073
          %v1076 = vsel %vm1074, %v1073, %v1071
          %vm1077 = vmand %vm1068, %vm403
          %vm1078 = vmand %vm1069, %vm404
          %v1079 = vsel %vm1077, %v1075, 0.0
          %v1080 = vsel %vm1078, %v1076, 0.0
          %v1081 = vstv %s290
          %v1082 = vstv %s339
          %v1083 = vsel %vm409, %v1081, %v1082
          %v1084 = vmul.f32 %v1079, %v1083
          %v1085 = vmul.f32 %v1080, %v1083
          %v1086 = vadd.f32 %v1060, %v1084
          %v1087 = vadd.f32 %v1061, %v1085
          %1088 = vrot.lane.b32.xlu0 %v253, 98
          %v1089 = vpop.permute.xlu0 %1088
          %1090 = vrot.lane.b32.xlu0 %v254, 98
          %v1091 = vpop.permute.xlu0 %1090
          %vm1092 = vcmp.lt.s32.totalorder %v356, 98
          %v1093 = vsel %vm1092, %v1089, %v1091
          %v1094 = vsel %vm1092, %v1091, %v1089
          %vm1095 = vmand %vm1068, %vm430
          %vm1096 = vmand %vm1069, %vm431
          %v1097 = vsel %vm1095, %v1093, 0.0
          %v1098 = vsel %vm1096, %v1094, 0.0
          %v1099 = vstv %s291
          %v1100 = vstv %s340
          %v1101 = vsel %vm409, %v1099, %v1100
          %v1102 = vmul.f32 %v1097, %v1101
          %v1103 = vmul.f32 %v1098, %v1101
          %v1104 = vadd.f32 %v1086, %v1102
          %v1105 = vadd.f32 %v1087, %v1103
          %1106 = vrot.lane.b32.xlu0 %v253, 97
          %v1107 = vpop.permute.xlu0 %1106
          %1108 = vrot.lane.b32.xlu0 %v254, 97
          %v1109 = vpop.permute.xlu0 %1108
          %vm1110 = vcmp.lt.s32.totalorder %v356, 97
          %v1111 = vsel %vm1110, %v1107, %v1109
          %v1112 = vsel %vm1110, %v1109, %v1107
          %vm1113 = vmand %vm1068, %vm456
          %vm1114 = vmand %vm1069, %vm457
          %v1115 = vsel %vm1113, %v1111, 0.0
          %v1116 = vsel %vm1114, %v1112, 0.0
          %v1117 = vstv %s292
          %v1118 = vstv %s341
          %v1119 = vsel %vm409, %v1117, %v1118
          %v1120 = vmul.f32 %v1115, %v1119
          %v1121 = vmul.f32 %v1116, %v1119
          %v1122 = vadd.f32 %v1104, %v1120
          %v1123 = vadd.f32 %v1105, %v1121
          %1124 = vrot.lane.b32.xlu0 %v253, 96
          %v1125 = vpop.permute.xlu0 %1124
          %1126 = vrot.lane.b32.xlu0 %v254, 96
          %v1127 = vpop.permute.xlu0 %1126
          %vm1128 = vcmp.lt.s32.totalorder %v356, 96
          %v1129 = vsel %vm1128, %v1125, %v1127
          %v1130 = vsel %vm1128, %v1127, %v1125
          %v1131 = vsel %vm1068, %v1129, 0.0
          %v1132 = vsel %vm1069, %v1130, 0.0
          %v1133 = vstv %s293
          %v1134 = vstv %s342
          %v1135 = vsel %vm409, %v1133, %v1134
          %v1136 = vmul.f32 %v1131, %v1135
          %v1137 = vmul.f32 %v1132, %v1135
          %v1138 = vadd.f32 %v1122, %v1136
          %v1139 = vadd.f32 %v1123, %v1137
          %1140 = vrot.lane.b32.xlu0 %v253, 95
          %v1141 = vpop.permute.xlu0 %1140
          %1142 = vrot.lane.b32.xlu0 %v254, 95
          %v1143 = vpop.permute.xlu0 %1142
          %vm1144 = vcmp.lt.s32.totalorder %v356, 95
          %v1145 = vsel %vm1144, %v1141, %v1143
          %v1146 = vsel %vm1144, %v1143, %v1141
          %vm1147 = vmand %vm1068, %vm498
          %vm1148 = vmand %vm1069, %vm499
          %v1149 = vsel %vm1147, %v1145, 0.0
          %v1150 = vsel %vm1148, %v1146, 0.0
          %v1151 = vstv %s294
          %v1152 = vstv %s343
          %v1153 = vsel %vm409, %v1151, %v1152
          %v1154 = vmul.f32 %v1149, %v1153
          %v1155 = vmul.f32 %v1150, %v1153
          %v1156 = vadd.f32 %v1138, %v1154
          %v1157 = vadd.f32 %v1139, %v1155
          %1158 = vrot.lane.b32.xlu0 %v253, 94
          %v1159 = vpop.permute.xlu0 %1158
          %1160 = vrot.lane.b32.xlu0 %v254, 94
          %v1161 = vpop.permute.xlu0 %1160
          %vm1162 = vcmp.lt.s32.totalorder %v356, 94
          %v1163 = vsel %vm1162, %v1159, %v1161
          %v1164 = vsel %vm1162, %v1161, %v1159
          %vm1165 = vmand %vm1068, %vm524
          %vm1166 = vmand %vm1069, %vm525
          %v1167 = vsel %vm1165, %v1163, 0.0
          %v1168 = vsel %vm1166, %v1164, 0.0
          %v1169 = vstv %s295
          %v1170 = vstv %s344
          %v1171 = vsel %vm409, %v1169, %v1170
          %v1172 = vmul.f32 %v1167, %v1171
          %v1173 = vmul.f32 %v1168, %v1171
          %v1174 = vadd.f32 %v1156, %v1172
          %v1175 = vadd.f32 %v1157, %v1173
          %1176 = vrot.lane.b32.xlu0 %v253, 93
          %v1177 = vpop.permute.xlu0 %1176
          %1178 = vrot.lane.b32.xlu0 %v254, 93
          %v1179 = vpop.permute.xlu0 %1178
          %vm1180 = vcmp.lt.s32.totalorder %v356, 93
          %v1181 = vsel %vm1180, %v1177, %v1179
          %v1182 = vsel %vm1180, %v1179, %v1177
          %vm1183 = vmand %vm1068, %vm550
          %vm1184 = vmand %vm1069, %vm551
          %v1185 = vsel %vm1183, %v1181, 0.0
          %v1186 = vsel %vm1184, %v1182, 0.0
          %v1187 = vstv %s296
          %v1188 = vstv %s345
          %v1189 = vsel %vm409, %v1187, %v1188
          %v1190 = vmul.f32 %v1185, %v1189
          %v1191 = vmul.f32 %v1186, %v1189
          %v1192 = vadd.f32 %v1174, %v1190
          %v1193 = vadd.f32 %v1175, %v1191
          %v1194 = vadd.s32 %v356, 48
          %v1195 = vadd.s32 %v357, 48
          %vm1196 = vcmp.ge.s32.totalorder %v1194, 0
          %vm1197 = vcmp.ge.s32.totalorder %v1195, 0
          %vm1198 = vcmp.lt.s32.totalorder %v1194, 256
          %vm1199 = vcmp.lt.s32.totalorder %v1195, 256
          %vm1200 = vmand %vm1196, %vm1198
          %vm1201 = vmand %vm1197, %vm1199
          %1202 = vrot.lane.b32.xlu0 %v253, 83
          %v1203 = vpop.permute.xlu0 %1202
          %1204 = vrot.lane.b32.xlu0 %v254, 83
          %v1205 = vpop.permute.xlu0 %1204
          %vm1206 = vcmp.lt.s32.totalorder %v356, 83
          %v1207 = vsel %vm1206, %v1203, %v1205
          %v1208 = vsel %vm1206, %v1205, %v1203
          %vm1209 = vmand %vm1200, %vm403
          %vm1210 = vmand %vm1201, %vm404
          %v1211 = vsel %vm1209, %v1207, 0.0
          %v1212 = vsel %vm1210, %v1208, 0.0
          %v1213 = vstv %s297
          %v1214 = vstv %s346
          %v1215 = vsel %vm409, %v1213, %v1214
          %v1216 = vmul.f32 %v1211, %v1215
          %v1217 = vmul.f32 %v1212, %v1215
          %v1218 = vadd.f32 %v1192, %v1216
          %v1219 = vadd.f32 %v1193, %v1217
          %1220 = vrot.lane.b32.xlu0 %v253, 82
          %v1221 = vpop.permute.xlu0 %1220
          %1222 = vrot.lane.b32.xlu0 %v254, 82
          %v1223 = vpop.permute.xlu0 %1222
          %vm1224 = vcmp.lt.s32.totalorder %v356, 82
          %v1225 = vsel %vm1224, %v1221, %v1223
          %v1226 = vsel %vm1224, %v1223, %v1221
          %vm1227 = vmand %vm1200, %vm430
          %vm1228 = vmand %vm1201, %vm431
          %v1229 = vsel %vm1227, %v1225, 0.0
          %v1230 = vsel %vm1228, %v1226, 0.0
          %v1231 = vstv %s298
          %v1232 = vstv %s347
          %v1233 = vsel %vm409, %v1231, %v1232
          %v1234 = vmul.f32 %v1229, %v1233
          %v1235 = vmul.f32 %v1230, %v1233
          %v1236 = vadd.f32 %v1218, %v1234
          %v1237 = vadd.f32 %v1219, %v1235
          %1238 = vrot.lane.b32.xlu0 %v253, 81
          %v1239 = vpop.permute.xlu0 %1238
          %1240 = vrot.lane.b32.xlu0 %v254, 81
          %v1241 = vpop.permute.xlu0 %1240
          %vm1242 = vcmp.lt.s32.totalorder %v356, 81
          %v1243 = vsel %vm1242, %v1239, %v1241
          %v1244 = vsel %vm1242, %v1241, %v1239
          %vm1245 = vmand %vm1200, %vm456
          %vm1246 = vmand %vm1201, %vm457
          %v1247 = vsel %vm1245, %v1243, 0.0
          %v1248 = vsel %vm1246, %v1244, 0.0
          %v1249 = vstv %s299
          %v1250 = vstv %s348
          %v1251 = vsel %vm409, %v1249, %v1250
          %v1252 = vmul.f32 %v1247, %v1251
          %v1253 = vmul.f32 %v1248, %v1251
          %v1254 = vadd.f32 %v1236, %v1252
          %v1255 = vadd.f32 %v1237, %v1253
          %1256 = vrot.lane.b32.xlu0 %v253, 80
          %v1257 = vpop.permute.xlu0 %1256
          %1258 = vrot.lane.b32.xlu0 %v254, 80
          %v1259 = vpop.permute.xlu0 %1258
          %vm1260 = vcmp.lt.s32.totalorder %v356, 80
          %v1261 = vsel %vm1260, %v1257, %v1259
          %v1262 = vsel %vm1260, %v1259, %v1257
          %v1263 = vsel %vm1200, %v1261, 0.0
          %v1264 = vsel %vm1201, %v1262, 0.0
          %v1265 = vstv %s300
          %v1266 = vstv %s349
          %v1267 = vsel %vm409, %v1265, %v1266
          %v1268 = vmul.f32 %v1263, %v1267
          %v1269 = vmul.f32 %v1264, %v1267
          %v1270 = vadd.f32 %v1254, %v1268
          %v1271 = vadd.f32 %v1255, %v1269
          %1272 = vrot.lane.b32.xlu0 %v253, 79
          %v1273 = vpop.permute.xlu0 %1272
          %1274 = vrot.lane.b32.xlu0 %v254, 79
          %v1275 = vpop.permute.xlu0 %1274
          %vm1276 = vcmp.lt.s32.totalorder %v356, 79
          %v1277 = vsel %vm1276, %v1273, %v1275
          %v1278 = vsel %vm1276, %v1275, %v1273
          %vm1279 = vmand %vm1200, %vm498
          %vm1280 = vmand %vm1201, %vm499
          %v1281 = vsel %vm1279, %v1277, 0.0
          %v1282 = vsel %vm1280, %v1278, 0.0
          %v1283 = vstv %s301
          %v1284 = vstv %s350
          %v1285 = vsel %vm409, %v1283, %v1284
          %v1286 = vmul.f32 %v1281, %v1285
          %v1287 = vmul.f32 %v1282, %v1285
          %v1288 = vadd.f32 %v1270, %v1286
          %v1289 = vadd.f32 %v1271, %v1287
          %1290 = vrot.lane.b32.xlu0 %v253, 78
          %v1291 = vpop.permute.xlu0 %1290
          %1292 = vrot.lane.b32.xlu0 %v254, 78
          %v1293 = vpop.permute.xlu0 %1292
          %vm1294 = vcmp.lt.s32.totalorder %v356, 78
          %v1295 = vsel %vm1294, %v1291, %v1293
          %v1296 = vsel %vm1294, %v1293, %v1291
          %vm1297 = vmand %vm1200, %vm524
          %vm1298 = vmand %vm1201, %vm525
          %v1299 = vsel %vm1297, %v1295, 0.0
          %v1300 = vsel %vm1298, %v1296, 0.0
          %v1301 = vstv %s302
          %v1302 = vstv %s351
          %v1303 = vsel %vm409, %v1301, %v1302
          %v1304 = vmul.f32 %v1299, %v1303
          %v1305 = vmul.f32 %v1300, %v1303
          %v1306 = vadd.f32 %v1288, %v1304
          %v1307 = vadd.f32 %v1289, %v1305
          %1308 = vrot.lane.b32.xlu0 %v253, 77
          %v1309 = vpop.permute.xlu0 %1308
          %1310 = vrot.lane.b32.xlu0 %v254, 77
          %v1311 = vpop.permute.xlu0 %1310
          %vm1312 = vcmp.lt.s32.totalorder %v356, 77
          %v1313 = vsel %vm1312, %v1309, %v1311
          %v1314 = vsel %vm1312, %v1311, %v1309
          %vm1315 = vmand %vm1200, %vm550
          %vm1316 = vmand %vm1201, %vm551
          %v1317 = vsel %vm1315, %v1313, 0.0
          %v1318 = vsel %vm1316, %v1314, 0.0
          %v1319 = vstv %s303
          %v1320 = vstv %s352
          %v1321 = vsel %vm409, %v1319, %v1320
          %v1322 = vmul.f32 %v1317, %v1321
          %v1323 = vmul.f32 %v1318, %v1321
          %v1324 = vadd.f32 %v1306, %v1322
          %v1325 = vadd.f32 %v1307, %v1323
          %vm1326 = vcmask 1041408
          %v1327 = vsel %vm1326, %v1324, 0.0
          %v1328 = vrot.slane %v1327, 4
          %v1329 = vadd.f32 %v1327, %v1328
          %v1330 = vrot.slane %v1329, 2
          %v1331 = vadd.f32 %v1329, %v1330
          %v1332 = vrot.slane %v1331, 1
          %v1333 = vadd.f32 %v1331, %v1332
          %v1334 = vsel %vm1326, %v1325, 0.0
          %v1335 = vrot.slane %v1334, 4
          %v1336 = vadd.f32 %v1334, %v1335
          %v1337 = vrot.slane %v1336, 2
          %v1338 = vadd.f32 %v1336, %v1337
          %v1339 = vrot.slane %v1338, 1
          %v1340 = vadd.f32 %v1338, %v1339
          %v1341 = vxor.u32 %v1333, 2147483648
          %v1342 = vxor.u32 %v1340, 2147483648
          %v1343 = vmul.f32 %v1341, 1.442695
          %v1344 = vpow.pop %v1343
          %v1345 = vmul.f32 %v1342, 1.442695
          %v1346 = vpow.pop %v1345
          %v1347 = vadd.f32 %v1344, 1.0
          %v1348 = vadd.f32 %v1346, 1.0
          %v1349 = vrcp.pop %v1347
          %v1350 = vmul.f32 1.0, %v1349
          %v1351 = vrcp.pop %v1348
          %v1352 = vmul.f32 1.0, %v1351
          %v1355 = vcombine.low %v1350, %v1352
          %v1357 = vunpack.c.l.s4 1966171168
          %v1358 = vunpack.c.0.s8 %v1357
          %v1359 = vlaneseq
          %v1360 = vshrl.u32 %v1359, 7
          %v1361 = vsub.s32 %v1358, %v1360
          %v1362 = vrot.slane %v1355, %v1361
          %v1364 = vunpack.c.l.s4 1966171168
          %v1365 = vunpack.c.0.s8 %v1364
          %v1366 = vlaneseq
          %v1367 = vshrl.u32 %v1366, 7
          %v1368 = vsub.s32 %v1365, %v1367
          %v1369 = vrot.slane %v1362, %v1368
          %v1371 = vlaneseq
          %vm1372 = vcmp.ge.s32.totalorder %v1371, 0
          %vm1373 = vcmp.lt.s32.totalorder %v1371, 256
          %vm1374 = vmand %vm1372, %vm1373
          %1375 = vst.msk [vmem:[%s189] sm:$0x3] %vm1374, %v1369
        $region44: #{tpu_custom_call.1} parent=27 // pred_fallthru
          _
        %s1376 = sand.u32 %s89, 1
        %s1377 = scalar_lea.sflag [#allocation6], %s1376
        %s1378 = sand.u32 %s89, 1
        %s1379 = smul.addr %s1378, 2
        %s1380 = scalar_lea.vmem [#allocation9], %s1379
        // Predicated region
        $region45: #{tpu_custom_call.1} parent=27 // pred_check
          %p1381 = pneg %p99
        $region46: #{tpu_custom_call.1} parent=27 // pred_check_branch
          %1383 = sbr.rel (%p1381) target = $region48
        $region47: #{tpu_custom_call.1} parent=27 // pred_region
          %s1385 = ssub.s32 32, 32
          %1386 = vsyncadd %s1377, %s1385
          %s1387 = smul.addr %s24, 2
          %s1388 = smul.addr %s1387, 16
          %s1389 = scalar_lea.hbm %s2, %s1388
          %s1391 = sshll.u32 %s1380, 4
          %s1392 = int_to_ptr.vmem [resolvable:$true] %s1391
          %1394 = dma.vmem_to_hbm [thread:$0]  %s1392, 32, %s1389, %s1377
        $region48: #{tpu_custom_call.1} parent=27 // pred_fallthru
          _
      $region28: #{tpu_custom_call.1} parent=5 // pred_fallthru
        _
      %p1395 = scmp.le.s32.totalorder 2, %s15
      // Predicated region
      $region49: #{tpu_custom_call.1} parent=5 // pred_check
        %p1396 = pneg %p1395
      $region50: #{tpu_custom_call.1} parent=5 // pred_check_branch
        %1398 = sbr.rel (%p1396) target = $region52
      $region51: #{tpu_custom_call.1} parent=5 // pred_region
        %s1399 = ssub.s32 %s15, 2
        // Predicated region
        $region53: #{tpu_custom_call.1} parent=51 // pred_check
          %p1400 = pneg %p105
        $region54: #{tpu_custom_call.1} parent=51 // pred_check_branch
          %1402 = sbr.rel (%p1400) target = $region56
        $region55: #{tpu_custom_call.1} parent=51 // pred_region
          %s1403 = sand.u32 %s90, 1
          %s1404 = scalar_lea.sflag [#allocation6], %s1403
          %s1405 = sand.u32 %s90, 1
          %s1406 = smul.addr %s1405, 2
          %s1407 = scalar_lea.vmem [#allocation9], %s1406
          %1408 = dma.done %s1404, 32
        $region56: #{tpu_custom_call.1} parent=51 // pred_fallthru
          _
      $region52: #{tpu_custom_call.1} parent=5 // pred_fallthru
        _
    $region6: #{tpu_custom_call.1} parent=1 // loop_footer
      %s19 = sadd.s32 1, %s15
    $region7: #{tpu_custom_call.1} parent=1 // loop_footer_branch
      %14 = sbr.rel target = $region3
    $region8: #{tpu_custom_call.1} parent=1 // loop_exit
      _
    %1409 = vsyncpa [#allocation5], 1
    %s1410 = scalar_lea.sflag [#allocation5], 1
    %1411 = vsyncpa %s1410, 1
    %1412 = vsyncpa [#allocation6], 1
    %s1413 = scalar_lea.sflag [#allocation6], 1
    %1414 = vsyncpa %s1413, 1
    %1415 = vsyncpa [#allocation7], 1
    %s1416 = scalar_lea.sflag [#allocation7], 1
    %1417 = vsyncpa %s1416, 1

</llo_original>
